<compile_context>
chip_gen: v6e
topology: v6e:2x2x1
jax: 0.10.0
libtpu: 0.0.40
codegen_flags: <defaults>
</compile_context>

<pallas_src>
import functools

import jax
import jax.numpy as jnp
from jax.experimental import pallas as pl
from jax.experimental.pallas import tpu as pltpu

MXU_DTYPE = jnp.bfloat16   # bf16 matmul inputs on all generations, f32 accumulate
TB = 128                   # batch tile (rows per grid step)


def _round_up(n, m):
    return pl.cdiv(n, m) * m


# --------------------------------------------------------------------------- kernel
def _net_kernel(x_ref, w1_ref, b1_ref, w2_ref, b2_ref, w3_ref, b3_ref, out_ref):
    x = x_ref[...]                                                   # (TB, S_pad) f32

    # layer 1 (actor || critic fused along lanes)
    h = jnp.dot(x.astype(w1_ref.dtype), w1_ref[...],
                preferred_element_type=jnp.float32)
    h = jnp.tanh(h + b1_ref[...])                                    # f32 VPU/EUP

    # layer 2 (block-diagonal, single MXU pass)
    h = jnp.dot(h.astype(w2_ref.dtype), w2_ref[...],
                preferred_element_type=jnp.float32)
    h = jnp.tanh(h + b2_ref[...])

    # layer 3 -> packed (logits | value | zero-pad) lane-dense output
    o = jnp.dot(h.astype(w3_ref.dtype), w3_ref[...],
                preferred_element_type=jnp.float32)
    out_ref[...] = (o + b3_ref[...]).astype(out_ref.dtype)


# --------------------------------------------------------------------------- wrapper
def net_forward(x, fused, *, action_dim):
    """x: (batch, state_dim) f32.  fused: dict from fuse_params().  Returns (logits, values)."""
    batch, state_dim = x.shape
    SP = fused["w1"].shape[0]          # padded state dim
    H2 = fused["w2"].shape[0]          # 2 * padded hidden
    OUT = fused["w3"].shape[1]         # padded (action_dim + 1)

    pb = _round_up(batch, TB)
    x_p = jnp.zeros((pb, SP), jnp.float32).at[:batch, :state_dim].set(x)

    grid = (pb // TB,)
    w_bytes = 2 * (SP * H2 + H2 * H2 + H2 * OUT)            # bf16 weights
    b_bytes = 4 * (2 * H2 + OUT)                            # f32 biases
    cost = pl.CostEstimate(
        flops=2 * pb * (SP * H2 + H2 * H2 + H2 * OUT),
        transcendentals=2 * pb * H2,
        bytes_accessed=pb * SP * 4 + pb * OUT * 4 + w_bytes + b_bytes,
    )

    out = pl.pallas_call(
        _net_kernel,
        out_shape=jax.ShapeDtypeStruct((pb, OUT), jnp.float32),
        grid=grid,
        in_specs=[
            pl.BlockSpec((TB, SP), lambda i: (i, 0)),      # x: tiled over batch
            pl.BlockSpec((SP, H2), lambda i: (0, 0)),      # fused weights: resident
            pl.BlockSpec((1, H2), lambda i: (0, 0)),
            pl.BlockSpec((H2, H2), lambda i: (0, 0)),
            pl.BlockSpec((1, H2), lambda i: (0, 0)),
            pl.BlockSpec((H2, OUT), lambda i: (0, 0)),
            pl.BlockSpec((1, OUT), lambda i: (0, 0)),
        ],
        out_specs=pl.BlockSpec((TB, OUT), lambda i: (i, 0)),
        compiler_params=pltpu.CompilerParams(
            dimension_semantics=("parallel",),             # megacore batch split on v7x
        ),
        cost_estimate=cost,
    )(x_p, fused["w1"], fused["b1"], fused["w2"], fused["b2"],
      fused["w3"], fused["b3"])

    logits = out[:batch, :action_dim]
    values = out[:batch, action_dim:action_dim + 1]
    return logits, values


# ----------------------------------------------------------------- params + fusion
def init_params(key, state_dim, action_dim, hidden=300):
    """PyTorch-style Linear params, weights stored transposed (in, out), biases (1, out)."""
    keys = jax.random.split(key, 12)

    def linear(kw, kb, fan_in, fan_out):
        bound = 1.0 / jnp.sqrt(jnp.float32(fan_in))
        w = jax.random.uniform(kw, (fan_in, fan_out), jnp.float32, -bound, bound)
        b = jax.random.uniform(kb, (1, fan_out), jnp.float32, -bound, bound)
        return w, b

    wa1, ba1 = linear(keys[0], keys[1], state_dim, hidden)
    wa2, ba2 = linear(keys[2], keys[3], hidden, hidden)
    wa3, ba3 = linear(keys[4], keys[5], hidden, action_dim)
    wc1, bc1 = linear(keys[6], keys[7], state_dim, hidden)
    wc2, bc2 = linear(keys[8], keys[9], hidden, hidden)
    wc3, bc3 = linear(keys[10], keys[11], hidden, 1)
    return dict(wa1=wa1, ba1=ba1, wa2=wa2, ba2=ba2, wa3=wa3, ba3=ba3,
                wc1=wc1, bc1=bc1, wc2=wc2, bc2=bc2, wc3=wc3, bc3=bc3)


def fuse_params(p, state_dim, action_dim, hidden=300):
    """Zero-pad + fuse actor/critic weights: concat for layer 1, block-diag for 2 & 3."""
    H = hidden
    HP = _round_up(H, 128)             # 300 -> 384 (clean vreg / MXU tiling)
    SP = _round_up(state_dim, 8)
    H2 = 2 * HP
    OUT = _round_up(action_dim + 1, 128)

    w1 = jnp.zeros((SP, H2), jnp.float32)
    w1 = w1.at[:state_dim, :H].set(p["wa1"])
    w1 = w1.at[:state_dim, HP:HP + H].set(p["wc1"])
    b1 = jnp.zeros((1, H2), jnp.float32)
    b1 = b1.at[:, :H].set(p["ba1"]).at[:, HP:HP + H].set(p["bc1"])

    w2 = jnp.zeros((H2, H2), jnp.float32)
    w2 = w2.at[:H, :H].set(p["wa2"])
    w2 = w2.at[HP:HP + H, HP:HP + H].set(p["wc2"])
    b2 = jnp.zeros((1, H2), jnp.float32)
    b2 = b2.at[:, :H].set(p["ba2"]).at[:, HP:HP + H].set(p["bc2"])

    w3 = jnp.zeros((H2, OUT), jnp.float32)
    w3 = w3.at[:H, :action_dim].set(p["wa3"])
    w3 = w3.at[HP:HP + H, action_dim:action_dim + 1].set(p["wc3"])
    b3 = jnp.zeros((1, OUT), jnp.float32)
    b3 = b3.at[:, :action_dim].set(p["ba3"])
    b3 = b3.at[:, action_dim:action_dim + 1].set(p["bc3"])

    return dict(w1=w1.astype(MXU_DTYPE), b1=b1,
                w2=w2.astype(MXU_DTYPE), b2=b2,
                w3=w3.astype(MXU_DTYPE), b3=b3)


# --------------------------------------------------------------------------- reference
def net_forward_ref(x, p):
    a = jnp.tanh(x @ p["wa1"] + p["ba1"])
    a = jnp.tanh(a @ p["wa2"] + p["ba2"])
    logits = a @ p["wa3"] + p["ba3"]
    c = jnp.tanh(x @ p["wc1"] + p["bc1"])
    c = jnp.tanh(c @ p["wc2"] + p["bc2"])
    values = c @ p["wc3"] + p["bc3"]
    return logits, values


if __name__ == "__main__":
    key = jax.random.PRNGKey(0)
    k_param, k_x = jax.random.split(key)

    # A3C nets are called on stacked rollout states -> use a real batch.
    batch, state_dim, action_dim = 256, 16, 6
    params = init_params(k_param, state_dim, action_dim)
    fused = fuse_params(params, state_dim, action_dim)
    x = jax.random.normal(k_x, (batch, state_dim), jnp.float32)

    fwd = jax.jit(functools.partial(net_forward, action_dim=action_dim))
    logits, values = fwd(x, fused)
    jax.block_until_ready((logits, values))

    ref_logits, ref_values = net_forward_ref(x, params)
    assert logits.shape == (batch, action_dim)
    assert values.shape == (batch, 1)
    # bf16 MXU inputs with f32 accumulation -> loosened tolerance vs f32 reference.
    assert jnp.allclose(logits, ref_logits, atol=5e-2, rtol=5e-2)
    assert jnp.allclose(values, ref_values, atol=5e-2, rtol=5e-2)

    print("KERNEL_OK")
</pallas_src>

<mosaic_0001>
module attributes {stable_mosaic.version = 11 : i64} {
  func.func @_net_kernel(%arg0: i32, %arg1: memref<128x16xf32, #tpu.memory_space<vmem>>, %arg2: memref<16x768xbf16, #tpu.memory_space<vmem>>, %arg3: memref<1x768xf32, #tpu.memory_space<vmem>>, %arg4: memref<768x768xbf16, #tpu.memory_space<vmem>>, %arg5: memref<1x768xf32, #tpu.memory_space<vmem>>, %arg6: memref<768x128xbf16, #tpu.memory_space<vmem>>, %arg7: memref<1x128xf32, #tpu.memory_space<vmem>>, %arg8: memref<128x128xf32, #tpu.memory_space<vmem>>) attributes {dimension_semantics = [#tpu.dimension_semantics<parallel>], iteration_bounds = array<i64: 2>, scalar_prefetch = 0 : i64, scratch_operands = 0 : i64, tpu.core_type = #tpu.core_type<tc>, window_params = [{transform_indices = @transform_0, window_bounds = array<i64: 128, 16>}, {pipeline_mode = #tpu.pipeline_mode<synchronous>, transform_indices = @transform_1, window_bounds = array<i64: 16, 768>}, {pipeline_mode = #tpu.pipeline_mode<synchronous>, transform_indices = @transform_2, window_bounds = array<i64: 1, 768>}, {pipeline_mode = #tpu.pipeline_mode<synchronous>, transform_indices = @transform_3, window_bounds = array<i64: 768, 768>}, {pipeline_mode = #tpu.pipeline_mode<synchronous>, transform_indices = @transform_4, window_bounds = array<i64: 1, 768>}, {pipeline_mode = #tpu.pipeline_mode<synchronous>, transform_indices = @transform_5, window_bounds = array<i64: 768, 128>}, {pipeline_mode = #tpu.pipeline_mode<synchronous>, transform_indices = @transform_6, window_bounds = array<i64: 1, 128>}, {transform_indices = @transform_7, window_bounds = array<i64: 128, 128>}]} {
    %c0 = arith.constant 0 : index
    %c0_0 = arith.constant 0 : index
    %0 = vector.load %arg1[%c0, %c0_0] : memref<128x16xf32, #tpu.memory_space<vmem>>, vector<128x16xf32>
    %1 = arith.truncf %0 : vector<128x16xf32> to vector<128x16xbf16>
    %c0_1 = arith.constant 0 : index
    %c0_2 = arith.constant 0 : index
    %2 = vector.load %arg2[%c0_1, %c0_2] : memref<16x768xbf16, #tpu.memory_space<vmem>>, vector<16x768xbf16>
    %cst = arith.constant dense<0.000000e+00> : vector<128x768xf32>
    %3 = tpu.matmul %1, %2, %cst {dimension_numbers = #tpu.dot_dimension_numbers<[1], [0], [0], [1], [0, 0, 1, 1], [], []>} : vector<128x16xbf16>, vector<16x768xbf16>, vector<128x768xf32> -> vector<128x768xf32>
    %c0_3 = arith.constant 0 : index
    %c0_4 = arith.constant 0 : index
    %4 = vector.load %arg3[%c0_3, %c0_4] : memref<1x768xf32, #tpu.memory_space<vmem>>, vector<1x768xf32>
    %5 = vector.broadcast %4 : vector<1x768xf32> to vector<128x768xf32>
    %6 = arith.addf %3, %5 : vector<128x768xf32>
    %7 = math.tanh %6 : vector<128x768xf32>
    %8 = arith.truncf %7 : vector<128x768xf32> to vector<128x768xbf16>
    %c0_5 = arith.constant 0 : index
    %c0_6 = arith.constant 0 : index
    %9 = vector.load %arg4[%c0_5, %c0_6] : memref<768x768xbf16, #tpu.memory_space<vmem>>, vector<768x768xbf16>
    %cst_7 = arith.constant dense<0.000000e+00> : vector<128x768xf32>
    %10 = tpu.matmul %8, %9, %cst_7 {dimension_numbers = #tpu.dot_dimension_numbers<[1], [0], [0], [1], [0, 0, 1, 1], [], []>} : vector<128x768xbf16>, vector<768x768xbf16>, vector<128x768xf32> -> vector<128x768xf32>
    %c0_8 = arith.constant 0 : index
    %c0_9 = arith.constant 0 : index
    %11 = vector.load %arg5[%c0_8, %c0_9] : memref<1x768xf32, #tpu.memory_space<vmem>>, vector<1x768xf32>
    %12 = vector.broadcast %11 : vector<1x768xf32> to vector<128x768xf32>
    %13 = arith.addf %10, %12 : vector<128x768xf32>
    %14 = math.tanh %13 : vector<128x768xf32>
    %15 = arith.truncf %14 : vector<128x768xf32> to vector<128x768xbf16>
    %c0_10 = arith.constant 0 : index
    %c0_11 = arith.constant 0 : index
    %16 = vector.load %arg6[%c0_10, %c0_11] : memref<768x128xbf16, #tpu.memory_space<vmem>>, vector<768x128xbf16>
    %cst_12 = arith.constant dense<0.000000e+00> : vector<128x128xf32>
    %17 = tpu.matmul %15, %16, %cst_12 {dimension_numbers = #tpu.dot_dimension_numbers<[1], [0], [0], [1], [0, 0, 1, 1], [], []>} : vector<128x768xbf16>, vector<768x128xbf16>, vector<128x128xf32> -> vector<128x128xf32>
    %c0_13 = arith.constant 0 : index
    %c0_14 = arith.constant 0 : index
    %18 = vector.load %arg7[%c0_13, %c0_14] : memref<1x128xf32, #tpu.memory_space<vmem>>, vector<1x128xf32>
    %19 = vector.broadcast %18 : vector<1x128xf32> to vector<128x128xf32>
    %20 = arith.addf %17, %19 : vector<128x128xf32>
    %c0_15 = arith.constant 0 : index
    %c0_16 = arith.constant 0 : index
    %21 = vector.load %arg8[%c0_15, %c0_16] : memref<128x128xf32, #tpu.memory_space<vmem>>, vector<128x128xf32>
    tpu.vector_store %arg8[%c0_15, %c0_16], %20 {strides = array<i32>} : memref<128x128xf32, #tpu.memory_space<vmem>>, vector<128x128xf32>,
    return
  }
  func.func @transform_0(%arg0: i32) -> (i32, i32) {
    %c0_i32 = arith.constant 0 : i32
    %c0_i32_0 = arith.constant 0 : i32
    return %arg0, %c0_i32 : i32, i32
  }
  func.func @transform_1(%arg0: i32) -> (i32, i32) {
    %c0_i32 = arith.constant 0 : i32
    %c0_i32_0 = arith.constant 0 : i32
    %c0_i32_1 = arith.constant 0 : i32
    return %c0_i32, %c0_i32_0 : i32, i32
  }
  func.func @transform_2(%arg0: i32) -> (i32, i32) {
    %c0_i32 = arith.constant 0 : i32
    %c0_i32_0 = arith.constant 0 : i32
    %c0_i32_1 = arith.constant 0 : i32
    return %c0_i32, %c0_i32_0 : i32, i32
  }
  func.func @transform_3(%arg0: i32) -> (i32, i32) {
    %c0_i32 = arith.constant 0 : i32
    %c0_i32_0 = arith.constant 0 : i32
    %c0_i32_1 = arith.constant 0 : i32
    return %c0_i32, %c0_i32_0 : i32, i32
  }
  func.func @transform_4(%arg0: i32) -> (i32, i32) {
    %c0_i32 = arith.constant 0 : i32
    %c0_i32_0 = arith.constant 0 : i32
    %c0_i32_1 = arith.constant 0 : i32
    return %c0_i32, %c0_i32_0 : i32, i32
  }
  func.func @transform_5(%arg0: i32) -> (i32, i32) {
    %c0_i32 = arith.constant 0 : i32
    %c0_i32_0 = arith.constant 0 : i32
    %c0_i32_1 = arith.constant 0 : i32
    return %c0_i32, %c0_i32_0 : i32, i32
  }
  func.func @transform_6(%arg0: i32) -> (i32, i32) {
    %c0_i32 = arith.constant 0 : i32
    %c0_i32_0 = arith.constant 0 : i32
    %c0_i32_1 = arith.constant 0 : i32
    return %c0_i32, %c0_i32_0 : i32, i32
  }
  func.func @transform_7(%arg0: i32) -> (i32, i32) {
    %c0_i32 = arith.constant 0 : i32
    %c0_i32_0 = arith.constant 0 : i32
    return %arg0, %c0_i32 : i32, i32
  }
}

</mosaic_0001>

<llo_original>
// kernel: net_forward.1
$region0: #{net_forward.1}
  #allocation0 [shape = 'u32[]', space=smem, size = 0x4, offset = 0x4, fixed_abs, tag = 'smem constant byte address 0x4 - core index']
  #allocation1 [shape = 'u32[144,128]{1,0:T(1,128)}', space=vmem, size = 0x12000, scoped, tag = 'internal scratch']
  %s0 = inlined_call_operand.vmem [shape: f32[256,16], index: 0, kind: input, shape index: {}]
  %s1 = inlined_call_operand.hbm [shape: bf16[16,768], index: 1, kind: input, shape index: {}]
  %s2 = inlined_call_operand.hbm [shape: f32[1,768], index: 2, kind: input, shape index: {}]
  %s3 = inlined_call_operand.hbm [shape: bf16[768,768], index: 3, kind: input, shape index: {}]
  %s4 = inlined_call_operand.hbm [shape: f32[1,768], index: 4, kind: input, shape index: {}]
  %s5 = inlined_call_operand.hbm [shape: bf16[768,128], index: 5, kind: input, shape index: {}]
  %s6 = inlined_call_operand.hbm [shape: f32[1,128], index: 6, kind: input, shape index: {}]
  %s7 = inlined_call_operand.vmem [shape: f32[256,128], index: 7, kind: output, shape index: {}]
  %s8 = sld [smem:[#allocation0]]
  $region85: #{net_forward.1} parent=0
    _
  %s10 = ssub.s32 1, %s8
  %s11 = scalar_select 0, %s10, %s8
  $region1: #{net_forward.1} parent=0
    #allocation2 [shape = 'u8[24576]{0}', space=vmem, size = 0x6000, scoped, tag = 'input window, operand 1, single buffered']
    #allocation3 [shape = 's32[2]{0}', space=sflag, size = 0x8, scoped, tag = 'scoped memory for net_forward.1']
    #allocation4 [shape = 'u8[3072]{0}', space=vmem, size = 0xc00, scoped, tag = 'input window, operand 2, single buffered']
    #allocation5 [shape = 's32[1]{0}', space=sflag, size = 0x4, scoped, tag = 'scoped memory for net_forward.1']
    #allocation6 [shape = 'u8[1179648]{0}', space=vmem, size = 0x120000, scoped, tag = 'input window, operand 3, single buffered']
    #allocation7 [shape = 'u8[3072]{0}', space=vmem, size = 0xc00, scoped, tag = 'input window, operand 4, single buffered']
    #allocation8 [shape = 's32[1]{0}', space=sflag, size = 0x4, scoped, tag = 'scoped memory for net_forward.1']
    #allocation9 [shape = 'u8[196608]{0}', space=vmem, size = 0x30000, scoped, tag = 'input window, operand 5, single buffered']
    #allocation10 [shape = 'u8[512]{0}', space=vmem, size = 0x400, scoped, tag = 'input window, operand 6, single buffered']
    #allocation11 [shape = 's32[1]{0}', space=sflag, size = 0x4, scoped, tag = 'scoped memory for net_forward.1']
    %12 = vsyncpa [#allocation3], 0
    %13 = vsyncpa [#allocation5], 0
    %14 = vsyncpa [#allocation8], 0
    %15 = vsyncpa [#allocation11], 0
    loop: start=0, step=1, limit=4
    $region2: #{net_forward.1} parent=1 // loop_pre_header
      _
    $region3: #{net_forward.1} parent=1 // loop_header
      %s17 = sphi 0, %s21
      %p18 = scmp.ge.s32.totalorder %s17, 4
      %s27 = sphi 0, %s29
      %s30 = sphi 0, %s27
      %s31 = sphi 0, %s30
      %s47 = sphi 0, %s31
      %s51 = sphi 0, %s51
      %s53 = sphi 0, %s51
      %s54 = sphi 0, %s53
      %s68 = sphi 0, %s54
      %s72 = sphi 0, %s72
      %s74 = sphi 0, %s72
      %s75 = sphi 0, %s74
      %s89 = sphi 0, %s75
      %s93 = sphi 0, %s93
      %s95 = sphi 0, %s93
      %s96 = sphi 0, %s95
      %s110 = sphi 0, %s96
      %s114 = sphi 0, %s114
      %s116 = sphi 0, %s114
      %s117 = sphi 0, %s116
      %s131 = sphi 0, %s117
      %s135 = sphi 0, %s135
      %s137 = sphi 0, %s135
      %s138 = sphi 0, %s137
      %s152 = sphi 0, %s138
      %s156 = sphi 0, %s156
      %s158 = sphi 0, %s156
      %s159 = sphi 0, %s158
      %s173 = sphi 0, %s159
      %s179 = sphi 0, %s181
      %s182 = sphi 0, %s179
      %s183 = sphi 0, %s182
      %s199 = sphi 0, %s183
    $region4: #{net_forward.1} parent=1 // loop_header_branch
      %20 = sbr.rel (%p18) target = $region8
    $region5: #{net_forward.1} parent=1 // loop_body
      %s22 = ssub.s32 %s17, 1
      %s23 = ssub.s32 %s17, 2
      %s24 = sadd.s32 %s17, 1
      %s25 = ssub.s32 %s17, %s24
      %p26 = scmp.eq.s32.totalorder %s25, 0
      %s28 = sadd.s32 %s27, 1
      %s29 = scalar_select %p26, %s27, %s28
      %p32 = pneg %p26
      %p33 = scmp.eq.s32.totalorder %s17, 1
      %p34 = por %p32, %p33
      %p35 = scmp.ne.s32.totalorder %s27, %s30
      %p36 = scmp.eq.s32.totalorder %s17, 0
      %p37 = por %p35, %p36
      %p38 = scmp.ne.s32.totalorder %s27, %s30
      %p39 = scmp.eq.s32.totalorder %s22, 1
      %p40 = por %p38, %p39
      %p41 = scmp.ne.s32.totalorder %s30, %s31
      %p42 = scmp.eq.s32.totalorder %s22, 0
      %p43 = por %p41, %p42
      %p44 = scmp.ne.s32.totalorder %s30, %s31
      %p45 = scmp.eq.s32.totalorder %s23, 1
      %p46 = por %p44, %p45
      %p48 = scmp.ne.s32.totalorder %s31, %s47
      %p49 = scmp.eq.s32.totalorder %s23, 0
      %p50 = por %p48, %p49
      %s52 = sadd.s32 %s51, 1
      %p55 = scmp.eq.s32.totalorder %s17, 1
      %p56 = scmp.ne.s32.totalorder %s51, %s53
      %p57 = scmp.eq.s32.totalorder %s17, 0
      %p58 = por %p56, %p57
      %p59 = scmp.ne.s32.totalorder %s51, %s53
      %p60 = scmp.eq.s32.totalorder %s22, 1
      %p61 = por %p59, %p60
      %p62 = scmp.ne.s32.totalorder %s53, %s54
      %p63 = scmp.eq.s32.totalorder %s22, 0
      %p64 = por %p62, %p63
      %p65 = scmp.ne.s32.totalorder %s53, %s54
      %p66 = scmp.eq.s32.totalorder %s23, 1
      %p67 = por %p65, %p66
      %p69 = scmp.ne.s32.totalorder %s54, %s68
      %p70 = scmp.eq.s32.totalorder %s23, 0
      %p71 = por %p69, %p70
      %s73 = sadd.s32 %s72, 1
      %p76 = scmp.eq.s32.totalorder %s17, 1
      %p77 = scmp.ne.s32.totalorder %s72, %s74
      %p78 = scmp.eq.s32.totalorder %s17, 0
      %p79 = por %p77, %p78
      %p80 = scmp.ne.s32.totalorder %s72, %s74
      %p81 = scmp.eq.s32.totalorder %s22, 1
      %p82 = por %p80, %p81
      %p83 = scmp.ne.s32.totalorder %s74, %s75
      %p84 = scmp.eq.s32.totalorder %s22, 0
      %p85 = por %p83, %p84
      %p86 = scmp.ne.s32.totalorder %s74, %s75
      %p87 = scmp.eq.s32.totalorder %s23, 1
      %p88 = por %p86, %p87
      %p90 = scmp.ne.s32.totalorder %s75, %s89
      %p91 = scmp.eq.s32.totalorder %s23, 0
      %p92 = por %p90, %p91
      %s94 = sadd.s32 %s93, 1
      %p97 = scmp.eq.s32.totalorder %s17, 1
      %p98 = scmp.ne.s32.totalorder %s93, %s95
      %p99 = scmp.eq.s32.totalorder %s17, 0
      %p100 = por %p98, %p99
      %p101 = scmp.ne.s32.totalorder %s93, %s95
      %p102 = scmp.eq.s32.totalorder %s22, 1
      %p103 = por %p101, %p102
      %p104 = scmp.ne.s32.totalorder %s95, %s96
      %p105 = scmp.eq.s32.totalorder %s22, 0
      %p106 = por %p104, %p105
      %p107 = scmp.ne.s32.totalorder %s95, %s96
      %p108 = scmp.eq.s32.totalorder %s23, 1
      %p109 = por %p107, %p108
      %p111 = scmp.ne.s32.totalorder %s96, %s110
      %p112 = scmp.eq.s32.totalorder %s23, 0
      %p113 = por %p111, %p112
      %s115 = sadd.s32 %s114, 1
      %p118 = scmp.eq.s32.totalorder %s17, 1
      %p119 = scmp.ne.s32.totalorder %s114, %s116
      %p120 = scmp.eq.s32.totalorder %s17, 0
      %p121 = por %p119, %p120
      %p122 = scmp.ne.s32.totalorder %s114, %s116
      %p123 = scmp.eq.s32.totalorder %s22, 1
      %p124 = por %p122, %p123
      %p125 = scmp.ne.s32.totalorder %s116, %s117
      %p126 = scmp.eq.s32.totalorder %s22, 0
      %p127 = por %p125, %p126
      %p128 = scmp.ne.s32.totalorder %s116, %s117
      %p129 = scmp.eq.s32.totalorder %s23, 1
      %p130 = por %p128, %p129
      %p132 = scmp.ne.s32.totalorder %s117, %s131
      %p133 = scmp.eq.s32.totalorder %s23, 0
      %p134 = por %p132, %p133
      %s136 = sadd.s32 %s135, 1
      %p139 = scmp.eq.s32.totalorder %s17, 1
      %p140 = scmp.ne.s32.totalorder %s135, %s137
      %p141 = scmp.eq.s32.totalorder %s17, 0
      %p142 = por %p140, %p141
      %p143 = scmp.ne.s32.totalorder %s135, %s137
      %p144 = scmp.eq.s32.totalorder %s22, 1
      %p145 = por %p143, %p144
      %p146 = scmp.ne.s32.totalorder %s137, %s138
      %p147 = scmp.eq.s32.totalorder %s22, 0
      %p148 = por %p146, %p147
      %p149 = scmp.ne.s32.totalorder %s137, %s138
      %p150 = scmp.eq.s32.totalorder %s23, 1
      %p151 = por %p149, %p150
      %p153 = scmp.ne.s32.totalorder %s138, %s152
      %p154 = scmp.eq.s32.totalorder %s23, 0
      %p155 = por %p153, %p154
      %s157 = sadd.s32 %s156, 1
      %p160 = scmp.eq.s32.totalorder %s17, 1
      %p161 = scmp.ne.s32.totalorder %s156, %s158
      %p162 = scmp.eq.s32.totalorder %s17, 0
      %p163 = por %p161, %p162
      %p164 = scmp.ne.s32.totalorder %s156, %s158
      %p165 = scmp.eq.s32.totalorder %s22, 1
      %p166 = por %p164, %p165
      %p167 = scmp.ne.s32.totalorder %s158, %s159
      %p168 = scmp.eq.s32.totalorder %s22, 0
      %p169 = por %p167, %p168
      %p170 = scmp.ne.s32.totalorder %s158, %s159
      %p171 = scmp.eq.s32.totalorder %s23, 1
      %p172 = por %p170, %p171
      %p174 = scmp.ne.s32.totalorder %s159, %s173
      %p175 = scmp.eq.s32.totalorder %s23, 0
      %p176 = por %p174, %p175
      %s177 = ssub.s32 %s17, %s24
      %p178 = scmp.eq.s32.totalorder %s177, 0
      %s180 = sadd.s32 %s179, 1
      %s181 = scalar_select %p178, %s179, %s180
      %p184 = pneg %p178
      %p185 = scmp.eq.s32.totalorder %s17, 1
      %p186 = por %p184, %p185
      %p187 = scmp.ne.s32.totalorder %s179, %s182
      %p188 = scmp.eq.s32.totalorder %s17, 0
      %p189 = por %p187, %p188
      %p190 = scmp.ne.s32.totalorder %s179, %s182
      %p191 = scmp.eq.s32.totalorder %s22, 1
      %p192 = por %p190, %p191
      %p193 = scmp.ne.s32.totalorder %s182, %s183
      %p194 = scmp.eq.s32.totalorder %s22, 0
      %p195 = por %p193, %p194
      %p196 = scmp.ne.s32.totalorder %s182, %s183
      %p197 = scmp.eq.s32.totalorder %s23, 1
      %p198 = por %p196, %p197
      %p200 = scmp.ne.s32.totalorder %s183, %s199
      %p201 = scmp.eq.s32.totalorder %s23, 0
      %p202 = por %p200, %p201
      %p203 = scmp.le.s32.totalorder 1, %s17
      %p204 = scmp.lt.s32.totalorder %s17, 3
      %p205 = pnand %p203, %p204
      %p206 = pneg %p205
      // Predicated region
      $region9: #{net_forward.1} parent=5 // pred_check
        _
      $region10: #{net_forward.1} parent=5 // pred_check_branch
        %208 = sbr.rel (%p205) target = $region12
      $region11: #{net_forward.1} parent=5 // pred_region
        %s209 = ssub.s32 %s17, 1
        // Predicated region
        $region13: #{net_forward.1} parent=11 // pred_check
          %p210 = pneg %p64
        $region14: #{net_forward.1} parent=11 // pred_check_branch
          %212 = sbr.rel (%p210) target = $region16
        $region15: #{net_forward.1} parent=11 // pred_region
          %s214 = ssub.s32 768, 768
          %215 = vsyncadd [#allocation3], %s214
          %s216 = sshll.u32 [#allocation2], 4
          %s217 = int_to_ptr.vmem [resolvable:$true] %s216
          %222 = dma.hbm_to_vmem [thread:$0]  %s1, 768, %s217, [#allocation3], 384, 384, 24
        $region16: #{net_forward.1} parent=11 // pred_fallthru
          _
        // Predicated region
        $region17: #{net_forward.1} parent=11 // pred_check
          %p223 = pneg %p85
        $region18: #{net_forward.1} parent=11 // pred_check_branch
          %225 = sbr.rel (%p223) target = $region20
        $region19: #{net_forward.1} parent=11 // pred_region
          %s227 = ssub.s32 96, 96
          %228 = vsyncadd [#allocation5], %s227
          %s230 = sshll.u32 [#allocation4], 4
          %s231 = int_to_ptr.vmem [resolvable:$true] %s230
          %233 = dma.hbm_to_vmem [thread:$0]  %s2, 96, %s231, [#allocation5]
        $region20: #{net_forward.1} parent=11 // pred_fallthru
          _
        // Predicated region
        $region21: #{net_forward.1} parent=11 // pred_check
          %p234 = pneg %p106
        $region22: #{net_forward.1} parent=11 // pred_check_branch
          %236 = sbr.rel (%p234) target = $region24
        $region23: #{net_forward.1} parent=11 // pred_region
          %s238 = ssub.s32 36864, 36864
          %239 = vsyncadd [#allocation5], %s238
          %s240 = sshll.u32 [#allocation6], 4
          %s241 = int_to_ptr.vmem [resolvable:$true] %s240
          %246 = dma.hbm_to_vmem [thread:$0]  %s3, 36864, %s241, [#allocation5], 384, 384, 24
        $region24: #{net_forward.1} parent=11 // pred_fallthru
          _
        // Predicated region
        $region25: #{net_forward.1} parent=11 // pred_check
          %p247 = pneg %p127
        $region26: #{net_forward.1} parent=11 // pred_check_branch
          %249 = sbr.rel (%p247) target = $region28
        $region27: #{net_forward.1} parent=11 // pred_region
          %s251 = ssub.s32 96, 96
          %252 = vsyncadd [#allocation8], %s251
          %s254 = sshll.u32 [#allocation7], 4
          %s255 = int_to_ptr.vmem [resolvable:$true] %s254
          %257 = dma.hbm_to_vmem [thread:$0]  %s4, 96, %s255, [#allocation8]
        $region28: #{net_forward.1} parent=11 // pred_fallthru
          _
        // Predicated region
        $region29: #{net_forward.1} parent=11 // pred_check
          %p258 = pneg %p148
        $region30: #{net_forward.1} parent=11 // pred_check_branch
          %260 = sbr.rel (%p258) target = $region32
        $region31: #{net_forward.1} parent=11 // pred_region
          %s262 = ssub.s32 6144, 6144
          %263 = vsyncadd [#allocation8], %s262
          %s264 = sshll.u32 [#allocation9], 4
          %s265 = int_to_ptr.vmem [resolvable:$true] %s264
          %270 = dma.hbm_to_vmem [thread:$0]  %s5, 6144, %s265, [#allocation8], 64, 64, 4
        $region32: #{net_forward.1} parent=11 // pred_fallthru
          _
        // Predicated region
        $region33: #{net_forward.1} parent=11 // pred_check
          %p271 = pneg %p169
        $region34: #{net_forward.1} parent=11 // pred_check_branch
          %273 = sbr.rel (%p271) target = $region36
        $region35: #{net_forward.1} parent=11 // pred_region
          %s275 = ssub.s32 16, 16
          %276 = vsyncadd [#allocation11], %s275
          %s278 = sshll.u32 [#allocation10], 4
          %s279 = int_to_ptr.vmem [resolvable:$true] %s278
          %281 = dma.hbm_to_vmem [thread:$0]  %s6, 16, %s279, [#allocation11]
        $region36: #{net_forward.1} parent=11 // pred_fallthru
          _
      $region12: #{net_forward.1} parent=5 // pred_fallthru
        _
      %p282 = scmp.lt.s32.totalorder %s17, 2
      // Predicated region
      $region37: #{net_forward.1} parent=5 // pred_check
        %p283 = pneg %p282
      $region38: #{net_forward.1} parent=5 // pred_check_branch
        %285 = sbr.rel (%p283) target = $region40
      $region39: #{net_forward.1} parent=5 // pred_region
        // Predicated region
        $region41: #{net_forward.1} parent=39 // pred_check
          %p286 = pneg %p37
        $region42: #{net_forward.1} parent=39 // pred_check_branch
          %288 = sbr.rel (%p286) target = $region44
        $region43: #{net_forward.1} parent=39 // pred_region
          %s289 = smul.u32 16, %s17
          %p290 = scmp.lt.s32.totalorder %s289, 31
          %s291 = scalar_select %p290, %s289, 31
          %s292 = smul.addr %s291, 8
          %s293 = scalar_lea.vmem %s0, %s292
          %s294 = smul.u32 16, %s17
        $region44: #{net_forward.1} parent=39 // pred_fallthru
          _
      $region40: #{net_forward.1} parent=5 // pred_fallthru
        _
      %p295 = scmp.le.s32.totalorder 1, %s17
      %p296 = scmp.lt.s32.totalorder %s17, 3
      %p297 = pnand %p295, %p296
      %p298 = pneg %p297
      // Predicated region
      $region45: #{net_forward.1} parent=5 // pred_check
        _
      $region46: #{net_forward.1} parent=5 // pred_check_branch
        %300 = sbr.rel (%p297) target = $region48
      $region47: #{net_forward.1} parent=5 // pred_region
        %s301 = ssub.s32 %s17, 1
        // Predicated region
        $region49: #{net_forward.1} parent=47 // pred_check
          %p302 = pneg %p64
        $region50: #{net_forward.1} parent=47 // pred_check_branch
          %304 = sbr.rel (%p302) target = $region52
        $region51: #{net_forward.1} parent=47 // pred_region
          %305 = dma.done [#allocation3], 768
        $region52: #{net_forward.1} parent=47 // pred_fallthru
          _
        // Predicated region
        $region53: #{net_forward.1} parent=47 // pred_check
          %p306 = pneg %p85
        $region54: #{net_forward.1} parent=47 // pred_check_branch
          %308 = sbr.rel (%p306) target = $region56
        $region55: #{net_forward.1} parent=47 // pred_region
          %309 = dma.done [#allocation5], 96
        $region56: #{net_forward.1} parent=47 // pred_fallthru
          _
        // Predicated region
        $region57: #{net_forward.1} parent=47 // pred_check
          %p310 = pneg %p106
        $region58: #{net_forward.1} parent=47 // pred_check_branch
          %312 = sbr.rel (%p310) target = $region60
        $region59: #{net_forward.1} parent=47 // pred_region
          %313 = dma.done [#allocation5], 36864
        $region60: #{net_forward.1} parent=47 // pred_fallthru
          _
        // Predicated region
        $region61: #{net_forward.1} parent=47 // pred_check
          %p314 = pneg %p127
        $region62: #{net_forward.1} parent=47 // pred_check_branch
          %316 = sbr.rel (%p314) target = $region64
        $region63: #{net_forward.1} parent=47 // pred_region
          %317 = dma.done [#allocation8], 96
        $region64: #{net_forward.1} parent=47 // pred_fallthru
          _
        // Predicated region
        $region65: #{net_forward.1} parent=47 // pred_check
          %p318 = pneg %p148
        $region66: #{net_forward.1} parent=47 // pred_check_branch
          %320 = sbr.rel (%p318) target = $region68
        $region67: #{net_forward.1} parent=47 // pred_region
          %321 = dma.done [#allocation8], 6144
        $region68: #{net_forward.1} parent=47 // pred_fallthru
          _
        // Predicated region
        $region69: #{net_forward.1} parent=47 // pred_check
          %p322 = pneg %p169
        $region70: #{net_forward.1} parent=47 // pred_check_branch
          %324 = sbr.rel (%p322) target = $region72
        $region71: #{net_forward.1} parent=47 // pred_region
          %325 = dma.done [#allocation11], 16
        $region72: #{net_forward.1} parent=47 // pred_fallthru
          _
        %s326 = smul.u32 16, %s22
        %p327 = scmp.lt.s32.totalorder %s326, 31
        %s328 = scalar_select %p327, %s326, 31
        %s329 = smul.addr %s328, 8
        %s330 = scalar_lea.vmem %s0, %s329
        %p331 = pneg %p43
        %p332 = pneg %p40
        %p333 = pneg %p64
        %p334 = pneg %p61
        %p335 = pneg %p85
        %p336 = pneg %p82
        %p337 = pneg %p106
        %p338 = pneg %p103
        %p339 = pneg %p127
        %p340 = pneg %p124
        %p341 = pneg %p148
        %p342 = pneg %p145
        %p343 = pneg %p169
        %p344 = pneg %p166
        %p345 = pneg %p195
        %p346 = pneg %p192
        %s347 = smul.u32 16, %s22
        %p348 = scmp.lt.s32.totalorder %s347, 31
        %s349 = scalar_select %p348, %s347, 31
        %s350 = smul.addr %s349, 8
        %s351 = scalar_lea.vmem %s7, %s350
        %s352 = smul.u32 16, %s22
        %p353 = scmp.lt.s32.totalorder %s352, 31
        %s354 = scalar_select %p353, %s352, 31
        %s355 = smul.addr %s354, 8
        %s356 = scalar_lea.vmem %s0, %s355
        %s357 = smul.u32 16, %s22
        %s358 = smul.u32 16, %s22
        %p359 = scmp.lt.s32.totalorder %s358, 31
        %s360 = scalar_select %p359, %s358, 31
        %s361 = smul.addr %s360, 8
        %s362 = scalar_lea.vmem %s7, %s361
        %s363 = smul.u32 16, %s22
        %v365 = vld [vmem:[%s356] sm:$0xff]
        %v366 = vld [vmem:[%s356 + $0x8] sm:$0xff]
        %v367 = vld [vmem:[%s356 + $0x10] sm:$0xff]
        %v368 = vld [vmem:[%s356 + $0x18] sm:$0xff]
        %v369 = vld [vmem:[%s356 + $0x20] sm:$0xff]
        %v370 = vld [vmem:[%s356 + $0x28] sm:$0xff]
        %v371 = vld [vmem:[%s356 + $0x30] sm:$0xff]
        %v372 = vld [vmem:[%s356 + $0x38] sm:$0xff]
        %v373 = vld [vmem:[%s356 + $0x40] sm:$0xff]
        %v374 = vld [vmem:[%s356 + $0x48] sm:$0xff]
        %v375 = vld [vmem:[%s356 + $0x50] sm:$0xff]
        %v376 = vld [vmem:[%s356 + $0x58] sm:$0xff]
        %v377 = vld [vmem:[%s356 + $0x60] sm:$0xff]
        %v378 = vld [vmem:[%s356 + $0x68] sm:$0xff]
        %v379 = vld [vmem:[%s356 + $0x70] sm:$0xff]
        %v380 = vld [vmem:[%s356 + $0x78] sm:$0xff]
        %v381 = vpack.c.bf16 %v366, %v365
        %v382 = vpack.c.bf16 %v368, %v367
        %v383 = vpack.c.bf16 %v370, %v369
        %v384 = vpack.c.bf16 %v372, %v371
        %v385 = vpack.c.bf16 %v374, %v373
        %v386 = vpack.c.bf16 %v376, %v375
        %v387 = vpack.c.bf16 %v378, %v377
        %v388 = vpack.c.bf16 %v380, %v379
        %v389 = vld [vmem:[#allocation2] sm:$0xff]
        %v390 = vld [vmem:[#allocation2 + $0x8] sm:$0xff]
        %v391 = vld [vmem:[#allocation2 + $0x10] sm:$0xff]
        %v392 = vld [vmem:[#allocation2 + $0x18] sm:$0xff]
        %v393 = vld [vmem:[#allocation2 + $0x20] sm:$0xff]
        %v394 = vld [vmem:[#allocation2 + $0x28] sm:$0xff]
        %v395 = vld [vmem:[#allocation4] sm:$0x3f]
        %v397 = vlaneseq
        %v398 = vshrl.u32 %v397, 7
        %v399 = vsub.s32 0, %v398
        %v400 = vrot.slane %v395, %v399
        %v401 = vlaneseq
        %v402 = vshrl.u32 %v401, 7
        %v403 = vsub.s32 1, %v402
        %v404 = vrot.slane %v395, %v403
        %v405 = vlaneseq
        %v406 = vshrl.u32 %v405, 7
        %v407 = vsub.s32 2, %v406
        %v408 = vrot.slane %v395, %v407
        %v409 = vlaneseq
        %v410 = vshrl.u32 %v409, 7
        %v411 = vsub.s32 3, %v410
        %v412 = vrot.slane %v395, %v411
        %v413 = vlaneseq
        %v414 = vshrl.u32 %v413, 7
        %v415 = vsub.s32 4, %v414
        %v416 = vrot.slane %v395, %v415
        %v417 = vlaneseq
        %v418 = vshrl.u32 %v417, 7
        %v419 = vsub.s32 5, %v418
        %v420 = vrot.slane %v395, %v419
        %v433 = vunpack.c.l.b16 %v389
        %v434 = vunpack.c.h.b16 %v389
        %v435 = vunpack.c.l.b16 %v390
        %v436 = vunpack.c.h.b16 %v390
        %v437 = vunpack.c.l.b16 %v391
        %v438 = vunpack.c.h.b16 %v391
        %v439 = vunpack.c.l.b16 %v392
        %v440 = vunpack.c.h.b16 %v392
        %v441 = vunpack.c.l.b16 %v393
        %v442 = vunpack.c.h.b16 %v393
        %v443 = vunpack.c.l.b16 %v394
        %v444 = vunpack.c.h.b16 %v394
        %v445 = vpack.c.b16 %v439, %v433
        %v446 = vpack.c.b16 %v440, %v434
        %v447 = vpack.c.b16 %v441, %v435
        %v448 = vpack.c.b16 %v442, %v436
        %v449 = vpack.c.b16 %v443, %v437
        %v450 = vpack.c.b16 %v444, %v438
        %vm457 = vcmask 130048
        %v459 = vsel %vm457, %v381, 0
        %v462 = vsel %vm457, %v382, 0
        %v465 = vsel %vm457, %v383, 0
        %v468 = vsel %vm457, %v384, 0
        %v471 = vsel %vm457, %v385, 0
        %v474 = vsel %vm457, %v386, 0
        %v477 = vsel %vm457, %v387, 0
        %v480 = vsel %vm457, %v388, 0
        %482 = vmatprep.subr.bf16.mxu0 0
        %483 = vmatpush1.bf16.msra.mxu0 0
        %484 = vmatprep.subr.bf16.mxu0 0
        %485 = vmatpush1.bf16.msra.mxu0 0
        %486 = vmatprep.subr.bf16.mxu0 0
        %487 = vmatpush1.bf16.msra.mxu0 0
        %488 = vmatprep.subr.bf16.mxu0 0
        %489 = vmatpush1.bf16.msra.mxu0 0
        %490 = vmatprep.subr.bf16.mxu0 0
        %491 = vmatpush1.bf16.msra.mxu0 0
        %492 = vmatprep.subr.bf16.mxu0 0
        %493 = vmatpush1.bf16.msra.mxu0 0
        %494 = vmatprep.subr.bf16.mxu0 0
        %495 = vmatpush1.bf16.msra.mxu0 0
        %496 = vmatprep.subr.bf16.mxu0 %v446
        %497 = vmatpush1.bf16.msra.mxu0 %v445
        %498 = vmatprep.subr.bf16.mxu0 0
        %499 = vmatpush2.bf16.msra.mxu0 0
        %500 = vmatprep.subr.bf16.mxu0 0
        %501 = vmatpush2.bf16.msra.mxu0 0
        %502 = vmatprep.subr.bf16.mxu0 0
        %503 = vmatpush2.bf16.msra.mxu0 0
        %504 = vmatprep.subr.bf16.mxu0 0
        %505 = vmatpush2.bf16.msra.mxu0 0
        %506 = vmatprep.subr.bf16.mxu0 0
        %507 = vmatpush2.bf16.msra.mxu0 0
        %508 = vmatprep.subr.bf16.mxu0 0
        %509 = vmatpush2.bf16.msra.mxu0 0
        %510 = vmatprep.subr.bf16.mxu0 0
        %511 = vmatpush2.bf16.msra.mxu0 0
        %512 = vmatprep.subr.bf16.mxu0 0
        %513 = vmatpush2.bf16.msra.mxu0 0
        %514 = vmatprep.mubr.bf16.mxu0 0
        %515 = vmatmul.mubr.bf16.gmra.mxu0 %v459
        %v516 = vpop.f32.mrf.mxu0
        %v517 = vadd.f32 %v400, %v516
        %v518 = vpop.f32.mrf.mxu0
        %v519 = vadd.f32 %v404, %v518
        %v520 = vpop.f32.mrf.mxu0
        %v521 = vadd.f32 %v400, %v520
        %v522 = vpop.f32.mrf.mxu0
        %v523 = vadd.f32 %v404, %v522
        %524 = vmatprep.mubr.bf16.mxu0 0
        %525 = vmatmul.mubr.bf16.gmra.mxu0 %v462
        %v526 = vpop.f32.mrf.mxu0
        %v527 = vadd.f32 %v400, %v526
        %v528 = vpop.f32.mrf.mxu0
        %v529 = vadd.f32 %v404, %v528
        %v530 = vpop.f32.mrf.mxu0
        %v531 = vadd.f32 %v400, %v530
        %v532 = vpop.f32.mrf.mxu0
        %v533 = vadd.f32 %v404, %v532
        %534 = vmatprep.mubr.bf16.mxu0 0
        %535 = vmatmul.mubr.bf16.gmra.mxu0 %v465
        %v536 = vpop.f32.mrf.mxu0
        %v537 = vadd.f32 %v400, %v536
        %v538 = vpop.f32.mrf.mxu0
        %v539 = vadd.f32 %v404, %v538
        %v540 = vpop.f32.mrf.mxu0
        %v541 = vadd.f32 %v400, %v540
        %v542 = vpop.f32.mrf.mxu0
        %v543 = vadd.f32 %v404, %v542
        %544 = vmatprep.mubr.bf16.mxu0 0
        %545 = vmatmul.mubr.bf16.gmra.mxu0 %v468
        %v546 = vpop.f32.mrf.mxu0
        %v547 = vadd.f32 %v400, %v546
        %v548 = vpop.f32.mrf.mxu0
        %v549 = vadd.f32 %v404, %v548
        %v550 = vpop.f32.mrf.mxu0
        %v551 = vadd.f32 %v400, %v550
        %v552 = vpop.f32.mrf.mxu0
        %v553 = vadd.f32 %v404, %v552
        %554 = vmatprep.mubr.bf16.mxu0 0
        %555 = vmatmul.mubr.bf16.gmra.mxu0 %v471
        %v556 = vpop.f32.mrf.mxu0
        %v557 = vadd.f32 %v400, %v556
        %v558 = vpop.f32.mrf.mxu0
        %v559 = vadd.f32 %v404, %v558
        %v560 = vpop.f32.mrf.mxu0
        %v561 = vadd.f32 %v400, %v560
        %v562 = vpop.f32.mrf.mxu0
        %v563 = vadd.f32 %v404, %v562
        %564 = vmatprep.mubr.bf16.mxu0 0
        %565 = vmatmul.mubr.bf16.gmra.mxu0 %v474
        %v566 = vpop.f32.mrf.mxu0
        %v567 = vadd.f32 %v400, %v566
        %v568 = vpop.f32.mrf.mxu0
        %v569 = vadd.f32 %v404, %v568
        %v570 = vpop.f32.mrf.mxu0
        %v571 = vadd.f32 %v400, %v570
        %v572 = vpop.f32.mrf.mxu0
        %v573 = vadd.f32 %v404, %v572
        %574 = vmatprep.mubr.bf16.mxu0 0
        %575 = vmatmul.mubr.bf16.gmra.mxu0 %v477
        %v576 = vpop.f32.mrf.mxu0
        %v577 = vadd.f32 %v400, %v576
        %v578 = vpop.f32.mrf.mxu0
        %v579 = vadd.f32 %v404, %v578
        %v580 = vpop.f32.mrf.mxu0
        %v581 = vadd.f32 %v400, %v580
        %v582 = vpop.f32.mrf.mxu0
        %v583 = vadd.f32 %v404, %v582
        %584 = vmatprep.mubr.bf16.mxu0 0
        %585 = vmatmul.mubr.bf16.gmra.mxu0 %v480
        %v586 = vpop.f32.mrf.mxu0
        %v587 = vadd.f32 %v400, %v586
        %v588 = vpop.f32.mrf.mxu0
        %v589 = vadd.f32 %v404, %v588
        %v590 = vpop.f32.mrf.mxu0
        %v591 = vadd.f32 %v400, %v590
        %v592 = vpop.f32.mrf.mxu0
        %v593 = vadd.f32 %v404, %v592
        %594 = vdwg.mxu0
        %595 = vmatprep.subr.bf16.mxu0 0
        %596 = vmatpush1.bf16.msra.mxu0 0
        %597 = vmatprep.subr.bf16.mxu0 0
        %598 = vmatpush1.bf16.msra.mxu0 0
        %599 = vmatprep.subr.bf16.mxu0 0
        %600 = vmatpush1.bf16.msra.mxu0 0
        %601 = vmatprep.subr.bf16.mxu0 0
        %602 = vmatpush1.bf16.msra.mxu0 0
        %603 = vmatprep.subr.bf16.mxu0 0
        %604 = vmatpush1.bf16.msra.mxu0 0
        %605 = vmatprep.subr.bf16.mxu0 0
        %606 = vmatpush1.bf16.msra.mxu0 0
        %607 = vmatprep.subr.bf16.mxu0 0
        %608 = vmatpush1.bf16.msra.mxu0 0
        %609 = vmatprep.subr.bf16.mxu0 %v448
        %610 = vmatpush1.bf16.msra.mxu0 %v447
        %611 = vmatprep.subr.bf16.mxu0 0
        %612 = vmatpush2.bf16.msra.mxu0 0
        %613 = vmatprep.subr.bf16.mxu0 0
        %614 = vmatpush2.bf16.msra.mxu0 0
        %615 = vmatprep.subr.bf16.mxu0 0
        %616 = vmatpush2.bf16.msra.mxu0 0
        %617 = vmatprep.subr.bf16.mxu0 0
        %618 = vmatpush2.bf16.msra.mxu0 0
        %619 = vmatprep.subr.bf16.mxu0 0
        %620 = vmatpush2.bf16.msra.mxu0 0
        %621 = vmatprep.subr.bf16.mxu0 0
        %622 = vmatpush2.bf16.msra.mxu0 0
        %623 = vmatprep.subr.bf16.mxu0 0
        %624 = vmatpush2.bf16.msra.mxu0 0
        %625 = vmatprep.subr.bf16.mxu0 0
        %626 = vmatpush2.bf16.msra.mxu0 0
        %627 = vmatprep.mubr.bf16.mxu0 0
        %628 = vmatmul.mubr.bf16.gmra.mxu0 %v459
        %v629 = vpop.f32.mrf.mxu0
        %v630 = vadd.f32 %v408, %v629
        %v631 = vpop.f32.mrf.mxu0
        %v632 = vadd.f32 %v412, %v631
        %v633 = vpop.f32.mrf.mxu0
        %v634 = vadd.f32 %v408, %v633
        %v635 = vpop.f32.mrf.mxu0
        %v636 = vadd.f32 %v412, %v635
        %637 = vmatprep.mubr.bf16.mxu0 0
        %638 = vmatmul.mubr.bf16.gmra.mxu0 %v462
        %v639 = vpop.f32.mrf.mxu0
        %v640 = vadd.f32 %v408, %v639
        %v641 = vpop.f32.mrf.mxu0
        %v642 = vadd.f32 %v412, %v641
        %v643 = vpop.f32.mrf.mxu0
        %v644 = vadd.f32 %v408, %v643
        %v645 = vpop.f32.mrf.mxu0
        %v646 = vadd.f32 %v412, %v645
        %647 = vmatprep.mubr.bf16.mxu0 0
        %648 = vmatmul.mubr.bf16.gmra.mxu0 %v465
        %v649 = vpop.f32.mrf.mxu0
        %v650 = vadd.f32 %v408, %v649
        %v651 = vpop.f32.mrf.mxu0
        %v652 = vadd.f32 %v412, %v651
        %v653 = vpop.f32.mrf.mxu0
        %v654 = vadd.f32 %v408, %v653
        %v655 = vpop.f32.mrf.mxu0
        %v656 = vadd.f32 %v412, %v655
        %657 = vmatprep.mubr.bf16.mxu0 0
        %658 = vmatmul.mubr.bf16.gmra.mxu0 %v468
        %v659 = vpop.f32.mrf.mxu0
        %v660 = vadd.f32 %v408, %v659
        %v661 = vpop.f32.mrf.mxu0
        %v662 = vadd.f32 %v412, %v661
        %v663 = vpop.f32.mrf.mxu0
        %v664 = vadd.f32 %v408, %v663
        %v665 = vpop.f32.mrf.mxu0
        %v666 = vadd.f32 %v412, %v665
        %667 = vmatprep.mubr.bf16.mxu0 0
        %668 = vmatmul.mubr.bf16.gmra.mxu0 %v471
        %v669 = vpop.f32.mrf.mxu0
        %v670 = vadd.f32 %v408, %v669
        %v671 = vpop.f32.mrf.mxu0
        %v672 = vadd.f32 %v412, %v671
        %v673 = vpop.f32.mrf.mxu0
        %v674 = vadd.f32 %v408, %v673
        %v675 = vpop.f32.mrf.mxu0
        %v676 = vadd.f32 %v412, %v675
        %677 = vmatprep.mubr.bf16.mxu0 0
        %678 = vmatmul.mubr.bf16.gmra.mxu0 %v474
        %v679 = vpop.f32.mrf.mxu0
        %v680 = vadd.f32 %v408, %v679
        %v681 = vpop.f32.mrf.mxu0
        %v682 = vadd.f32 %v412, %v681
        %v683 = vpop.f32.mrf.mxu0
        %v684 = vadd.f32 %v408, %v683
        %v685 = vpop.f32.mrf.mxu0
        %v686 = vadd.f32 %v412, %v685
        %687 = vmatprep.mubr.bf16.mxu0 0
        %688 = vmatmul.mubr.bf16.gmra.mxu0 %v477
        %v689 = vpop.f32.mrf.mxu0
        %v690 = vadd.f32 %v408, %v689
        %v691 = vpop.f32.mrf.mxu0
        %v692 = vadd.f32 %v412, %v691
        %v693 = vpop.f32.mrf.mxu0
        %v694 = vadd.f32 %v408, %v693
        %v695 = vpop.f32.mrf.mxu0
        %v696 = vadd.f32 %v412, %v695
        %697 = vmatprep.mubr.bf16.mxu0 0
        %698 = vmatmul.mubr.bf16.gmra.mxu0 %v480
        %v699 = vpop.f32.mrf.mxu0
        %v700 = vadd.f32 %v408, %v699
        %v701 = vpop.f32.mrf.mxu0
        %v702 = vadd.f32 %v412, %v701
        %v703 = vpop.f32.mrf.mxu0
        %v704 = vadd.f32 %v408, %v703
        %v705 = vpop.f32.mrf.mxu0
        %v706 = vadd.f32 %v412, %v705
        %707 = vdwg.mxu0
        %708 = vmatprep.subr.bf16.mxu0 0
        %709 = vmatpush1.bf16.msra.mxu0 0
        %710 = vmatprep.subr.bf16.mxu0 0
        %711 = vmatpush1.bf16.msra.mxu0 0
        %712 = vmatprep.subr.bf16.mxu0 0
        %713 = vmatpush1.bf16.msra.mxu0 0
        %714 = vmatprep.subr.bf16.mxu0 0
        %715 = vmatpush1.bf16.msra.mxu0 0
        %716 = vmatprep.subr.bf16.mxu0 0
        %717 = vmatpush1.bf16.msra.mxu0 0
        %718 = vmatprep.subr.bf16.mxu0 0
        %719 = vmatpush1.bf16.msra.mxu0 0
        %720 = vmatprep.subr.bf16.mxu0 0
        %721 = vmatpush1.bf16.msra.mxu0 0
        %722 = vmatprep.subr.bf16.mxu0 %v450
        %723 = vmatpush1.bf16.msra.mxu0 %v449
        %724 = vmatprep.subr.bf16.mxu0 0
        %725 = vmatpush2.bf16.msra.mxu0 0
        %726 = vmatprep.subr.bf16.mxu0 0
        %727 = vmatpush2.bf16.msra.mxu0 0
        %728 = vmatprep.subr.bf16.mxu0 0
        %729 = vmatpush2.bf16.msra.mxu0 0
        %730 = vmatprep.subr.bf16.mxu0 0
        %731 = vmatpush2.bf16.msra.mxu0 0
        %732 = vmatprep.subr.bf16.mxu0 0
        %733 = vmatpush2.bf16.msra.mxu0 0
        %734 = vmatprep.subr.bf16.mxu0 0
        %735 = vmatpush2.bf16.msra.mxu0 0
        %736 = vmatprep.subr.bf16.mxu0 0
        %737 = vmatpush2.bf16.msra.mxu0 0
        %738 = vmatprep.subr.bf16.mxu0 0
        %739 = vmatpush2.bf16.msra.mxu0 0
        %740 = vmatprep.mubr.bf16.mxu0 0
        %741 = vmatmul.mubr.bf16.gmra.mxu0 %v459
        %v742 = vpop.f32.mrf.mxu0
        %v743 = vadd.f32 %v416, %v742
        %v744 = vpop.f32.mrf.mxu0
        %v745 = vadd.f32 %v420, %v744
        %v746 = vpop.f32.mrf.mxu0
        %v747 = vadd.f32 %v416, %v746
        %v748 = vpop.f32.mrf.mxu0
        %v749 = vadd.f32 %v420, %v748
        %750 = vmatprep.mubr.bf16.mxu0 0
        %751 = vmatmul.mubr.bf16.gmra.mxu0 %v462
        %v752 = vpop.f32.mrf.mxu0
        %v753 = vadd.f32 %v416, %v752
        %v754 = vpop.f32.mrf.mxu0
        %v755 = vadd.f32 %v420, %v754
        %v756 = vpop.f32.mrf.mxu0
        %v757 = vadd.f32 %v416, %v756
        %v758 = vpop.f32.mrf.mxu0
        %v759 = vadd.f32 %v420, %v758
        %760 = vmatprep.mubr.bf16.mxu0 0
        %761 = vmatmul.mubr.bf16.gmra.mxu0 %v465
        %v762 = vpop.f32.mrf.mxu0
        %v763 = vadd.f32 %v416, %v762
        %v764 = vpop.f32.mrf.mxu0
        %v765 = vadd.f32 %v420, %v764
        %v766 = vpop.f32.mrf.mxu0
        %v767 = vadd.f32 %v416, %v766
        %v768 = vpop.f32.mrf.mxu0
        %v769 = vadd.f32 %v420, %v768
        %770 = vmatprep.mubr.bf16.mxu0 0
        %771 = vmatmul.mubr.bf16.gmra.mxu0 %v468
        %v772 = vpop.f32.mrf.mxu0
        %v773 = vadd.f32 %v416, %v772
        %v774 = vpop.f32.mrf.mxu0
        %v775 = vadd.f32 %v420, %v774
        %v776 = vpop.f32.mrf.mxu0
        %v777 = vadd.f32 %v416, %v776
        %v778 = vpop.f32.mrf.mxu0
        %v779 = vadd.f32 %v420, %v778
        %780 = vmatprep.mubr.bf16.mxu0 0
        %781 = vmatmul.mubr.bf16.gmra.mxu0 %v471
        %v782 = vpop.f32.mrf.mxu0
        %v783 = vadd.f32 %v416, %v782
        %v784 = vpop.f32.mrf.mxu0
        %v785 = vadd.f32 %v420, %v784
        %v786 = vpop.f32.mrf.mxu0
        %v787 = vadd.f32 %v416, %v786
        %v788 = vpop.f32.mrf.mxu0
        %v789 = vadd.f32 %v420, %v788
        %790 = vmatprep.mubr.bf16.mxu0 0
        %791 = vmatmul.mubr.bf16.gmra.mxu0 %v474
        %v792 = vpop.f32.mrf.mxu0
        %v793 = vadd.f32 %v416, %v792
        %v794 = vpop.f32.mrf.mxu0
        %v795 = vadd.f32 %v420, %v794
        %v796 = vpop.f32.mrf.mxu0
        %v797 = vadd.f32 %v416, %v796
        %v798 = vpop.f32.mrf.mxu0
        %v799 = vadd.f32 %v420, %v798
        %800 = vmatprep.mubr.bf16.mxu0 0
        %801 = vmatmul.mubr.bf16.gmra.mxu0 %v477
        %v802 = vpop.f32.mrf.mxu0
        %v803 = vadd.f32 %v416, %v802
        %v804 = vpop.f32.mrf.mxu0
        %v805 = vadd.f32 %v420, %v804
        %v806 = vpop.f32.mrf.mxu0
        %v807 = vadd.f32 %v416, %v806
        %v808 = vpop.f32.mrf.mxu0
        %v809 = vadd.f32 %v420, %v808
        %810 = vmatprep.mubr.bf16.mxu0 0
        %811 = vmatmul.mubr.bf16.gmra.mxu0 %v480
        %v812 = vpop.f32.mrf.mxu0
        %v813 = vadd.f32 %v416, %v812
        %v814 = vpop.f32.mrf.mxu0
        %v815 = vadd.f32 %v420, %v814
        %v816 = vpop.f32.mrf.mxu0
        %v817 = vadd.f32 %v416, %v816
        %v818 = vpop.f32.mrf.mxu0
        %v819 = vadd.f32 %v420, %v818
        %820 = vdwg.mxu0
        %v821 = vtanh.pop %v517
        %v822 = vtanh.pop %v519
        %v823 = vtanh.pop %v630
        %v824 = vtanh.pop %v632
        %v825 = vtanh.pop %v743
        %v826 = vtanh.pop %v745
        %v827 = vtanh.pop %v521
        %v828 = vtanh.pop %v523
        %v829 = vtanh.pop %v634
        %v830 = vtanh.pop %v636
        %v831 = vtanh.pop %v747
        %v832 = vtanh.pop %v749
        %v833 = vtanh.pop %v527
        %v834 = vtanh.pop %v529
        %v835 = vtanh.pop %v640
        %v836 = vtanh.pop %v642
        %v837 = vtanh.pop %v753
        %v838 = vtanh.pop %v755
        %v839 = vtanh.pop %v531
        %v840 = vtanh.pop %v533
        %v841 = vtanh.pop %v644
        %v842 = vtanh.pop %v646
        %v843 = vtanh.pop %v757
        %v844 = vtanh.pop %v759
        %v845 = vtanh.pop %v537
        %v846 = vtanh.pop %v539
        %v847 = vtanh.pop %v650
        %v848 = vtanh.pop %v652
        %v849 = vtanh.pop %v763
        %v850 = vtanh.pop %v765
        %v851 = vtanh.pop %v541
        %v852 = vtanh.pop %v543
        %v853 = vtanh.pop %v654
        %v854 = vtanh.pop %v656
        %v855 = vtanh.pop %v767
        %v856 = vtanh.pop %v769
        %v857 = vtanh.pop %v547
        %v858 = vtanh.pop %v549
        %v859 = vtanh.pop %v660
        %v860 = vtanh.pop %v662
        %v861 = vtanh.pop %v773
        %v862 = vtanh.pop %v775
        %v863 = vtanh.pop %v551
        %v864 = vtanh.pop %v553
        %v865 = vtanh.pop %v664
        %v866 = vtanh.pop %v666
        %v867 = vtanh.pop %v777
        %v868 = vtanh.pop %v779
        %v869 = vtanh.pop %v557
        %v870 = vtanh.pop %v559
        %v871 = vtanh.pop %v670
        %v872 = vtanh.pop %v672
        %v873 = vtanh.pop %v783
        %v874 = vtanh.pop %v785
        %v875 = vtanh.pop %v561
        %v876 = vtanh.pop %v563
        %v877 = vtanh.pop %v674
        %v878 = vtanh.pop %v676
        %v879 = vtanh.pop %v787
        %v880 = vtanh.pop %v789
        %v881 = vtanh.pop %v567
        %v882 = vtanh.pop %v569
        %v883 = vtanh.pop %v680
        %v884 = vtanh.pop %v682
        %v885 = vtanh.pop %v793
        %v886 = vtanh.pop %v795
        %v887 = vtanh.pop %v571
        %v888 = vtanh.pop %v573
        %v889 = vtanh.pop %v684
        %v890 = vtanh.pop %v686
        %v891 = vtanh.pop %v797
        %v892 = vtanh.pop %v799
        %v893 = vtanh.pop %v577
        %v894 = vtanh.pop %v579
        %v895 = vtanh.pop %v690
        %v896 = vtanh.pop %v692
        %v897 = vtanh.pop %v803
        %v898 = vtanh.pop %v805
        %v899 = vtanh.pop %v581
        %v900 = vtanh.pop %v583
        %v901 = vtanh.pop %v694
        %v902 = vtanh.pop %v696
        %v903 = vtanh.pop %v807
        %v904 = vtanh.pop %v809
        %v905 = vtanh.pop %v587
        %v906 = vtanh.pop %v589
        %v907 = vtanh.pop %v700
        %v908 = vtanh.pop %v702
        %v909 = vtanh.pop %v813
        %v910 = vtanh.pop %v815
        %v911 = vtanh.pop %v591
        %v912 = vtanh.pop %v593
        %v913 = vtanh.pop %v704
        %v914 = vtanh.pop %v706
        %v915 = vtanh.pop %v817
        %v916 = vtanh.pop %v819
        %v917 = vpack.c.bf16 %v827, %v821
        %v918 = vpack.c.bf16 %v828, %v822
        %v919 = vpack.c.bf16 %v829, %v823
        %v920 = vpack.c.bf16 %v830, %v824
        %v921 = vpack.c.bf16 %v831, %v825
        %v922 = vpack.c.bf16 %v832, %v826
        %v923 = vpack.c.bf16 %v839, %v833
        %v924 = vpack.c.bf16 %v840, %v834
        %v925 = vpack.c.bf16 %v841, %v835
        %v926 = vpack.c.bf16 %v842, %v836
        %v927 = vpack.c.bf16 %v843, %v837
        %v928 = vpack.c.bf16 %v844, %v838
        %v929 = vpack.c.bf16 %v851, %v845
        %v930 = vpack.c.bf16 %v852, %v846
        %v931 = vpack.c.bf16 %v853, %v847
        %v932 = vpack.c.bf16 %v854, %v848
        %v933 = vpack.c.bf16 %v855, %v849
        %v934 = vpack.c.bf16 %v856, %v850
        %v935 = vpack.c.bf16 %v863, %v857
        %v936 = vpack.c.bf16 %v864, %v858
        %v937 = vpack.c.bf16 %v865, %v859
        %v938 = vpack.c.bf16 %v866, %v860
        %v939 = vpack.c.bf16 %v867, %v861
        %v940 = vpack.c.bf16 %v868, %v862
        %v941 = vpack.c.bf16 %v875, %v869
        %v942 = vpack.c.bf16 %v876, %v870
        %v943 = vpack.c.bf16 %v877, %v871
        %v944 = vpack.c.bf16 %v878, %v872
        %v945 = vpack.c.bf16 %v879, %v873
        %v946 = vpack.c.bf16 %v880, %v874
        %v947 = vpack.c.bf16 %v887, %v881
        %v948 = vpack.c.bf16 %v888, %v882
        %v949 = vpack.c.bf16 %v889, %v883
        %v950 = vpack.c.bf16 %v890, %v884
        %v951 = vpack.c.bf16 %v891, %v885
        %v952 = vpack.c.bf16 %v892, %v886
        %v953 = vpack.c.bf16 %v899, %v893
        %v954 = vpack.c.bf16 %v900, %v894
        %v955 = vpack.c.bf16 %v901, %v895
        %v956 = vpack.c.bf16 %v902, %v896
        %v957 = vpack.c.bf16 %v903, %v897
        %v958 = vpack.c.bf16 %v904, %v898
        %v959 = vpack.c.bf16 %v911, %v905
        %v960 = vpack.c.bf16 %v912, %v906
        %v961 = vpack.c.bf16 %v913, %v907
        %v962 = vpack.c.bf16 %v914, %v908
        %v963 = vpack.c.bf16 %v915, %v909
        %v964 = vpack.c.bf16 %v916, %v910
        %v965 = vld [vmem:[#allocation6] sm:$0xff]
        %v966 = vld [vmem:[#allocation6 + $0x8] sm:$0xff]
        %v967 = vld [vmem:[#allocation6 + $0x10] sm:$0xff]
        %v968 = vld [vmem:[#allocation6 + $0x18] sm:$0xff]
        %v969 = vld [vmem:[#allocation6 + $0x20] sm:$0xff]
        %v970 = vld [vmem:[#allocation6 + $0x28] sm:$0xff]
        %v971 = vld [vmem:[#allocation6 + $0x30] sm:$0xff]
        %v972 = vld [vmem:[#allocation6 + $0x38] sm:$0xff]
        %v973 = vld [vmem:[#allocation6 + $0x40] sm:$0xff]
        %v974 = vld [vmem:[#allocation6 + $0x48] sm:$0xff]
        %v975 = vld [vmem:[#allocation6 + $0x50] sm:$0xff]
        %v976 = vld [vmem:[#allocation6 + $0x58] sm:$0xff]
        %v977 = vld [vmem:[#allocation6 + $0x60] sm:$0xff]
        %v978 = vld [vmem:[#allocation6 + $0x68] sm:$0xff]
        %v979 = vld [vmem:[#allocation6 + $0x70] sm:$0xff]
        %v980 = vld [vmem:[#allocation6 + $0x78] sm:$0xff]
        %v981 = vld [vmem:[#allocation6 + $0x80] sm:$0xff]
        %v982 = vld [vmem:[#allocation6 + $0x88] sm:$0xff]
        %v983 = vld [vmem:[#allocation6 + $0x90] sm:$0xff]
        %v984 = vld [vmem:[#allocation6 + $0x98] sm:$0xff]
        %v985 = vld [vmem:[#allocation6 + $0xa0] sm:$0xff]
        %v986 = vld [vmem:[#allocation6 + $0xa8] sm:$0xff]
        %v987 = vld [vmem:[#allocation6 + $0xb0] sm:$0xff]
        %v988 = vld [vmem:[#allocation6 + $0xb8] sm:$0xff]
        %v989 = vld [vmem:[#allocation6 + $0xc0] sm:$0xff]
        %v990 = vld [vmem:[#allocation6 + $0xc8] sm:$0xff]
        %v991 = vld [vmem:[#allocation6 + $0xd0] sm:$0xff]
        %v992 = vld [vmem:[#allocation6 + $0xd8] sm:$0xff]
        %v993 = vld [vmem:[#allocation6 + $0xe0] sm:$0xff]
        %v994 = vld [vmem:[#allocation6 + $0xe8] sm:$0xff]
        %v995 = vld [vmem:[#allocation6 + $0xf0] sm:$0xff]
        %v996 = vld [vmem:[#allocation6 + $0xf8] sm:$0xff]
        %v997 = vld [vmem:[#allocation6 + $0x100] sm:$0xff]
        %v998 = vld [vmem:[#allocation6 + $0x108] sm:$0xff]
        %v999 = vld [vmem:[#allocation6 + $0x110] sm:$0xff]
        %v1000 = vld [vmem:[#allocation6 + $0x118] sm:$0xff]
        %v1001 = vld [vmem:[#allocation6 + $0x120] sm:$0xff]
        %v1002 = vld [vmem:[#allocation6 + $0x128] sm:$0xff]
        %v1003 = vld [vmem:[#allocation6 + $0x130] sm:$0xff]
        %v1004 = vld [vmem:[#allocation6 + $0x138] sm:$0xff]
        %v1005 = vld [vmem:[#allocation6 + $0x140] sm:$0xff]
        %v1006 = vld [vmem:[#allocation6 + $0x148] sm:$0xff]
        %v1007 = vld [vmem:[#allocation6 + $0x150] sm:$0xff]
        %v1008 = vld [vmem:[#allocation6 + $0x158] sm:$0xff]
        %v1009 = vld [vmem:[#allocation6 + $0x160] sm:$0xff]
        %v1010 = vld [vmem:[#allocation6 + $0x168] sm:$0xff]
        %v1011 = vld [vmem:[#allocation6 + $0x170] sm:$0xff]
        %v1012 = vld [vmem:[#allocation6 + $0x178] sm:$0xff]
        %v1013 = vld [vmem:[#allocation6 + $0x180] sm:$0xff]
        %v1014 = vld [vmem:[#allocation6 + $0x188] sm:$0xff]
        %v1015 = vld [vmem:[#allocation6 + $0x190] sm:$0xff]
        %v1016 = vld [vmem:[#allocation6 + $0x198] sm:$0xff]
        %v1017 = vld [vmem:[#allocation6 + $0x1a0] sm:$0xff]
        %v1018 = vld [vmem:[#allocation6 + $0x1a8] sm:$0xff]
        %v1019 = vld [vmem:[#allocation6 + $0x1b0] sm:$0xff]
        %v1020 = vld [vmem:[#allocation6 + $0x1b8] sm:$0xff]
        %v1021 = vld [vmem:[#allocation6 + $0x1c0] sm:$0xff]
        %v1022 = vld [vmem:[#allocation6 + $0x1c8] sm:$0xff]
        %v1023 = vld [vmem:[#allocation6 + $0x1d0] sm:$0xff]
        %v1024 = vld [vmem:[#allocation6 + $0x1d8] sm:$0xff]
        %v1025 = vld [vmem:[#allocation6 + $0x1e0] sm:$0xff]
        %v1026 = vld [vmem:[#allocation6 + $0x1e8] sm:$0xff]
        %v1027 = vld [vmem:[#allocation6 + $0x1f0] sm:$0xff]
        %v1028 = vld [vmem:[#allocation6 + $0x1f8] sm:$0xff]
        %v1029 = vld [vmem:[#allocation6 + $0x200] sm:$0xff]
        %v1030 = vld [vmem:[#allocation6 + $0x208] sm:$0xff]
        %v1031 = vld [vmem:[#allocation6 + $0x210] sm:$0xff]
        %v1032 = vld [vmem:[#allocation6 + $0x218] sm:$0xff]
        %v1033 = vld [vmem:[#allocation6 + $0x220] sm:$0xff]
        %v1034 = vld [vmem:[#allocation6 + $0x228] sm:$0xff]
        %v1035 = vld [vmem:[#allocation6 + $0x230] sm:$0xff]
        %v1036 = vld [vmem:[#allocation6 + $0x238] sm:$0xff]
        %v1037 = vld [vmem:[#allocation6 + $0x240] sm:$0xff]
        %v1038 = vld [vmem:[#allocation6 + $0x248] sm:$0xff]
        %v1039 = vld [vmem:[#allocation6 + $0x250] sm:$0xff]
        %v1040 = vld [vmem:[#allocation6 + $0x258] sm:$0xff]
        %v1041 = vld [vmem:[#allocation6 + $0x260] sm:$0xff]
        %v1042 = vld [vmem:[#allocation6 + $0x268] sm:$0xff]
        %v1043 = vld [vmem:[#allocation6 + $0x270] sm:$0xff]
        %v1044 = vld [vmem:[#allocation6 + $0x278] sm:$0xff]
        %v1045 = vld [vmem:[#allocation6 + $0x280] sm:$0xff]
        %v1046 = vld [vmem:[#allocation6 + $0x288] sm:$0xff]
        %v1047 = vld [vmem:[#allocation6 + $0x290] sm:$0xff]
        %v1048 = vld [vmem:[#allocation6 + $0x298] sm:$0xff]
        %v1049 = vld [vmem:[#allocation6 + $0x2a0] sm:$0xff]
        %v1050 = vld [vmem:[#allocation6 + $0x2a8] sm:$0xff]
        %v1051 = vld [vmem:[#allocation6 + $0x2b0] sm:$0xff]
        %v1052 = vld [vmem:[#allocation6 + $0x2b8] sm:$0xff]
        %v1053 = vld [vmem:[#allocation6 + $0x2c0] sm:$0xff]
        %v1054 = vld [vmem:[#allocation6 + $0x2c8] sm:$0xff]
        %v1055 = vld [vmem:[#allocation6 + $0x2d0] sm:$0xff]
        %v1056 = vld [vmem:[#allocation6 + $0x2d8] sm:$0xff]
        %v1057 = vld [vmem:[#allocation6 + $0x2e0] sm:$0xff]
        %v1058 = vld [vmem:[#allocation6 + $0x2e8] sm:$0xff]
        %v1059 = vld [vmem:[#allocation6 + $0x2f0] sm:$0xff]
        %v1060 = vld [vmem:[#allocation6 + $0x2f8] sm:$0xff]
        %v1061 = vld [vmem:[#allocation6 + $0x300] sm:$0xff]
        %v1062 = vld [vmem:[#allocation6 + $0x308] sm:$0xff]
        %v1063 = vld [vmem:[#allocation6 + $0x310] sm:$0xff]
        %v1064 = vld [vmem:[#allocation6 + $0x318] sm:$0xff]
        %v1065 = vld [vmem:[#allocation6 + $0x320] sm:$0xff]
        %v1066 = vld [vmem:[#allocation6 + $0x328] sm:$0xff]
        %v1067 = vld [vmem:[#allocation6 + $0x330] sm:$0xff]
        %v1068 = vld [vmem:[#allocation6 + $0x338] sm:$0xff]
        %v1069 = vld [vmem:[#allocation6 + $0x340] sm:$0xff]
        %v1070 = vld [vmem:[#allocation6 + $0x348] sm:$0xff]
        %v1071 = vld [vmem:[#allocation6 + $0x350] sm:$0xff]
        %v1072 = vld [vmem:[#allocation6 + $0x358] sm:$0xff]
        %v1073 = vld [vmem:[#allocation6 + $0x360] sm:$0xff]
        %v1074 = vld [vmem:[#allocation6 + $0x368] sm:$0xff]
        %v1075 = vld [vmem:[#allocation6 + $0x370] sm:$0xff]
        %v1076 = vld [vmem:[#allocation6 + $0x378] sm:$0xff]
        %v1077 = vld [vmem:[#allocation6 + $0x380] sm:$0xff]
        %v1078 = vld [vmem:[#allocation6 + $0x388] sm:$0xff]
        %v1079 = vld [vmem:[#allocation6 + $0x390] sm:$0xff]
        %v1080 = vld [vmem:[#allocation6 + $0x398] sm:$0xff]
        %v1081 = vld [vmem:[#allocation6 + $0x3a0] sm:$0xff]
        %v1082 = vld [vmem:[#allocation6 + $0x3a8] sm:$0xff]
        %v1083 = vld [vmem:[#allocation6 + $0x3b0] sm:$0xff]
        %v1084 = vld [vmem:[#allocation6 + $0x3b8] sm:$0xff]
        %v1085 = vld [vmem:[#allocation6 + $0x3c0] sm:$0xff]
        %v1086 = vld [vmem:[#allocation6 + $0x3c8] sm:$0xff]
        %v1087 = vld [vmem:[#allocation6 + $0x3d0] sm:$0xff]
        %v1088 = vld [vmem:[#allocation6 + $0x3d8] sm:$0xff]
        %v1089 = vld [vmem:[#allocation6 + $0x3e0] sm:$0xff]
        %v1090 = vld [vmem:[#allocation6 + $0x3e8] sm:$0xff]
        %v1091 = vld [vmem:[#allocation6 + $0x3f0] sm:$0xff]
        %v1092 = vld [vmem:[#allocation6 + $0x3f8] sm:$0xff]
        %v1093 = vld [vmem:[#allocation6 + $0x400] sm:$0xff]
        %v1094 = vld [vmem:[#allocation6 + $0x408] sm:$0xff]
        %v1095 = vld [vmem:[#allocation6 + $0x410] sm:$0xff]
        %v1096 = vld [vmem:[#allocation6 + $0x418] sm:$0xff]
        %v1097 = vld [vmem:[#allocation6 + $0x420] sm:$0xff]
        %v1098 = vld [vmem:[#allocation6 + $0x428] sm:$0xff]
        %v1099 = vld [vmem:[#allocation6 + $0x430] sm:$0xff]
        %v1100 = vld [vmem:[#allocation6 + $0x438] sm:$0xff]
        %v1101 = vld [vmem:[#allocation6 + $0x440] sm:$0xff]
        %v1102 = vld [vmem:[#allocation6 + $0x448] sm:$0xff]
        %v1103 = vld [vmem:[#allocation6 + $0x450] sm:$0xff]
        %v1104 = vld [vmem:[#allocation6 + $0x458] sm:$0xff]
        %v1105 = vld [vmem:[#allocation6 + $0x460] sm:$0xff]
        %v1106 = vld [vmem:[#allocation6 + $0x468] sm:$0xff]
        %v1107 = vld [vmem:[#allocation6 + $0x470] sm:$0xff]
        %v1108 = vld [vmem:[#allocation6 + $0x478] sm:$0xff]
        %v1109 = vld [vmem:[#allocation6 + $0x480] sm:$0xff]
        %v1110 = vld [vmem:[#allocation6 + $0x488] sm:$0xff]
        %v1111 = vld [vmem:[#allocation6 + $0x490] sm:$0xff]
        %v1112 = vld [vmem:[#allocation6 + $0x498] sm:$0xff]
        %v1113 = vld [vmem:[#allocation6 + $0x4a0] sm:$0xff]
        %v1114 = vld [vmem:[#allocation6 + $0x4a8] sm:$0xff]
        %v1115 = vld [vmem:[#allocation6 + $0x4b0] sm:$0xff]
        %v1116 = vld [vmem:[#allocation6 + $0x4b8] sm:$0xff]
        %v1117 = vld [vmem:[#allocation6 + $0x4c0] sm:$0xff]
        %v1118 = vld [vmem:[#allocation6 + $0x4c8] sm:$0xff]
        %v1119 = vld [vmem:[#allocation6 + $0x4d0] sm:$0xff]
        %v1120 = vld [vmem:[#allocation6 + $0x4d8] sm:$0xff]
        %v1121 = vld [vmem:[#allocation6 + $0x4e0] sm:$0xff]
        %v1122 = vld [vmem:[#allocation6 + $0x4e8] sm:$0xff]
        %v1123 = vld [vmem:[#allocation6 + $0x4f0] sm:$0xff]
        %v1124 = vld [vmem:[#allocation6 + $0x4f8] sm:$0xff]
        %v1125 = vld [vmem:[#allocation6 + $0x500] sm:$0xff]
        %v1126 = vld [vmem:[#allocation6 + $0x508] sm:$0xff]
        %v1127 = vld [vmem:[#allocation6 + $0x510] sm:$0xff]
        %v1128 = vld [vmem:[#allocation6 + $0x518] sm:$0xff]
        %v1129 = vld [vmem:[#allocation6 + $0x520] sm:$0xff]
        %v1130 = vld [vmem:[#allocation6 + $0x528] sm:$0xff]
        %v1131 = vld [vmem:[#allocation6 + $0x530] sm:$0xff]
        %v1132 = vld [vmem:[#allocation6 + $0x538] sm:$0xff]
        %v1133 = vld [vmem:[#allocation6 + $0x540] sm:$0xff]
        %v1134 = vld [vmem:[#allocation6 + $0x548] sm:$0xff]
        %v1135 = vld [vmem:[#allocation6 + $0x550] sm:$0xff]
        %v1136 = vld [vmem:[#allocation6 + $0x558] sm:$0xff]
        %v1137 = vld [vmem:[#allocation6 + $0x560] sm:$0xff]
        %v1138 = vld [vmem:[#allocation6 + $0x568] sm:$0xff]
        %v1139 = vld [vmem:[#allocation6 + $0x570] sm:$0xff]
        %v1140 = vld [vmem:[#allocation6 + $0x578] sm:$0xff]
        %v1141 = vld [vmem:[#allocation6 + $0x580] sm:$0xff]
        %v1142 = vld [vmem:[#allocation6 + $0x588] sm:$0xff]
        %v1143 = vld [vmem:[#allocation6 + $0x590] sm:$0xff]
        %v1144 = vld [vmem:[#allocation6 + $0x598] sm:$0xff]
        %v1145 = vld [vmem:[#allocation6 + $0x5a0] sm:$0xff]
        %v1146 = vld [vmem:[#allocation6 + $0x5a8] sm:$0xff]
        %v1147 = vld [vmem:[#allocation6 + $0x5b0] sm:$0xff]
        %v1148 = vld [vmem:[#allocation6 + $0x5b8] sm:$0xff]
        %v1149 = vld [vmem:[#allocation6 + $0x5c0] sm:$0xff]
        %v1150 = vld [vmem:[#allocation6 + $0x5c8] sm:$0xff]
        %v1151 = vld [vmem:[#allocation6 + $0x5d0] sm:$0xff]
        %v1152 = vld [vmem:[#allocation6 + $0x5d8] sm:$0xff]
        %v1153 = vld [vmem:[#allocation6 + $0x5e0] sm:$0xff]
        %v1154 = vld [vmem:[#allocation6 + $0x5e8] sm:$0xff]
        %v1155 = vld [vmem:[#allocation6 + $0x5f0] sm:$0xff]
        %v1156 = vld [vmem:[#allocation6 + $0x5f8] sm:$0xff]
        %v1157 = vld [vmem:[#allocation6 + $0x600] sm:$0xff]
        %v1158 = vld [vmem:[#allocation6 + $0x608] sm:$0xff]
        %v1159 = vld [vmem:[#allocation6 + $0x610] sm:$0xff]
        %v1160 = vld [vmem:[#allocation6 + $0x618] sm:$0xff]
        %v1161 = vld [vmem:[#allocation6 + $0x620] sm:$0xff]
        %v1162 = vld [vmem:[#allocation6 + $0x628] sm:$0xff]
        %v1163 = vld [vmem:[#allocation6 + $0x630] sm:$0xff]
        %v1164 = vld [vmem:[#allocation6 + $0x638] sm:$0xff]
        %v1165 = vld [vmem:[#allocation6 + $0x640] sm:$0xff]
        %v1166 = vld [vmem:[#allocation6 + $0x648] sm:$0xff]
        %v1167 = vld [vmem:[#allocation6 + $0x650] sm:$0xff]
        %v1168 = vld [vmem:[#allocation6 + $0x658] sm:$0xff]
        %v1169 = vld [vmem:[#allocation6 + $0x660] sm:$0xff]
        %v1170 = vld [vmem:[#allocation6 + $0x668] sm:$0xff]
        %v1171 = vld [vmem:[#allocation6 + $0x670] sm:$0xff]
        %v1172 = vld [vmem:[#allocation6 + $0x678] sm:$0xff]
        %v1173 = vld [vmem:[#allocation6 + $0x680] sm:$0xff]
        %v1174 = vld [vmem:[#allocation6 + $0x688] sm:$0xff]
        %v1175 = vld [vmem:[#allocation6 + $0x690] sm:$0xff]
        %v1176 = vld [vmem:[#allocation6 + $0x698] sm:$0xff]
        %v1177 = vld [vmem:[#allocation6 + $0x6a0] sm:$0xff]
        %v1178 = vld [vmem:[#allocation6 + $0x6a8] sm:$0xff]
        %v1179 = vld [vmem:[#allocation6 + $0x6b0] sm:$0xff]
        %v1180 = vld [vmem:[#allocation6 + $0x6b8] sm:$0xff]
        %v1181 = vld [vmem:[#allocation6 + $0x6c0] sm:$0xff]
        %v1182 = vld [vmem:[#allocation6 + $0x6c8] sm:$0xff]
        %v1183 = vld [vmem:[#allocation6 + $0x6d0] sm:$0xff]
        %v1184 = vld [vmem:[#allocation6 + $0x6d8] sm:$0xff]
        %v1185 = vld [vmem:[#allocation6 + $0x6e0] sm:$0xff]
        %v1186 = vld [vmem:[#allocation6 + $0x6e8] sm:$0xff]
        %v1187 = vld [vmem:[#allocation6 + $0x6f0] sm:$0xff]
        %v1188 = vld [vmem:[#allocation6 + $0x6f8] sm:$0xff]
        %v1189 = vld [vmem:[#allocation6 + $0x700] sm:$0xff]
        %v1190 = vld [vmem:[#allocation6 + $0x708] sm:$0xff]
        %v1191 = vld [vmem:[#allocation6 + $0x710] sm:$0xff]
        %v1192 = vld [vmem:[#allocation6 + $0x718] sm:$0xff]
        %v1193 = vld [vmem:[#allocation6 + $0x720] sm:$0xff]
        %v1194 = vld [vmem:[#allocation6 + $0x728] sm:$0xff]
        %v1195 = vld [vmem:[#allocation6 + $0x730] sm:$0xff]
        %v1196 = vld [vmem:[#allocation6 + $0x738] sm:$0xff]
        %v1197 = vld [vmem:[#allocation6 + $0x740] sm:$0xff]
        %v1198 = vld [vmem:[#allocation6 + $0x748] sm:$0xff]
        %v1199 = vld [vmem:[#allocation6 + $0x750] sm:$0xff]
        %v1200 = vld [vmem:[#allocation6 + $0x758] sm:$0xff]
        %v1201 = vld [vmem:[#allocation6 + $0x760] sm:$0xff]
        %v1202 = vld [vmem:[#allocation6 + $0x768] sm:$0xff]
        %v1203 = vld [vmem:[#allocation6 + $0x770] sm:$0xff]
        %v1204 = vld [vmem:[#allocation6 + $0x778] sm:$0xff]
        %v1205 = vld [vmem:[#allocation6 + $0x780] sm:$0xff]
        %v1206 = vld [vmem:[#allocation6 + $0x788] sm:$0xff]
        %v1207 = vld [vmem:[#allocation6 + $0x790] sm:$0xff]
        %v1208 = vld [vmem:[#allocation6 + $0x798] sm:$0xff]
        %v1209 = vld [vmem:[#allocation6 + $0x7a0] sm:$0xff]
        %v1210 = vld [vmem:[#allocation6 + $0x7a8] sm:$0xff]
        %v1211 = vld [vmem:[#allocation6 + $0x7b0] sm:$0xff]
        %v1212 = vld [vmem:[#allocation6 + $0x7b8] sm:$0xff]
        %v1213 = vld [vmem:[#allocation6 + $0x7c0] sm:$0xff]
        %v1214 = vld [vmem:[#allocation6 + $0x7c8] sm:$0xff]
        %v1215 = vld [vmem:[#allocation6 + $0x7d0] sm:$0xff]
        %v1216 = vld [vmem:[#allocation6 + $0x7d8] sm:$0xff]
        %v1217 = vld [vmem:[#allocation6 + $0x7e0] sm:$0xff]
        %v1218 = vld [vmem:[#allocation6 + $0x7e8] sm:$0xff]
        %v1219 = vld [vmem:[#allocation6 + $0x7f0] sm:$0xff]
        %v1220 = vld [vmem:[#allocation6 + $0x7f8] sm:$0xff]
        %v1221 = vld [vmem:[#allocation6 + $0x800] sm:$0xff]
        %v1222 = vld [vmem:[#allocation6 + $0x808] sm:$0xff]
        %v1223 = vld [vmem:[#allocation6 + $0x810] sm:$0xff]
        %v1224 = vld [vmem:[#allocation6 + $0x818] sm:$0xff]
        %v1225 = vld [vmem:[#allocation6 + $0x820] sm:$0xff]
        %v1226 = vld [vmem:[#allocation6 + $0x828] sm:$0xff]
        %v1227 = vld [vmem:[#allocation6 + $0x830] sm:$0xff]
        %v1228 = vld [vmem:[#allocation6 + $0x838] sm:$0xff]
        %v1229 = vld [vmem:[#allocation6 + $0x840] sm:$0xff]
        %v1230 = vld [vmem:[#allocation6 + $0x848] sm:$0xff]
        %v1231 = vld [vmem:[#allocation6 + $0x850] sm:$0xff]
        %v1232 = vld [vmem:[#allocation6 + $0x858] sm:$0xff]
        %v1233 = vld [vmem:[#allocation6 + $0x860] sm:$0xff]
        %v1234 = vld [vmem:[#allocation6 + $0x868] sm:$0xff]
        %v1235 = vld [vmem:[#allocation6 + $0x870] sm:$0xff]
        %v1236 = vld [vmem:[#allocation6 + $0x878] sm:$0xff]
        %v1237 = vld [vmem:[#allocation6 + $0x880] sm:$0xff]
        %v1238 = vld [vmem:[#allocation6 + $0x888] sm:$0xff]
        %v1239 = vld [vmem:[#allocation6 + $0x890] sm:$0xff]
        %v1240 = vld [vmem:[#allocation6 + $0x898] sm:$0xff]
        %v1241 = vld [vmem:[#allocation6 + $0x8a0] sm:$0xff]
        %v1242 = vld [vmem:[#allocation6 + $0x8a8] sm:$0xff]
        %v1243 = vld [vmem:[#allocation6 + $0x8b0] sm:$0xff]
        %v1244 = vld [vmem:[#allocation6 + $0x8b8] sm:$0xff]
        %v1245 = vld [vmem:[#allocation6 + $0x8c0] sm:$0xff]
        %v1246 = vld [vmem:[#allocation6 + $0x8c8] sm:$0xff]
        %v1247 = vld [vmem:[#allocation6 + $0x8d0] sm:$0xff]
        %v1248 = vld [vmem:[#allocation6 + $0x8d8] sm:$0xff]
        %v1249 = vld [vmem:[#allocation6 + $0x8e0] sm:$0xff]
        %v1250 = vld [vmem:[#allocation6 + $0x8e8] sm:$0xff]
        %v1251 = vld [vmem:[#allocation6 + $0x8f0] sm:$0xff]
        %v1252 = vld [vmem:[#allocation6 + $0x8f8] sm:$0xff]
        %v1253 = vld [vmem:[#allocation7] sm:$0x3f]
        %v1255 = vlaneseq
        %v1256 = vshrl.u32 %v1255, 7
        %v1257 = vsub.s32 0, %v1256
        %v1258 = vrot.slane %v1253, %v1257
        %v1259 = vlaneseq
        %v1260 = vshrl.u32 %v1259, 7
        %v1261 = vsub.s32 1, %v1260
        %v1262 = vrot.slane %v1253, %v1261
        %v1263 = vlaneseq
        %v1264 = vshrl.u32 %v1263, 7
        %v1265 = vsub.s32 2, %v1264
        %v1266 = vrot.slane %v1253, %v1265
        %v1267 = vlaneseq
        %v1268 = vshrl.u32 %v1267, 7
        %v1269 = vsub.s32 3, %v1268
        %v1270 = vrot.slane %v1253, %v1269
        %v1271 = vlaneseq
        %v1272 = vshrl.u32 %v1271, 7
        %v1273 = vsub.s32 4, %v1272
        %v1274 = vrot.slane %v1253, %v1273
        %v1275 = vlaneseq
        %v1276 = vshrl.u32 %v1275, 7
        %v1277 = vsub.s32 5, %v1276
        %v1278 = vrot.slane %v1253, %v1277
        %v1573 = vunpack.c.l.b16 %v965
        %v1574 = vunpack.c.h.b16 %v965
        %v1575 = vunpack.c.l.b16 %v966
        %v1576 = vunpack.c.h.b16 %v966
        %v1577 = vunpack.c.l.b16 %v967
        %v1578 = vunpack.c.h.b16 %v967
        %v1579 = vunpack.c.l.b16 %v968
        %v1580 = vunpack.c.h.b16 %v968
        %v1581 = vunpack.c.l.b16 %v969
        %v1582 = vunpack.c.h.b16 %v969
        %v1583 = vunpack.c.l.b16 %v970
        %v1584 = vunpack.c.h.b16 %v970
        %v1585 = vunpack.c.l.b16 %v971
        %v1586 = vunpack.c.h.b16 %v971
        %v1587 = vunpack.c.l.b16 %v972
        %v1588 = vunpack.c.h.b16 %v972
        %v1589 = vunpack.c.l.b16 %v973
        %v1590 = vunpack.c.h.b16 %v973
        %v1591 = vunpack.c.l.b16 %v974
        %v1592 = vunpack.c.h.b16 %v974
        %v1593 = vunpack.c.l.b16 %v975
        %v1594 = vunpack.c.h.b16 %v975
        %v1595 = vunpack.c.l.b16 %v976
        %v1596 = vunpack.c.h.b16 %v976
        %v1597 = vunpack.c.l.b16 %v977
        %v1598 = vunpack.c.h.b16 %v977
        %v1599 = vunpack.c.l.b16 %v978
        %v1600 = vunpack.c.h.b16 %v978
        %v1601 = vunpack.c.l.b16 %v979
        %v1602 = vunpack.c.h.b16 %v979
        %v1603 = vunpack.c.l.b16 %v980
        %v1604 = vunpack.c.h.b16 %v980
        %v1605 = vunpack.c.l.b16 %v981
        %v1606 = vunpack.c.h.b16 %v981
        %v1607 = vunpack.c.l.b16 %v982
        %v1608 = vunpack.c.h.b16 %v982
        %v1609 = vunpack.c.l.b16 %v983
        %v1610 = vunpack.c.h.b16 %v983
        %v1611 = vunpack.c.l.b16 %v984
        %v1612 = vunpack.c.h.b16 %v984
        %v1613 = vunpack.c.l.b16 %v985
        %v1614 = vunpack.c.h.b16 %v985
        %v1615 = vunpack.c.l.b16 %v986
        %v1616 = vunpack.c.h.b16 %v986
        %v1617 = vunpack.c.l.b16 %v987
        %v1618 = vunpack.c.h.b16 %v987
        %v1619 = vunpack.c.l.b16 %v988
        %v1620 = vunpack.c.h.b16 %v988
        %v1621 = vunpack.c.l.b16 %v989
        %v1622 = vunpack.c.h.b16 %v989
        %v1623 = vunpack.c.l.b16 %v990
        %v1624 = vunpack.c.h.b16 %v990
        %v1625 = vunpack.c.l.b16 %v991
        %v1626 = vunpack.c.h.b16 %v991
        %v1627 = vunpack.c.l.b16 %v992
        %v1628 = vunpack.c.h.b16 %v992
        %v1629 = vunpack.c.l.b16 %v993
        %v1630 = vunpack.c.h.b16 %v993
        %v1631 = vunpack.c.l.b16 %v994
        %v1632 = vunpack.c.h.b16 %v994
        %v1633 = vunpack.c.l.b16 %v995
        %v1634 = vunpack.c.h.b16 %v995
        %v1635 = vunpack.c.l.b16 %v996
        %v1636 = vunpack.c.h.b16 %v996
        %v1637 = vunpack.c.l.b16 %v997
        %v1638 = vunpack.c.h.b16 %v997
        %v1639 = vunpack.c.l.b16 %v998
        %v1640 = vunpack.c.h.b16 %v998
        %v1641 = vunpack.c.l.b16 %v999
        %v1642 = vunpack.c.h.b16 %v999
        %v1643 = vunpack.c.l.b16 %v1000
        %v1644 = vunpack.c.h.b16 %v1000
        %v1645 = vunpack.c.l.b16 %v1001
        %v1646 = vunpack.c.h.b16 %v1001
        %v1647 = vunpack.c.l.b16 %v1002
        %v1648 = vunpack.c.h.b16 %v1002
        %v1649 = vunpack.c.l.b16 %v1003
        %v1650 = vunpack.c.h.b16 %v1003
        %v1651 = vunpack.c.l.b16 %v1004
        %v1652 = vunpack.c.h.b16 %v1004
        %v1653 = vunpack.c.l.b16 %v1005
        %v1654 = vunpack.c.h.b16 %v1005
        %v1655 = vunpack.c.l.b16 %v1006
        %v1656 = vunpack.c.h.b16 %v1006
        %v1657 = vunpack.c.l.b16 %v1007
        %v1658 = vunpack.c.h.b16 %v1007
        %v1659 = vunpack.c.l.b16 %v1008
        %v1660 = vunpack.c.h.b16 %v1008
        %v1661 = vunpack.c.l.b16 %v1009
        %v1662 = vunpack.c.h.b16 %v1009
        %v1663 = vunpack.c.l.b16 %v1010
        %v1664 = vunpack.c.h.b16 %v1010
        %v1665 = vunpack.c.l.b16 %v1011
        %v1666 = vunpack.c.h.b16 %v1011
        %v1667 = vunpack.c.l.b16 %v1012
        %v1668 = vunpack.c.h.b16 %v1012
        %v1669 = vunpack.c.l.b16 %v1013
        %v1670 = vunpack.c.h.b16 %v1013
        %v1671 = vunpack.c.l.b16 %v1014
        %v1672 = vunpack.c.h.b16 %v1014
        %v1673 = vunpack.c.l.b16 %v1015
        %v1674 = vunpack.c.h.b16 %v1015
        %v1675 = vunpack.c.l.b16 %v1016
        %v1676 = vunpack.c.h.b16 %v1016
        %v1677 = vunpack.c.l.b16 %v1017
        %v1678 = vunpack.c.h.b16 %v1017
        %v1679 = vunpack.c.l.b16 %v1018
        %v1680 = vunpack.c.h.b16 %v1018
        %v1681 = vunpack.c.l.b16 %v1019
        %v1682 = vunpack.c.h.b16 %v1019
        %v1683 = vunpack.c.l.b16 %v1020
        %v1684 = vunpack.c.h.b16 %v1020
        %v1685 = vunpack.c.l.b16 %v1021
        %v1686 = vunpack.c.h.b16 %v1021
        %v1687 = vunpack.c.l.b16 %v1022
        %v1688 = vunpack.c.h.b16 %v1022
        %v1689 = vunpack.c.l.b16 %v1023
        %v1690 = vunpack.c.h.b16 %v1023
        %v1691 = vunpack.c.l.b16 %v1024
        %v1692 = vunpack.c.h.b16 %v1024
        %v1693 = vunpack.c.l.b16 %v1025
        %v1694 = vunpack.c.h.b16 %v1025
        %v1695 = vunpack.c.l.b16 %v1026
        %v1696 = vunpack.c.h.b16 %v1026
        %v1697 = vunpack.c.l.b16 %v1027
        %v1698 = vunpack.c.h.b16 %v1027
        %v1699 = vunpack.c.l.b16 %v1028
        %v1700 = vunpack.c.h.b16 %v1028
        %v1701 = vunpack.c.l.b16 %v1029
        %v1702 = vunpack.c.h.b16 %v1029
        %v1703 = vunpack.c.l.b16 %v1030
        %v1704 = vunpack.c.h.b16 %v1030
        %v1705 = vunpack.c.l.b16 %v1031
        %v1706 = vunpack.c.h.b16 %v1031
        %v1707 = vunpack.c.l.b16 %v1032
        %v1708 = vunpack.c.h.b16 %v1032
        %v1709 = vunpack.c.l.b16 %v1033
        %v1710 = vunpack.c.h.b16 %v1033
        %v1711 = vunpack.c.l.b16 %v1034
        %v1712 = vunpack.c.h.b16 %v1034
        %v1713 = vunpack.c.l.b16 %v1035
        %v1714 = vunpack.c.h.b16 %v1035
        %v1715 = vunpack.c.l.b16 %v1036
        %v1716 = vunpack.c.h.b16 %v1036
        %v1717 = vunpack.c.l.b16 %v1037
        %v1718 = vunpack.c.h.b16 %v1037
        %v1719 = vunpack.c.l.b16 %v1038
        %v1720 = vunpack.c.h.b16 %v1038
        %v1721 = vunpack.c.l.b16 %v1039
        %v1722 = vunpack.c.h.b16 %v1039
        %v1723 = vunpack.c.l.b16 %v1040
        %v1724 = vunpack.c.h.b16 %v1040
        %v1725 = vunpack.c.l.b16 %v1041
        %v1726 = vunpack.c.h.b16 %v1041
        %v1727 = vunpack.c.l.b16 %v1042
        %v1728 = vunpack.c.h.b16 %v1042
        %v1729 = vunpack.c.l.b16 %v1043
        %v1730 = vunpack.c.h.b16 %v1043
        %v1731 = vunpack.c.l.b16 %v1044
        %v1732 = vunpack.c.h.b16 %v1044
        %v1733 = vunpack.c.l.b16 %v1045
        %v1734 = vunpack.c.h.b16 %v1045
        %v1735 = vunpack.c.l.b16 %v1046
        %v1736 = vunpack.c.h.b16 %v1046
        %v1737 = vunpack.c.l.b16 %v1047
        %v1738 = vunpack.c.h.b16 %v1047
        %v1739 = vunpack.c.l.b16 %v1048
        %v1740 = vunpack.c.h.b16 %v1048
        %v1741 = vunpack.c.l.b16 %v1049
        %v1742 = vunpack.c.h.b16 %v1049
        %v1743 = vunpack.c.l.b16 %v1050
        %v1744 = vunpack.c.h.b16 %v1050
        %v1745 = vunpack.c.l.b16 %v1051
        %v1746 = vunpack.c.h.b16 %v1051
        %v1747 = vunpack.c.l.b16 %v1052
        %v1748 = vunpack.c.h.b16 %v1052
        %v1749 = vunpack.c.l.b16 %v1053
        %v1750 = vunpack.c.h.b16 %v1053
        %v1751 = vunpack.c.l.b16 %v1054
        %v1752 = vunpack.c.h.b16 %v1054
        %v1753 = vunpack.c.l.b16 %v1055
        %v1754 = vunpack.c.h.b16 %v1055
        %v1755 = vunpack.c.l.b16 %v1056
        %v1756 = vunpack.c.h.b16 %v1056
        %v1757 = vunpack.c.l.b16 %v1057
        %v1758 = vunpack.c.h.b16 %v1057
        %v1759 = vunpack.c.l.b16 %v1058
        %v1760 = vunpack.c.h.b16 %v1058
        %v1761 = vunpack.c.l.b16 %v1059
        %v1762 = vunpack.c.h.b16 %v1059
        %v1763 = vunpack.c.l.b16 %v1060
        %v1764 = vunpack.c.h.b16 %v1060
        %v1765 = vunpack.c.l.b16 %v1061
        %v1766 = vunpack.c.h.b16 %v1061
        %v1767 = vunpack.c.l.b16 %v1062
        %v1768 = vunpack.c.h.b16 %v1062
        %v1769 = vunpack.c.l.b16 %v1063
        %v1770 = vunpack.c.h.b16 %v1063
        %v1771 = vunpack.c.l.b16 %v1064
        %v1772 = vunpack.c.h.b16 %v1064
        %v1773 = vunpack.c.l.b16 %v1065
        %v1774 = vunpack.c.h.b16 %v1065
        %v1775 = vunpack.c.l.b16 %v1066
        %v1776 = vunpack.c.h.b16 %v1066
        %v1777 = vunpack.c.l.b16 %v1067
        %v1778 = vunpack.c.h.b16 %v1067
        %v1779 = vunpack.c.l.b16 %v1068
        %v1780 = vunpack.c.h.b16 %v1068
        %v1781 = vunpack.c.l.b16 %v1069
        %v1782 = vunpack.c.h.b16 %v1069
        %v1783 = vunpack.c.l.b16 %v1070
        %v1784 = vunpack.c.h.b16 %v1070
        %v1785 = vunpack.c.l.b16 %v1071
        %v1786 = vunpack.c.h.b16 %v1071
        %v1787 = vunpack.c.l.b16 %v1072
        %v1788 = vunpack.c.h.b16 %v1072
        %v1789 = vunpack.c.l.b16 %v1073
        %v1790 = vunpack.c.h.b16 %v1073
        %v1791 = vunpack.c.l.b16 %v1074
        %v1792 = vunpack.c.h.b16 %v1074
        %v1793 = vunpack.c.l.b16 %v1075
        %v1794 = vunpack.c.h.b16 %v1075
        %v1795 = vunpack.c.l.b16 %v1076
        %v1796 = vunpack.c.h.b16 %v1076
        %v1797 = vunpack.c.l.b16 %v1077
        %v1798 = vunpack.c.h.b16 %v1077
        %v1799 = vunpack.c.l.b16 %v1078
        %v1800 = vunpack.c.h.b16 %v1078
        %v1801 = vunpack.c.l.b16 %v1079
        %v1802 = vunpack.c.h.b16 %v1079
        %v1803 = vunpack.c.l.b16 %v1080
        %v1804 = vunpack.c.h.b16 %v1080
        %v1805 = vunpack.c.l.b16 %v1081
        %v1806 = vunpack.c.h.b16 %v1081
        %v1807 = vunpack.c.l.b16 %v1082
        %v1808 = vunpack.c.h.b16 %v1082
        %v1809 = vunpack.c.l.b16 %v1083
        %v1810 = vunpack.c.h.b16 %v1083
        %v1811 = vunpack.c.l.b16 %v1084
        %v1812 = vunpack.c.h.b16 %v1084
        %v1813 = vunpack.c.l.b16 %v1085
        %v1814 = vunpack.c.h.b16 %v1085
        %v1815 = vunpack.c.l.b16 %v1086
        %v1816 = vunpack.c.h.b16 %v1086
        %v1817 = vunpack.c.l.b16 %v1087
        %v1818 = vunpack.c.h.b16 %v1087
        %v1819 = vunpack.c.l.b16 %v1088
        %v1820 = vunpack.c.h.b16 %v1088
        %v1821 = vunpack.c.l.b16 %v1089
        %v1822 = vunpack.c.h.b16 %v1089
        %v1823 = vunpack.c.l.b16 %v1090
        %v1824 = vunpack.c.h.b16 %v1090
        %v1825 = vunpack.c.l.b16 %v1091
        %v1826 = vunpack.c.h.b16 %v1091
        %v1827 = vunpack.c.l.b16 %v1092
        %v1828 = vunpack.c.h.b16 %v1092
        %v1829 = vunpack.c.l.b16 %v1093
        %v1830 = vunpack.c.h.b16 %v1093
        %v1831 = vunpack.c.l.b16 %v1094
        %v1832 = vunpack.c.h.b16 %v1094
        %v1833 = vunpack.c.l.b16 %v1095
        %v1834 = vunpack.c.h.b16 %v1095
        %v1835 = vunpack.c.l.b16 %v1096
        %v1836 = vunpack.c.h.b16 %v1096
        %v1837 = vunpack.c.l.b16 %v1097
        %v1838 = vunpack.c.h.b16 %v1097
        %v1839 = vunpack.c.l.b16 %v1098
        %v1840 = vunpack.c.h.b16 %v1098
        %v1841 = vunpack.c.l.b16 %v1099
        %v1842 = vunpack.c.h.b16 %v1099
        %v1843 = vunpack.c.l.b16 %v1100
        %v1844 = vunpack.c.h.b16 %v1100
        %v1845 = vunpack.c.l.b16 %v1101
        %v1846 = vunpack.c.h.b16 %v1101
        %v1847 = vunpack.c.l.b16 %v1102
        %v1848 = vunpack.c.h.b16 %v1102
        %v1849 = vunpack.c.l.b16 %v1103
        %v1850 = vunpack.c.h.b16 %v1103
        %v1851 = vunpack.c.l.b16 %v1104
        %v1852 = vunpack.c.h.b16 %v1104
        %v1853 = vunpack.c.l.b16 %v1105
        %v1854 = vunpack.c.h.b16 %v1105
        %v1855 = vunpack.c.l.b16 %v1106
        %v1856 = vunpack.c.h.b16 %v1106
        %v1857 = vunpack.c.l.b16 %v1107
        %v1858 = vunpack.c.h.b16 %v1107
        %v1859 = vunpack.c.l.b16 %v1108
        %v1860 = vunpack.c.h.b16 %v1108
        %v1861 = vunpack.c.l.b16 %v1109
        %v1862 = vunpack.c.h.b16 %v1109
        %v1863 = vunpack.c.l.b16 %v1110
        %v1864 = vunpack.c.h.b16 %v1110
        %v1865 = vunpack.c.l.b16 %v1111
        %v1866 = vunpack.c.h.b16 %v1111
        %v1867 = vunpack.c.l.b16 %v1112
        %v1868 = vunpack.c.h.b16 %v1112
        %v1869 = vunpack.c.l.b16 %v1113
        %v1870 = vunpack.c.h.b16 %v1113
        %v1871 = vunpack.c.l.b16 %v1114
        %v1872 = vunpack.c.h.b16 %v1114
        %v1873 = vunpack.c.l.b16 %v1115
        %v1874 = vunpack.c.h.b16 %v1115
        %v1875 = vunpack.c.l.b16 %v1116
        %v1876 = vunpack.c.h.b16 %v1116
        %v1877 = vunpack.c.l.b16 %v1117
        %v1878 = vunpack.c.h.b16 %v1117
        %v1879 = vunpack.c.l.b16 %v1118
        %v1880 = vunpack.c.h.b16 %v1118
        %v1881 = vunpack.c.l.b16 %v1119
        %v1882 = vunpack.c.h.b16 %v1119
        %v1883 = vunpack.c.l.b16 %v1120
        %v1884 = vunpack.c.h.b16 %v1120
        %v1885 = vunpack.c.l.b16 %v1121
        %v1886 = vunpack.c.h.b16 %v1121
        %v1887 = vunpack.c.l.b16 %v1122
        %v1888 = vunpack.c.h.b16 %v1122
        %v1889 = vunpack.c.l.b16 %v1123
        %v1890 = vunpack.c.h.b16 %v1123
        %v1891 = vunpack.c.l.b16 %v1124
        %v1892 = vunpack.c.h.b16 %v1124
        %v1893 = vunpack.c.l.b16 %v1125
        %v1894 = vunpack.c.h.b16 %v1125
        %v1895 = vunpack.c.l.b16 %v1126
        %v1896 = vunpack.c.h.b16 %v1126
        %v1897 = vunpack.c.l.b16 %v1127
        %v1898 = vunpack.c.h.b16 %v1127
        %v1899 = vunpack.c.l.b16 %v1128
        %v1900 = vunpack.c.h.b16 %v1128
        %v1901 = vunpack.c.l.b16 %v1129
        %v1902 = vunpack.c.h.b16 %v1129
        %v1903 = vunpack.c.l.b16 %v1130
        %v1904 = vunpack.c.h.b16 %v1130
        %v1905 = vunpack.c.l.b16 %v1131
        %v1906 = vunpack.c.h.b16 %v1131
        %v1907 = vunpack.c.l.b16 %v1132
        %v1908 = vunpack.c.h.b16 %v1132
        %v1909 = vunpack.c.l.b16 %v1133
        %v1910 = vunpack.c.h.b16 %v1133
        %v1911 = vunpack.c.l.b16 %v1134
        %v1912 = vunpack.c.h.b16 %v1134
        %v1913 = vunpack.c.l.b16 %v1135
        %v1914 = vunpack.c.h.b16 %v1135
        %v1915 = vunpack.c.l.b16 %v1136
        %v1916 = vunpack.c.h.b16 %v1136
        %v1917 = vunpack.c.l.b16 %v1137
        %v1918 = vunpack.c.h.b16 %v1137
        %v1919 = vunpack.c.l.b16 %v1138
        %v1920 = vunpack.c.h.b16 %v1138
        %v1921 = vunpack.c.l.b16 %v1139
        %v1922 = vunpack.c.h.b16 %v1139
        %v1923 = vunpack.c.l.b16 %v1140
        %v1924 = vunpack.c.h.b16 %v1140
        %v1925 = vunpack.c.l.b16 %v1141
        %v1926 = vunpack.c.h.b16 %v1141
        %v1927 = vunpack.c.l.b16 %v1142
        %v1928 = vunpack.c.h.b16 %v1142
        %v1929 = vunpack.c.l.b16 %v1143
        %v1930 = vunpack.c.h.b16 %v1143
        %v1931 = vunpack.c.l.b16 %v1144
        %v1932 = vunpack.c.h.b16 %v1144
        %v1933 = vunpack.c.l.b16 %v1145
        %v1934 = vunpack.c.h.b16 %v1145
        %v1935 = vunpack.c.l.b16 %v1146
        %v1936 = vunpack.c.h.b16 %v1146
        %v1937 = vunpack.c.l.b16 %v1147
        %v1938 = vunpack.c.h.b16 %v1147
        %v1939 = vunpack.c.l.b16 %v1148
        %v1940 = vunpack.c.h.b16 %v1148
        %v1941 = vunpack.c.l.b16 %v1149
        %v1942 = vunpack.c.h.b16 %v1149
        %v1943 = vunpack.c.l.b16 %v1150
        %v1944 = vunpack.c.h.b16 %v1150
        %v1945 = vunpack.c.l.b16 %v1151
        %v1946 = vunpack.c.h.b16 %v1151
        %v1947 = vunpack.c.l.b16 %v1152
        %v1948 = vunpack.c.h.b16 %v1152
        %v1949 = vunpack.c.l.b16 %v1153
        %v1950 = vunpack.c.h.b16 %v1153
        %v1951 = vunpack.c.l.b16 %v1154
        %v1952 = vunpack.c.h.b16 %v1154
        %v1953 = vunpack.c.l.b16 %v1155
        %v1954 = vunpack.c.h.b16 %v1155
        %v1955 = vunpack.c.l.b16 %v1156
        %v1956 = vunpack.c.h.b16 %v1156
        %v1957 = vunpack.c.l.b16 %v1157
        %v1958 = vunpack.c.h.b16 %v1157
        %v1959 = vunpack.c.l.b16 %v1158
        %v1960 = vunpack.c.h.b16 %v1158
        %v1961 = vunpack.c.l.b16 %v1159
        %v1962 = vunpack.c.h.b16 %v1159
        %v1963 = vunpack.c.l.b16 %v1160
        %v1964 = vunpack.c.h.b16 %v1160
        %v1965 = vunpack.c.l.b16 %v1161
        %v1966 = vunpack.c.h.b16 %v1161
        %v1967 = vunpack.c.l.b16 %v1162
        %v1968 = vunpack.c.h.b16 %v1162
        %v1969 = vunpack.c.l.b16 %v1163
        %v1970 = vunpack.c.h.b16 %v1163
        %v1971 = vunpack.c.l.b16 %v1164
        %v1972 = vunpack.c.h.b16 %v1164
        %v1973 = vunpack.c.l.b16 %v1165
        %v1974 = vunpack.c.h.b16 %v1165
        %v1975 = vunpack.c.l.b16 %v1166
        %v1976 = vunpack.c.h.b16 %v1166
        %v1977 = vunpack.c.l.b16 %v1167
        %v1978 = vunpack.c.h.b16 %v1167
        %v1979 = vunpack.c.l.b16 %v1168
        %v1980 = vunpack.c.h.b16 %v1168
        %v1981 = vunpack.c.l.b16 %v1169
        %v1982 = vunpack.c.h.b16 %v1169
        %v1983 = vunpack.c.l.b16 %v1170
        %v1984 = vunpack.c.h.b16 %v1170
        %v1985 = vunpack.c.l.b16 %v1171
        %v1986 = vunpack.c.h.b16 %v1171
        %v1987 = vunpack.c.l.b16 %v1172
        %v1988 = vunpack.c.h.b16 %v1172
        %v1989 = vunpack.c.l.b16 %v1173
        %v1990 = vunpack.c.h.b16 %v1173
        %v1991 = vunpack.c.l.b16 %v1174
        %v1992 = vunpack.c.h.b16 %v1174
        %v1993 = vunpack.c.l.b16 %v1175
        %v1994 = vunpack.c.h.b16 %v1175
        %v1995 = vunpack.c.l.b16 %v1176
        %v1996 = vunpack.c.h.b16 %v1176
        %v1997 = vunpack.c.l.b16 %v1177
        %v1998 = vunpack.c.h.b16 %v1177
        %v1999 = vunpack.c.l.b16 %v1178
        %v2000 = vunpack.c.h.b16 %v1178
        %v2001 = vunpack.c.l.b16 %v1179
        %v2002 = vunpack.c.h.b16 %v1179
        %v2003 = vunpack.c.l.b16 %v1180
        %v2004 = vunpack.c.h.b16 %v1180
        %v2005 = vunpack.c.l.b16 %v1181
        %v2006 = vunpack.c.h.b16 %v1181
        %v2007 = vunpack.c.l.b16 %v1182
        %v2008 = vunpack.c.h.b16 %v1182
        %v2009 = vunpack.c.l.b16 %v1183
        %v2010 = vunpack.c.h.b16 %v1183
        %v2011 = vunpack.c.l.b16 %v1184
        %v2012 = vunpack.c.h.b16 %v1184
        %v2013 = vunpack.c.l.b16 %v1185
        %v2014 = vunpack.c.h.b16 %v1185
        %v2015 = vunpack.c.l.b16 %v1186
        %v2016 = vunpack.c.h.b16 %v1186
        %v2017 = vunpack.c.l.b16 %v1187
        %v2018 = vunpack.c.h.b16 %v1187
        %v2019 = vunpack.c.l.b16 %v1188
        %v2020 = vunpack.c.h.b16 %v1188
        %v2021 = vunpack.c.l.b16 %v1189
        %v2022 = vunpack.c.h.b16 %v1189
        %v2023 = vunpack.c.l.b16 %v1190
        %v2024 = vunpack.c.h.b16 %v1190
        %v2025 = vunpack.c.l.b16 %v1191
        %v2026 = vunpack.c.h.b16 %v1191
        %v2027 = vunpack.c.l.b16 %v1192
        %v2028 = vunpack.c.h.b16 %v1192
        %v2029 = vunpack.c.l.b16 %v1193
        %v2030 = vunpack.c.h.b16 %v1193
        %v2031 = vunpack.c.l.b16 %v1194
        %v2032 = vunpack.c.h.b16 %v1194
        %v2033 = vunpack.c.l.b16 %v1195
        %v2034 = vunpack.c.h.b16 %v1195
        %v2035 = vunpack.c.l.b16 %v1196
        %v2036 = vunpack.c.h.b16 %v1196
        %v2037 = vunpack.c.l.b16 %v1197
        %v2038 = vunpack.c.h.b16 %v1197
        %v2039 = vunpack.c.l.b16 %v1198
        %v2040 = vunpack.c.h.b16 %v1198
        %v2041 = vunpack.c.l.b16 %v1199
        %v2042 = vunpack.c.h.b16 %v1199
        %v2043 = vunpack.c.l.b16 %v1200
        %v2044 = vunpack.c.h.b16 %v1200
        %v2045 = vunpack.c.l.b16 %v1201
        %v2046 = vunpack.c.h.b16 %v1201
        %v2047 = vunpack.c.l.b16 %v1202
        %v2048 = vunpack.c.h.b16 %v1202
        %v2049 = vunpack.c.l.b16 %v1203
        %v2050 = vunpack.c.h.b16 %v1203
        %v2051 = vunpack.c.l.b16 %v1204
        %v2052 = vunpack.c.h.b16 %v1204
        %v2053 = vunpack.c.l.b16 %v1205
        %v2054 = vunpack.c.h.b16 %v1205
        %v2055 = vunpack.c.l.b16 %v1206
        %v2056 = vunpack.c.h.b16 %v1206
        %v2057 = vunpack.c.l.b16 %v1207
        %v2058 = vunpack.c.h.b16 %v1207
        %v2059 = vunpack.c.l.b16 %v1208
        %v2060 = vunpack.c.h.b16 %v1208
        %v2061 = vunpack.c.l.b16 %v1209
        %v2062 = vunpack.c.h.b16 %v1209
        %v2063 = vunpack.c.l.b16 %v1210
        %v2064 = vunpack.c.h.b16 %v1210
        %v2065 = vunpack.c.l.b16 %v1211
        %v2066 = vunpack.c.h.b16 %v1211
        %v2067 = vunpack.c.l.b16 %v1212
        %v2068 = vunpack.c.h.b16 %v1212
        %v2069 = vunpack.c.l.b16 %v1213
        %v2070 = vunpack.c.h.b16 %v1213
        %v2071 = vunpack.c.l.b16 %v1214
        %v2072 = vunpack.c.h.b16 %v1214
        %v2073 = vunpack.c.l.b16 %v1215
        %v2074 = vunpack.c.h.b16 %v1215
        %v2075 = vunpack.c.l.b16 %v1216
        %v2076 = vunpack.c.h.b16 %v1216
        %v2077 = vunpack.c.l.b16 %v1217
        %v2078 = vunpack.c.h.b16 %v1217
        %v2079 = vunpack.c.l.b16 %v1218
        %v2080 = vunpack.c.h.b16 %v1218
        %v2081 = vunpack.c.l.b16 %v1219
        %v2082 = vunpack.c.h.b16 %v1219
        %v2083 = vunpack.c.l.b16 %v1220
        %v2084 = vunpack.c.h.b16 %v1220
        %v2085 = vunpack.c.l.b16 %v1221
        %v2086 = vunpack.c.h.b16 %v1221
        %v2087 = vunpack.c.l.b16 %v1222
        %v2088 = vunpack.c.h.b16 %v1222
        %v2089 = vunpack.c.l.b16 %v1223
        %v2090 = vunpack.c.h.b16 %v1223
        %v2091 = vunpack.c.l.b16 %v1224
        %v2092 = vunpack.c.h.b16 %v1224
        %v2093 = vunpack.c.l.b16 %v1225
        %v2094 = vunpack.c.h.b16 %v1225
        %v2095 = vunpack.c.l.b16 %v1226
        %v2096 = vunpack.c.h.b16 %v1226
        %v2097 = vunpack.c.l.b16 %v1227
        %v2098 = vunpack.c.h.b16 %v1227
        %v2099 = vunpack.c.l.b16 %v1228
        %v2100 = vunpack.c.h.b16 %v1228
        %v2101 = vunpack.c.l.b16 %v1229
        %v2102 = vunpack.c.h.b16 %v1229
        %v2103 = vunpack.c.l.b16 %v1230
        %v2104 = vunpack.c.h.b16 %v1230
        %v2105 = vunpack.c.l.b16 %v1231
        %v2106 = vunpack.c.h.b16 %v1231
        %v2107 = vunpack.c.l.b16 %v1232
        %v2108 = vunpack.c.h.b16 %v1232
        %v2109 = vunpack.c.l.b16 %v1233
        %v2110 = vunpack.c.h.b16 %v1233
        %v2111 = vunpack.c.l.b16 %v1234
        %v2112 = vunpack.c.h.b16 %v1234
        %v2113 = vunpack.c.l.b16 %v1235
        %v2114 = vunpack.c.h.b16 %v1235
        %v2115 = vunpack.c.l.b16 %v1236
        %v2116 = vunpack.c.h.b16 %v1236
        %v2117 = vunpack.c.l.b16 %v1237
        %v2118 = vunpack.c.h.b16 %v1237
        %v2119 = vunpack.c.l.b16 %v1238
        %v2120 = vunpack.c.h.b16 %v1238
        %v2121 = vunpack.c.l.b16 %v1239
        %v2122 = vunpack.c.h.b16 %v1239
        %v2123 = vunpack.c.l.b16 %v1240
        %v2124 = vunpack.c.h.b16 %v1240
        %v2125 = vunpack.c.l.b16 %v1241
        %v2126 = vunpack.c.h.b16 %v1241
        %v2127 = vunpack.c.l.b16 %v1242
        %v2128 = vunpack.c.h.b16 %v1242
        %v2129 = vunpack.c.l.b16 %v1243
        %v2130 = vunpack.c.h.b16 %v1243
        %v2131 = vunpack.c.l.b16 %v1244
        %v2132 = vunpack.c.h.b16 %v1244
        %v2133 = vunpack.c.l.b16 %v1245
        %v2134 = vunpack.c.h.b16 %v1245
        %v2135 = vunpack.c.l.b16 %v1246
        %v2136 = vunpack.c.h.b16 %v1246
        %v2137 = vunpack.c.l.b16 %v1247
        %v2138 = vunpack.c.h.b16 %v1247
        %v2139 = vunpack.c.l.b16 %v1248
        %v2140 = vunpack.c.h.b16 %v1248
        %v2141 = vunpack.c.l.b16 %v1249
        %v2142 = vunpack.c.h.b16 %v1249
        %v2143 = vunpack.c.l.b16 %v1250
        %v2144 = vunpack.c.h.b16 %v1250
        %v2145 = vunpack.c.l.b16 %v1251
        %v2146 = vunpack.c.h.b16 %v1251
        %v2147 = vunpack.c.l.b16 %v1252
        %v2148 = vunpack.c.h.b16 %v1252
        %v2149 = vpack.c.b16 %v1579, %v1573
        %v2150 = vpack.c.b16 %v1580, %v1574
        %v2151 = vpack.c.b16 %v1581, %v1575
        %v2152 = vpack.c.b16 %v1582, %v1576
        %v2153 = vpack.c.b16 %v1583, %v1577
        %v2154 = vpack.c.b16 %v1584, %v1578
        %v2155 = vpack.c.b16 %v1591, %v1585
        %v2156 = vpack.c.b16 %v1592, %v1586
        %v2157 = vpack.c.b16 %v1593, %v1587
        %v2158 = vpack.c.b16 %v1594, %v1588
        %v2159 = vpack.c.b16 %v1595, %v1589
        %v2160 = vpack.c.b16 %v1596, %v1590
        %v2161 = vpack.c.b16 %v1603, %v1597
        %v2162 = vpack.c.b16 %v1604, %v1598
        %v2163 = vpack.c.b16 %v1605, %v1599
        %v2164 = vpack.c.b16 %v1606, %v1600
        %v2165 = vpack.c.b16 %v1607, %v1601
        %v2166 = vpack.c.b16 %v1608, %v1602
        %v2167 = vpack.c.b16 %v1615, %v1609
        %v2168 = vpack.c.b16 %v1616, %v1610
        %v2169 = vpack.c.b16 %v1617, %v1611
        %v2170 = vpack.c.b16 %v1618, %v1612
        %v2171 = vpack.c.b16 %v1619, %v1613
        %v2172 = vpack.c.b16 %v1620, %v1614
        %v2173 = vpack.c.b16 %v1627, %v1621
        %v2174 = vpack.c.b16 %v1628, %v1622
        %v2175 = vpack.c.b16 %v1629, %v1623
        %v2176 = vpack.c.b16 %v1630, %v1624
        %v2177 = vpack.c.b16 %v1631, %v1625
        %v2178 = vpack.c.b16 %v1632, %v1626
        %v2179 = vpack.c.b16 %v1639, %v1633
        %v2180 = vpack.c.b16 %v1640, %v1634
        %v2181 = vpack.c.b16 %v1641, %v1635
        %v2182 = vpack.c.b16 %v1642, %v1636
        %v2183 = vpack.c.b16 %v1643, %v1637
        %v2184 = vpack.c.b16 %v1644, %v1638
        %v2185 = vpack.c.b16 %v1651, %v1645
        %v2186 = vpack.c.b16 %v1652, %v1646
        %v2187 = vpack.c.b16 %v1653, %v1647
        %v2188 = vpack.c.b16 %v1654, %v1648
        %v2189 = vpack.c.b16 %v1655, %v1649
        %v2190 = vpack.c.b16 %v1656, %v1650
        %v2191 = vpack.c.b16 %v1663, %v1657
        %v2192 = vpack.c.b16 %v1664, %v1658
        %v2193 = vpack.c.b16 %v1665, %v1659
        %v2194 = vpack.c.b16 %v1666, %v1660
        %v2195 = vpack.c.b16 %v1667, %v1661
        %v2196 = vpack.c.b16 %v1668, %v1662
        %v2197 = vpack.c.b16 %v1675, %v1669
        %v2198 = vpack.c.b16 %v1676, %v1670
        %v2199 = vpack.c.b16 %v1677, %v1671
        %v2200 = vpack.c.b16 %v1678, %v1672
        %v2201 = vpack.c.b16 %v1679, %v1673
        %v2202 = vpack.c.b16 %v1680, %v1674
        %v2203 = vpack.c.b16 %v1687, %v1681
        %v2204 = vpack.c.b16 %v1688, %v1682
        %v2205 = vpack.c.b16 %v1689, %v1683
        %v2206 = vpack.c.b16 %v1690, %v1684
        %v2207 = vpack.c.b16 %v1691, %v1685
        %v2208 = vpack.c.b16 %v1692, %v1686
        %v2209 = vpack.c.b16 %v1699, %v1693
        %v2210 = vpack.c.b16 %v1700, %v1694
        %v2211 = vpack.c.b16 %v1701, %v1695
        %v2212 = vpack.c.b16 %v1702, %v1696
        %v2213 = vpack.c.b16 %v1703, %v1697
        %v2214 = vpack.c.b16 %v1704, %v1698
        %v2215 = vpack.c.b16 %v1711, %v1705
        %v2216 = vpack.c.b16 %v1712, %v1706
        %v2217 = vpack.c.b16 %v1713, %v1707
        %v2218 = vpack.c.b16 %v1714, %v1708
        %v2219 = vpack.c.b16 %v1715, %v1709
        %v2220 = vpack.c.b16 %v1716, %v1710
        %v2221 = vpack.c.b16 %v1723, %v1717
        %v2222 = vpack.c.b16 %v1724, %v1718
        %v2223 = vpack.c.b16 %v1725, %v1719
        %v2224 = vpack.c.b16 %v1726, %v1720
        %v2225 = vpack.c.b16 %v1727, %v1721
        %v2226 = vpack.c.b16 %v1728, %v1722
        %v2227 = vpack.c.b16 %v1735, %v1729
        %v2228 = vpack.c.b16 %v1736, %v1730
        %v2229 = vpack.c.b16 %v1737, %v1731
        %v2230 = vpack.c.b16 %v1738, %v1732
        %v2231 = vpack.c.b16 %v1739, %v1733
        %v2232 = vpack.c.b16 %v1740, %v1734
        %v2233 = vpack.c.b16 %v1747, %v1741
        %v2234 = vpack.c.b16 %v1748, %v1742
        %v2235 = vpack.c.b16 %v1749, %v1743
        %v2236 = vpack.c.b16 %v1750, %v1744
        %v2237 = vpack.c.b16 %v1751, %v1745
        %v2238 = vpack.c.b16 %v1752, %v1746
        %v2239 = vpack.c.b16 %v1759, %v1753
        %v2240 = vpack.c.b16 %v1760, %v1754
        %v2241 = vpack.c.b16 %v1761, %v1755
        %v2242 = vpack.c.b16 %v1762, %v1756
        %v2243 = vpack.c.b16 %v1763, %v1757
        %v2244 = vpack.c.b16 %v1764, %v1758
        %v2245 = vpack.c.b16 %v1771, %v1765
        %v2246 = vpack.c.b16 %v1772, %v1766
        %v2247 = vpack.c.b16 %v1773, %v1767
        %v2248 = vpack.c.b16 %v1774, %v1768
        %v2249 = vpack.c.b16 %v1775, %v1769
        %v2250 = vpack.c.b16 %v1776, %v1770
        %v2251 = vpack.c.b16 %v1783, %v1777
        %v2252 = vpack.c.b16 %v1784, %v1778
        %v2253 = vpack.c.b16 %v1785, %v1779
        %v2254 = vpack.c.b16 %v1786, %v1780
        %v2255 = vpack.c.b16 %v1787, %v1781
        %v2256 = vpack.c.b16 %v1788, %v1782
        %v2257 = vpack.c.b16 %v1795, %v1789
        %v2258 = vpack.c.b16 %v1796, %v1790
        %v2259 = vpack.c.b16 %v1797, %v1791
        %v2260 = vpack.c.b16 %v1798, %v1792
        %v2261 = vpack.c.b16 %v1799, %v1793
        %v2262 = vpack.c.b16 %v1800, %v1794
        %v2263 = vpack.c.b16 %v1807, %v1801
        %v2264 = vpack.c.b16 %v1808, %v1802
        %v2265 = vpack.c.b16 %v1809, %v1803
        %v2266 = vpack.c.b16 %v1810, %v1804
        %v2267 = vpack.c.b16 %v1811, %v1805
        %v2268 = vpack.c.b16 %v1812, %v1806
        %v2269 = vpack.c.b16 %v1819, %v1813
        %v2270 = vpack.c.b16 %v1820, %v1814
        %v2271 = vpack.c.b16 %v1821, %v1815
        %v2272 = vpack.c.b16 %v1822, %v1816
        %v2273 = vpack.c.b16 %v1823, %v1817
        %v2274 = vpack.c.b16 %v1824, %v1818
        %v2275 = vpack.c.b16 %v1831, %v1825
        %v2276 = vpack.c.b16 %v1832, %v1826
        %v2277 = vpack.c.b16 %v1833, %v1827
        %v2278 = vpack.c.b16 %v1834, %v1828
        %v2279 = vpack.c.b16 %v1835, %v1829
        %v2280 = vpack.c.b16 %v1836, %v1830
        %v2281 = vpack.c.b16 %v1843, %v1837
        %v2282 = vpack.c.b16 %v1844, %v1838
        %v2283 = vpack.c.b16 %v1845, %v1839
        %v2284 = vpack.c.b16 %v1846, %v1840
        %v2285 = vpack.c.b16 %v1847, %v1841
        %v2286 = vpack.c.b16 %v1848, %v1842
        %v2287 = vpack.c.b16 %v1855, %v1849
        %v2288 = vpack.c.b16 %v1856, %v1850
        %v2289 = vpack.c.b16 %v1857, %v1851
        %v2290 = vpack.c.b16 %v1858, %v1852
        %v2291 = vpack.c.b16 %v1859, %v1853
        %v2292 = vpack.c.b16 %v1860, %v1854
        %v2293 = vpack.c.b16 %v1867, %v1861
        %v2294 = vpack.c.b16 %v1868, %v1862
        %v2295 = vpack.c.b16 %v1869, %v1863
        %v2296 = vpack.c.b16 %v1870, %v1864
        %v2297 = vpack.c.b16 %v1871, %v1865
        %v2298 = vpack.c.b16 %v1872, %v1866
        %v2299 = vpack.c.b16 %v1879, %v1873
        %v2300 = vpack.c.b16 %v1880, %v1874
        %v2301 = vpack.c.b16 %v1881, %v1875
        %v2302 = vpack.c.b16 %v1882, %v1876
        %v2303 = vpack.c.b16 %v1883, %v1877
        %v2304 = vpack.c.b16 %v1884, %v1878
        %v2305 = vpack.c.b16 %v1891, %v1885
        %v2306 = vpack.c.b16 %v1892, %v1886
        %v2307 = vpack.c.b16 %v1893, %v1887
        %v2308 = vpack.c.b16 %v1894, %v1888
        %v2309 = vpack.c.b16 %v1895, %v1889
        %v2310 = vpack.c.b16 %v1896, %v1890
        %v2311 = vpack.c.b16 %v1903, %v1897
        %v2312 = vpack.c.b16 %v1904, %v1898
        %v2313 = vpack.c.b16 %v1905, %v1899
        %v2314 = vpack.c.b16 %v1906, %v1900
        %v2315 = vpack.c.b16 %v1907, %v1901
        %v2316 = vpack.c.b16 %v1908, %v1902
        %v2317 = vpack.c.b16 %v1915, %v1909
        %v2318 = vpack.c.b16 %v1916, %v1910
        %v2319 = vpack.c.b16 %v1917, %v1911
        %v2320 = vpack.c.b16 %v1918, %v1912
        %v2321 = vpack.c.b16 %v1919, %v1913
        %v2322 = vpack.c.b16 %v1920, %v1914
        %v2323 = vpack.c.b16 %v1927, %v1921
        %v2324 = vpack.c.b16 %v1928, %v1922
        %v2325 = vpack.c.b16 %v1929, %v1923
        %v2326 = vpack.c.b16 %v1930, %v1924
        %v2327 = vpack.c.b16 %v1931, %v1925
        %v2328 = vpack.c.b16 %v1932, %v1926
        %v2329 = vpack.c.b16 %v1939, %v1933
        %v2330 = vpack.c.b16 %v1940, %v1934
        %v2331 = vpack.c.b16 %v1941, %v1935
        %v2332 = vpack.c.b16 %v1942, %v1936
        %v2333 = vpack.c.b16 %v1943, %v1937
        %v2334 = vpack.c.b16 %v1944, %v1938
        %v2335 = vpack.c.b16 %v1951, %v1945
        %v2336 = vpack.c.b16 %v1952, %v1946
        %v2337 = vpack.c.b16 %v1953, %v1947
        %v2338 = vpack.c.b16 %v1954, %v1948
        %v2339 = vpack.c.b16 %v1955, %v1949
        %v2340 = vpack.c.b16 %v1956, %v1950
        %v2341 = vpack.c.b16 %v1963, %v1957
        %v2342 = vpack.c.b16 %v1964, %v1958
        %v2343 = vpack.c.b16 %v1965, %v1959
        %v2344 = vpack.c.b16 %v1966, %v1960
        %v2345 = vpack.c.b16 %v1967, %v1961
        %v2346 = vpack.c.b16 %v1968, %v1962
        %v2347 = vpack.c.b16 %v1975, %v1969
        %v2348 = vpack.c.b16 %v1976, %v1970
        %v2349 = vpack.c.b16 %v1977, %v1971
        %v2350 = vpack.c.b16 %v1978, %v1972
        %v2351 = vpack.c.b16 %v1979, %v1973
        %v2352 = vpack.c.b16 %v1980, %v1974
        %v2353 = vpack.c.b16 %v1987, %v1981
        %v2354 = vpack.c.b16 %v1988, %v1982
        %v2355 = vpack.c.b16 %v1989, %v1983
        %v2356 = vpack.c.b16 %v1990, %v1984
        %v2357 = vpack.c.b16 %v1991, %v1985
        %v2358 = vpack.c.b16 %v1992, %v1986
        %v2359 = vpack.c.b16 %v1999, %v1993
        %v2360 = vpack.c.b16 %v2000, %v1994
        %v2361 = vpack.c.b16 %v2001, %v1995
        %v2362 = vpack.c.b16 %v2002, %v1996
        %v2363 = vpack.c.b16 %v2003, %v1997
        %v2364 = vpack.c.b16 %v2004, %v1998
        %v2365 = vpack.c.b16 %v2011, %v2005
        %v2366 = vpack.c.b16 %v2012, %v2006
        %v2367 = vpack.c.b16 %v2013, %v2007
        %v2368 = vpack.c.b16 %v2014, %v2008
        %v2369 = vpack.c.b16 %v2015, %v2009
        %v2370 = vpack.c.b16 %v2016, %v2010
        %v2371 = vpack.c.b16 %v2023, %v2017
        %v2372 = vpack.c.b16 %v2024, %v2018
        %v2373 = vpack.c.b16 %v2025, %v2019
        %v2374 = vpack.c.b16 %v2026, %v2020
        %v2375 = vpack.c.b16 %v2027, %v2021
        %v2376 = vpack.c.b16 %v2028, %v2022
        %v2377 = vpack.c.b16 %v2035, %v2029
        %v2378 = vpack.c.b16 %v2036, %v2030
        %v2379 = vpack.c.b16 %v2037, %v2031
        %v2380 = vpack.c.b16 %v2038, %v2032
        %v2381 = vpack.c.b16 %v2039, %v2033
        %v2382 = vpack.c.b16 %v2040, %v2034
        %v2383 = vpack.c.b16 %v2047, %v2041
        %v2384 = vpack.c.b16 %v2048, %v2042
        %v2385 = vpack.c.b16 %v2049, %v2043
        %v2386 = vpack.c.b16 %v2050, %v2044
        %v2387 = vpack.c.b16 %v2051, %v2045
        %v2388 = vpack.c.b16 %v2052, %v2046
        %v2389 = vpack.c.b16 %v2059, %v2053
        %v2390 = vpack.c.b16 %v2060, %v2054
        %v2391 = vpack.c.b16 %v2061, %v2055
        %v2392 = vpack.c.b16 %v2062, %v2056
        %v2393 = vpack.c.b16 %v2063, %v2057
        %v2394 = vpack.c.b16 %v2064, %v2058
        %v2395 = vpack.c.b16 %v2071, %v2065
        %v2396 = vpack.c.b16 %v2072, %v2066
        %v2397 = vpack.c.b16 %v2073, %v2067
        %v2398 = vpack.c.b16 %v2074, %v2068
        %v2399 = vpack.c.b16 %v2075, %v2069
        %v2400 = vpack.c.b16 %v2076, %v2070
        %v2401 = vpack.c.b16 %v2083, %v2077
        %v2402 = vpack.c.b16 %v2084, %v2078
        %v2403 = vpack.c.b16 %v2085, %v2079
        %v2404 = vpack.c.b16 %v2086, %v2080
        %v2405 = vpack.c.b16 %v2087, %v2081
        %v2406 = vpack.c.b16 %v2088, %v2082
        %v2407 = vpack.c.b16 %v2095, %v2089
        %v2408 = vpack.c.b16 %v2096, %v2090
        %v2409 = vpack.c.b16 %v2097, %v2091
        %v2410 = vpack.c.b16 %v2098, %v2092
        %v2411 = vpack.c.b16 %v2099, %v2093
        %v2412 = vpack.c.b16 %v2100, %v2094
        %v2413 = vpack.c.b16 %v2107, %v2101
        %v2414 = vpack.c.b16 %v2108, %v2102
        %v2415 = vpack.c.b16 %v2109, %v2103
        %v2416 = vpack.c.b16 %v2110, %v2104
        %v2417 = vpack.c.b16 %v2111, %v2105
        %v2418 = vpack.c.b16 %v2112, %v2106
        %v2419 = vpack.c.b16 %v2119, %v2113
        %v2420 = vpack.c.b16 %v2120, %v2114
        %v2421 = vpack.c.b16 %v2121, %v2115
        %v2422 = vpack.c.b16 %v2122, %v2116
        %v2423 = vpack.c.b16 %v2123, %v2117
        %v2424 = vpack.c.b16 %v2124, %v2118
        %v2425 = vpack.c.b16 %v2131, %v2125
        %v2426 = vpack.c.b16 %v2132, %v2126
        %v2427 = vpack.c.b16 %v2133, %v2127
        %v2428 = vpack.c.b16 %v2134, %v2128
        %v2429 = vpack.c.b16 %v2135, %v2129
        %v2430 = vpack.c.b16 %v2136, %v2130
        %v2431 = vpack.c.b16 %v2143, %v2137
        %v2432 = vpack.c.b16 %v2144, %v2138
        %v2433 = vpack.c.b16 %v2145, %v2139
        %v2434 = vpack.c.b16 %v2146, %v2140
        %v2435 = vpack.c.b16 %v2147, %v2141
        %v2436 = vpack.c.b16 %v2148, %v2142
        %2725 = vmatprep.subr.bf16.mxu0 %v2192
        %2726 = vmatpush1.bf16.msra.mxu0 %v2191
        %2727 = vmatprep.subr.bf16.mxu0 %v2186
        %2728 = vmatpush1.bf16.msra.mxu0 %v2185
        %2729 = vmatprep.subr.bf16.mxu0 %v2180
        %2730 = vmatpush1.bf16.msra.mxu0 %v2179
        %2731 = vmatprep.subr.bf16.mxu0 %v2174
        %2732 = vmatpush1.bf16.msra.mxu0 %v2173
        %2733 = vmatprep.subr.bf16.mxu0 %v2168
        %2734 = vmatpush1.bf16.msra.mxu0 %v2167
        %2735 = vmatprep.subr.bf16.mxu0 %v2162
        %2736 = vmatpush1.bf16.msra.mxu0 %v2161
        %2737 = vmatprep.subr.bf16.mxu0 %v2156
        %2738 = vmatpush1.bf16.msra.mxu0 %v2155
        %2739 = vmatprep.subr.bf16.mxu0 %v2150
        %2740 = vmatpush1.bf16.msra.mxu0 %v2149
        %2741 = vmatprep.subr.bf16.mxu0 %v2240
        %2742 = vmatpush2.bf16.msra.mxu0 %v2239
        %2743 = vmatprep.subr.bf16.mxu0 %v2234
        %2744 = vmatpush2.bf16.msra.mxu0 %v2233
        %2745 = vmatprep.subr.bf16.mxu0 %v2228
        %2746 = vmatpush2.bf16.msra.mxu0 %v2227
        %2747 = vmatprep.subr.bf16.mxu0 %v2222
        %2748 = vmatpush2.bf16.msra.mxu0 %v2221
        %2749 = vmatprep.subr.bf16.mxu0 %v2216
        %2750 = vmatpush2.bf16.msra.mxu0 %v2215
        %2751 = vmatprep.subr.bf16.mxu0 %v2210
        %2752 = vmatpush2.bf16.msra.mxu0 %v2209
        %2753 = vmatprep.subr.bf16.mxu0 %v2204
        %2754 = vmatpush2.bf16.msra.mxu0 %v2203
        %2755 = vmatprep.subr.bf16.mxu0 %v2198
        %2756 = vmatpush2.bf16.msra.mxu0 %v2197
        %2757 = vmatprep.mubr.bf16.mxu0 %v918
        %2758 = vmatmul.mubr.bf16.gmra.mxu0 %v917
        %v2759 = vpop.f32.mrf.mxu0
        %v2760 = vadd.f32 %v1258, %v2759
        %v2761 = vpop.f32.mrf.mxu0
        %v2762 = vadd.f32 %v1262, %v2761
        %v2763 = vpop.f32.mrf.mxu0
        %v2764 = vadd.f32 %v1258, %v2763
        %v2765 = vpop.f32.mrf.mxu0
        %v2766 = vadd.f32 %v1262, %v2765
        %2767 = vmatprep.mubr.bf16.mxu0 %v924
        %2768 = vmatmul.mubr.bf16.gmra.mxu0 %v923
        %v2769 = vpop.f32.mrf.mxu0
        %v2770 = vadd.f32 %v1258, %v2769
        %v2771 = vpop.f32.mrf.mxu0
        %v2772 = vadd.f32 %v1262, %v2771
        %v2773 = vpop.f32.mrf.mxu0
        %v2774 = vadd.f32 %v1258, %v2773
        %v2775 = vpop.f32.mrf.mxu0
        %v2776 = vadd.f32 %v1262, %v2775
        %2777 = vmatprep.mubr.bf16.mxu0 %v930
        %2778 = vmatmul.mubr.bf16.gmra.mxu0 %v929
        %v2779 = vpop.f32.mrf.mxu0
        %v2780 = vadd.f32 %v1258, %v2779
        %v2781 = vpop.f32.mrf.mxu0
        %v2782 = vadd.f32 %v1262, %v2781
        %v2783 = vpop.f32.mrf.mxu0
        %v2784 = vadd.f32 %v1258, %v2783
        %v2785 = vpop.f32.mrf.mxu0
        %v2786 = vadd.f32 %v1262, %v2785
        %2787 = vmatprep.mubr.bf16.mxu0 %v936
        %2788 = vmatmul.mubr.bf16.gmra.mxu0 %v935
        %v2789 = vpop.f32.mrf.mxu0
        %v2790 = vadd.f32 %v1258, %v2789
        %v2791 = vpop.f32.mrf.mxu0
        %v2792 = vadd.f32 %v1262, %v2791
        %v2793 = vpop.f32.mrf.mxu0
        %v2794 = vadd.f32 %v1258, %v2793
        %v2795 = vpop.f32.mrf.mxu0
        %v2796 = vadd.f32 %v1262, %v2795
        %2797 = vmatprep.mubr.bf16.mxu0 %v942
        %2798 = vmatmul.mubr.bf16.gmra.mxu0 %v941
        %v2799 = vpop.f32.mrf.mxu0
        %v2800 = vadd.f32 %v1258, %v2799
        %v2801 = vpop.f32.mrf.mxu0
        %v2802 = vadd.f32 %v1262, %v2801
        %v2803 = vpop.f32.mrf.mxu0
        %v2804 = vadd.f32 %v1258, %v2803
        %v2805 = vpop.f32.mrf.mxu0
        %v2806 = vadd.f32 %v1262, %v2805
        %2807 = vmatprep.mubr.bf16.mxu0 %v948
        %2808 = vmatmul.mubr.bf16.gmra.mxu0 %v947
        %v2809 = vpop.f32.mrf.mxu0
        %v2810 = vadd.f32 %v1258, %v2809
        %v2811 = vpop.f32.mrf.mxu0
        %v2812 = vadd.f32 %v1262, %v2811
        %v2813 = vpop.f32.mrf.mxu0
        %v2814 = vadd.f32 %v1258, %v2813
        %v2815 = vpop.f32.mrf.mxu0
        %v2816 = vadd.f32 %v1262, %v2815
        %2817 = vmatprep.mubr.bf16.mxu0 %v954
        %2818 = vmatmul.mubr.bf16.gmra.mxu0 %v953
        %v2819 = vpop.f32.mrf.mxu0
        %v2820 = vadd.f32 %v1258, %v2819
        %v2821 = vpop.f32.mrf.mxu0
        %v2822 = vadd.f32 %v1262, %v2821
        %v2823 = vpop.f32.mrf.mxu0
        %v2824 = vadd.f32 %v1258, %v2823
        %v2825 = vpop.f32.mrf.mxu0
        %v2826 = vadd.f32 %v1262, %v2825
        %2827 = vmatprep.mubr.bf16.mxu0 %v960
        %2828 = vmatmul.mubr.bf16.gmra.mxu0 %v959
        %v2829 = vpop.f32.mrf.mxu0
        %v2830 = vadd.f32 %v1258, %v2829
        %v2831 = vpop.f32.mrf.mxu0
        %v2832 = vadd.f32 %v1262, %v2831
        %v2833 = vpop.f32.mrf.mxu0
        %v2834 = vadd.f32 %v1258, %v2833
        %v2835 = vpop.f32.mrf.mxu0
        %v2836 = vadd.f32 %v1262, %v2835
        %2837 = vdwg.mxu0
        %2838 = vmatprep.subr.bf16.mxu0 %v2288
        %2839 = vmatpush1.bf16.msra.mxu0 %v2287
        %2840 = vmatprep.subr.bf16.mxu0 %v2282
        %2841 = vmatpush1.bf16.msra.mxu0 %v2281
        %2842 = vmatprep.subr.bf16.mxu0 %v2276
        %2843 = vmatpush1.bf16.msra.mxu0 %v2275
        %2844 = vmatprep.subr.bf16.mxu0 %v2270
        %2845 = vmatpush1.bf16.msra.mxu0 %v2269
        %2846 = vmatprep.subr.bf16.mxu0 %v2264
        %2847 = vmatpush1.bf16.msra.mxu0 %v2263
        %2848 = vmatprep.subr.bf16.mxu0 %v2258
        %2849 = vmatpush1.bf16.msra.mxu0 %v2257
        %2850 = vmatprep.subr.bf16.mxu0 %v2252
        %2851 = vmatpush1.bf16.msra.mxu0 %v2251
        %2852 = vmatprep.subr.bf16.mxu0 %v2246
        %2853 = vmatpush1.bf16.msra.mxu0 %v2245
        %2854 = vmatprep.subr.bf16.mxu0 %v2336
        %2855 = vmatpush2.bf16.msra.mxu0 %v2335
        %2856 = vmatprep.subr.bf16.mxu0 %v2330
        %2857 = vmatpush2.bf16.msra.mxu0 %v2329
        %2858 = vmatprep.subr.bf16.mxu0 %v2324
        %2859 = vmatpush2.bf16.msra.mxu0 %v2323
        %2860 = vmatprep.subr.bf16.mxu0 %v2318
        %2861 = vmatpush2.bf16.msra.mxu0 %v2317
        %2862 = vmatprep.subr.bf16.mxu0 %v2312
        %2863 = vmatpush2.bf16.msra.mxu0 %v2311
        %2864 = vmatprep.subr.bf16.mxu0 %v2306
        %2865 = vmatpush2.bf16.msra.mxu0 %v2305
        %2866 = vmatprep.subr.bf16.mxu0 %v2300
        %2867 = vmatpush2.bf16.msra.mxu0 %v2299
        %2868 = vmatprep.subr.bf16.mxu0 %v2294
        %2869 = vmatpush2.bf16.msra.mxu0 %v2293
        %2870 = vmatprep.mubr.bf16.mxu0 %v920
        %2871 = vmatmul.mubr.bf16.gmra.mxu0 %v919
        %v2872 = vpop.f32.mrf.mxu0
        %v2873 = vadd.f32 %v2760, %v2872
        %v2874 = vpop.f32.mrf.mxu0
        %v2875 = vadd.f32 %v2762, %v2874
        %v2876 = vpop.f32.mrf.mxu0
        %v2877 = vadd.f32 %v2764, %v2876
        %v2878 = vpop.f32.mrf.mxu0
        %v2879 = vadd.f32 %v2766, %v2878
        %2880 = vmatprep.mubr.bf16.mxu0 %v926
        %2881 = vmatmul.mubr.bf16.gmra.mxu0 %v925
        %v2882 = vpop.f32.mrf.mxu0
        %v2883 = vadd.f32 %v2770, %v2882
        %v2884 = vpop.f32.mrf.mxu0
        %v2885 = vadd.f32 %v2772, %v2884
        %v2886 = vpop.f32.mrf.mxu0
        %v2887 = vadd.f32 %v2774, %v2886
        %v2888 = vpop.f32.mrf.mxu0
        %v2889 = vadd.f32 %v2776, %v2888
        %2890 = vmatprep.mubr.bf16.mxu0 %v932
        %2891 = vmatmul.mubr.bf16.gmra.mxu0 %v931
        %v2892 = vpop.f32.mrf.mxu0
        %v2893 = vadd.f32 %v2780, %v2892
        %v2894 = vpop.f32.mrf.mxu0
        %v2895 = vadd.f32 %v2782, %v2894
        %v2896 = vpop.f32.mrf.mxu0
        %v2897 = vadd.f32 %v2784, %v2896
        %v2898 = vpop.f32.mrf.mxu0
        %v2899 = vadd.f32 %v2786, %v2898
        %2900 = vmatprep.mubr.bf16.mxu0 %v938
        %2901 = vmatmul.mubr.bf16.gmra.mxu0 %v937
        %v2902 = vpop.f32.mrf.mxu0
        %v2903 = vadd.f32 %v2790, %v2902
        %v2904 = vpop.f32.mrf.mxu0
        %v2905 = vadd.f32 %v2792, %v2904
        %v2906 = vpop.f32.mrf.mxu0
        %v2907 = vadd.f32 %v2794, %v2906
        %v2908 = vpop.f32.mrf.mxu0
        %v2909 = vadd.f32 %v2796, %v2908
        %2910 = vmatprep.mubr.bf16.mxu0 %v944
        %2911 = vmatmul.mubr.bf16.gmra.mxu0 %v943
        %v2912 = vpop.f32.mrf.mxu0
        %v2913 = vadd.f32 %v2800, %v2912
        %v2914 = vpop.f32.mrf.mxu0
        %v2915 = vadd.f32 %v2802, %v2914
        %v2916 = vpop.f32.mrf.mxu0
        %v2917 = vadd.f32 %v2804, %v2916
        %v2918 = vpop.f32.mrf.mxu0
        %v2919 = vadd.f32 %v2806, %v2918
        %2920 = vmatprep.mubr.bf16.mxu0 %v950
        %2921 = vmatmul.mubr.bf16.gmra.mxu0 %v949
        %v2922 = vpop.f32.mrf.mxu0
        %v2923 = vadd.f32 %v2810, %v2922
        %v2924 = vpop.f32.mrf.mxu0
        %v2925 = vadd.f32 %v2812, %v2924
        %v2926 = vpop.f32.mrf.mxu0
        %v2927 = vadd.f32 %v2814, %v2926
        %v2928 = vpop.f32.mrf.mxu0
        %v2929 = vadd.f32 %v2816, %v2928
        %2930 = vmatprep.mubr.bf16.mxu0 %v956
        %2931 = vmatmul.mubr.bf16.gmra.mxu0 %v955
        %v2932 = vpop.f32.mrf.mxu0
        %v2933 = vadd.f32 %v2820, %v2932
        %v2934 = vpop.f32.mrf.mxu0
        %v2935 = vadd.f32 %v2822, %v2934
        %v2936 = vpop.f32.mrf.mxu0
        %v2937 = vadd.f32 %v2824, %v2936
        %v2938 = vpop.f32.mrf.mxu0
        %v2939 = vadd.f32 %v2826, %v2938
        %2940 = vmatprep.mubr.bf16.mxu0 %v962
        %2941 = vmatmul.mubr.bf16.gmra.mxu0 %v961
        %v2942 = vpop.f32.mrf.mxu0
        %v2943 = vadd.f32 %v2830, %v2942
        %v2944 = vpop.f32.mrf.mxu0
        %v2945 = vadd.f32 %v2832, %v2944
        %v2946 = vpop.f32.mrf.mxu0
        %v2947 = vadd.f32 %v2834, %v2946
        %v2948 = vpop.f32.mrf.mxu0
        %v2949 = vadd.f32 %v2836, %v2948
        %2950 = vdwg.mxu0
        %2951 = vmatprep.subr.bf16.mxu0 %v2384
        %2952 = vmatpush1.bf16.msra.mxu0 %v2383
        %2953 = vmatprep.subr.bf16.mxu0 %v2378
        %2954 = vmatpush1.bf16.msra.mxu0 %v2377
        %2955 = vmatprep.subr.bf16.mxu0 %v2372
        %2956 = vmatpush1.bf16.msra.mxu0 %v2371
        %2957 = vmatprep.subr.bf16.mxu0 %v2366
        %2958 = vmatpush1.bf16.msra.mxu0 %v2365
        %2959 = vmatprep.subr.bf16.mxu0 %v2360
        %2960 = vmatpush1.bf16.msra.mxu0 %v2359
        %2961 = vmatprep.subr.bf16.mxu0 %v2354
        %2962 = vmatpush1.bf16.msra.mxu0 %v2353
        %2963 = vmatprep.subr.bf16.mxu0 %v2348
        %2964 = vmatpush1.bf16.msra.mxu0 %v2347
        %2965 = vmatprep.subr.bf16.mxu0 %v2342
        %2966 = vmatpush1.bf16.msra.mxu0 %v2341
        %2967 = vmatprep.subr.bf16.mxu0 %v2432
        %2968 = vmatpush2.bf16.msra.mxu0 %v2431
        %2969 = vmatprep.subr.bf16.mxu0 %v2426
        %2970 = vmatpush2.bf16.msra.mxu0 %v2425
        %2971 = vmatprep.subr.bf16.mxu0 %v2420
        %2972 = vmatpush2.bf16.msra.mxu0 %v2419
        %2973 = vmatprep.subr.bf16.mxu0 %v2414
        %2974 = vmatpush2.bf16.msra.mxu0 %v2413
        %2975 = vmatprep.subr.bf16.mxu0 %v2408
        %2976 = vmatpush2.bf16.msra.mxu0 %v2407
        %2977 = vmatprep.subr.bf16.mxu0 %v2402
        %2978 = vmatpush2.bf16.msra.mxu0 %v2401
        %2979 = vmatprep.subr.bf16.mxu0 %v2396
        %2980 = vmatpush2.bf16.msra.mxu0 %v2395
        %2981 = vmatprep.subr.bf16.mxu0 %v2390
        %2982 = vmatpush2.bf16.msra.mxu0 %v2389
        %2983 = vmatprep.mubr.bf16.mxu0 %v922
        %2984 = vmatmul.mubr.bf16.gmra.mxu0 %v921
        %v2985 = vpop.f32.mrf.mxu0
        %v2986 = vadd.f32 %v2873, %v2985
        %v2987 = vpop.f32.mrf.mxu0
        %v2988 = vadd.f32 %v2875, %v2987
        %v2989 = vpop.f32.mrf.mxu0
        %v2990 = vadd.f32 %v2877, %v2989
        %v2991 = vpop.f32.mrf.mxu0
        %v2992 = vadd.f32 %v2879, %v2991
        %2993 = vmatprep.mubr.bf16.mxu0 %v928
        %2994 = vmatmul.mubr.bf16.gmra.mxu0 %v927
        %v2995 = vpop.f32.mrf.mxu0
        %v2996 = vadd.f32 %v2883, %v2995
        %v2997 = vpop.f32.mrf.mxu0
        %v2998 = vadd.f32 %v2885, %v2997
        %v2999 = vpop.f32.mrf.mxu0
        %v3000 = vadd.f32 %v2887, %v2999
        %v3001 = vpop.f32.mrf.mxu0
        %v3002 = vadd.f32 %v2889, %v3001
        %3003 = vmatprep.mubr.bf16.mxu0 %v934
        %3004 = vmatmul.mubr.bf16.gmra.mxu0 %v933
        %v3005 = vpop.f32.mrf.mxu0
        %v3006 = vadd.f32 %v2893, %v3005
        %v3007 = vpop.f32.mrf.mxu0
        %v3008 = vadd.f32 %v2895, %v3007
        %v3009 = vpop.f32.mrf.mxu0
        %v3010 = vadd.f32 %v2897, %v3009
        %v3011 = vpop.f32.mrf.mxu0
        %v3012 = vadd.f32 %v2899, %v3011
        %3013 = vmatprep.mubr.bf16.mxu0 %v940
        %3014 = vmatmul.mubr.bf16.gmra.mxu0 %v939
        %v3015 = vpop.f32.mrf.mxu0
        %v3016 = vadd.f32 %v2903, %v3015
        %v3017 = vpop.f32.mrf.mxu0
        %v3018 = vadd.f32 %v2905, %v3017
        %v3019 = vpop.f32.mrf.mxu0
        %v3020 = vadd.f32 %v2907, %v3019
        %v3021 = vpop.f32.mrf.mxu0
        %v3022 = vadd.f32 %v2909, %v3021
        %3023 = vmatprep.mubr.bf16.mxu0 %v946
        %3024 = vmatmul.mubr.bf16.gmra.mxu0 %v945
        %v3025 = vpop.f32.mrf.mxu0
        %v3026 = vadd.f32 %v2913, %v3025
        %v3027 = vpop.f32.mrf.mxu0
        %v3028 = vadd.f32 %v2915, %v3027
        %v3029 = vpop.f32.mrf.mxu0
        %v3030 = vadd.f32 %v2917, %v3029
        %v3031 = vpop.f32.mrf.mxu0
        %v3032 = vadd.f32 %v2919, %v3031
        %3033 = vmatprep.mubr.bf16.mxu0 %v952
        %3034 = vmatmul.mubr.bf16.gmra.mxu0 %v951
        %v3035 = vpop.f32.mrf.mxu0
        %v3036 = vadd.f32 %v2923, %v3035
        %v3037 = vpop.f32.mrf.mxu0
        %v3038 = vadd.f32 %v2925, %v3037
        %v3039 = vpop.f32.mrf.mxu0
        %v3040 = vadd.f32 %v2927, %v3039
        %v3041 = vpop.f32.mrf.mxu0
        %v3042 = vadd.f32 %v2929, %v3041
        %3043 = vmatprep.mubr.bf16.mxu0 %v958
        %3044 = vmatmul.mubr.bf16.gmra.mxu0 %v957
        %v3045 = vpop.f32.mrf.mxu0
        %v3046 = vadd.f32 %v2933, %v3045
        %v3047 = vpop.f32.mrf.mxu0
        %v3048 = vadd.f32 %v2935, %v3047
        %v3049 = vpop.f32.mrf.mxu0
        %v3050 = vadd.f32 %v2937, %v3049
        %v3051 = vpop.f32.mrf.mxu0
        %v3052 = vadd.f32 %v2939, %v3051
        %3053 = vmatprep.mubr.bf16.mxu0 %v964
        %3054 = vmatmul.mubr.bf16.gmra.mxu0 %v963
        %v3055 = vpop.f32.mrf.mxu0
        %v3056 = vadd.f32 %v2943, %v3055
        %v3057 = vpop.f32.mrf.mxu0
        %v3058 = vadd.f32 %v2945, %v3057
        %v3059 = vpop.f32.mrf.mxu0
        %v3060 = vadd.f32 %v2947, %v3059
        %v3061 = vpop.f32.mrf.mxu0
        %v3062 = vadd.f32 %v2949, %v3061
        %3063 = vdwg.mxu0
        %3064 = vmatprep.subr.bf16.mxu0 %v2194
        %3065 = vmatpush1.bf16.msra.mxu0 %v2193
        %3066 = vmatprep.subr.bf16.mxu0 %v2188
        %3067 = vmatpush1.bf16.msra.mxu0 %v2187
        %3068 = vmatprep.subr.bf16.mxu0 %v2182
        %3069 = vmatpush1.bf16.msra.mxu0 %v2181
        %3070 = vmatprep.subr.bf16.mxu0 %v2176
        %3071 = vmatpush1.bf16.msra.mxu0 %v2175
        %3072 = vmatprep.subr.bf16.mxu0 %v2170
        %3073 = vmatpush1.bf16.msra.mxu0 %v2169
        %3074 = vmatprep.subr.bf16.mxu0 %v2164
        %3075 = vmatpush1.bf16.msra.mxu0 %v2163
        %3076 = vmatprep.subr.bf16.mxu0 %v2158
        %3077 = vmatpush1.bf16.msra.mxu0 %v2157
        %3078 = vmatprep.subr.bf16.mxu0 %v2152
        %3079 = vmatpush1.bf16.msra.mxu0 %v2151
        %3080 = vmatprep.subr.bf16.mxu0 %v2242
        %3081 = vmatpush2.bf16.msra.mxu0 %v2241
        %3082 = vmatprep.subr.bf16.mxu0 %v2236
        %3083 = vmatpush2.bf16.msra.mxu0 %v2235
        %3084 = vmatprep.subr.bf16.mxu0 %v2230
        %3085 = vmatpush2.bf16.msra.mxu0 %v2229
        %3086 = vmatprep.subr.bf16.mxu0 %v2224
        %3087 = vmatpush2.bf16.msra.mxu0 %v2223
        %3088 = vmatprep.subr.bf16.mxu0 %v2218
        %3089 = vmatpush2.bf16.msra.mxu0 %v2217
        %3090 = vmatprep.subr.bf16.mxu0 %v2212
        %3091 = vmatpush2.bf16.msra.mxu0 %v2211
        %3092 = vmatprep.subr.bf16.mxu0 %v2206
        %3093 = vmatpush2.bf16.msra.mxu0 %v2205
        %3094 = vmatprep.subr.bf16.mxu0 %v2200
        %3095 = vmatpush2.bf16.msra.mxu0 %v2199
        %3096 = vmatprep.mubr.bf16.mxu0 %v918
        %3097 = vmatmul.mubr.bf16.gmra.mxu0 %v917
        %v3098 = vpop.f32.mrf.mxu0
        %v3099 = vadd.f32 %v1266, %v3098
        %v3100 = vpop.f32.mrf.mxu0
        %v3101 = vadd.f32 %v1270, %v3100
        %v3102 = vpop.f32.mrf.mxu0
        %v3103 = vadd.f32 %v1266, %v3102
        %v3104 = vpop.f32.mrf.mxu0
        %v3105 = vadd.f32 %v1270, %v3104
        %3106 = vmatprep.mubr.bf16.mxu0 %v924
        %3107 = vmatmul.mubr.bf16.gmra.mxu0 %v923
        %v3108 = vpop.f32.mrf.mxu0
        %v3109 = vadd.f32 %v1266, %v3108
        %v3110 = vpop.f32.mrf.mxu0
        %v3111 = vadd.f32 %v1270, %v3110
        %v3112 = vpop.f32.mrf.mxu0
        %v3113 = vadd.f32 %v1266, %v3112
        %v3114 = vpop.f32.mrf.mxu0
        %v3115 = vadd.f32 %v1270, %v3114
        %3116 = vmatprep.mubr.bf16.mxu0 %v930
        %3117 = vmatmul.mubr.bf16.gmra.mxu0 %v929
        %v3118 = vpop.f32.mrf.mxu0
        %v3119 = vadd.f32 %v1266, %v3118
        %v3120 = vpop.f32.mrf.mxu0
        %v3121 = vadd.f32 %v1270, %v3120
        %v3122 = vpop.f32.mrf.mxu0
        %v3123 = vadd.f32 %v1266, %v3122
        %v3124 = vpop.f32.mrf.mxu0
        %v3125 = vadd.f32 %v1270, %v3124
        %3126 = vmatprep.mubr.bf16.mxu0 %v936
        %3127 = vmatmul.mubr.bf16.gmra.mxu0 %v935
        %v3128 = vpop.f32.mrf.mxu0
        %v3129 = vadd.f32 %v1266, %v3128
        %v3130 = vpop.f32.mrf.mxu0
        %v3131 = vadd.f32 %v1270, %v3130
        %v3132 = vpop.f32.mrf.mxu0
        %v3133 = vadd.f32 %v1266, %v3132
        %v3134 = vpop.f32.mrf.mxu0
        %v3135 = vadd.f32 %v1270, %v3134
        %3136 = vmatprep.mubr.bf16.mxu0 %v942
        %3137 = vmatmul.mubr.bf16.gmra.mxu0 %v941
        %v3138 = vpop.f32.mrf.mxu0
        %v3139 = vadd.f32 %v1266, %v3138
        %v3140 = vpop.f32.mrf.mxu0
        %v3141 = vadd.f32 %v1270, %v3140
        %v3142 = vpop.f32.mrf.mxu0
        %v3143 = vadd.f32 %v1266, %v3142
        %v3144 = vpop.f32.mrf.mxu0
        %v3145 = vadd.f32 %v1270, %v3144
        %3146 = vmatprep.mubr.bf16.mxu0 %v948
        %3147 = vmatmul.mubr.bf16.gmra.mxu0 %v947
        %v3148 = vpop.f32.mrf.mxu0
        %v3149 = vadd.f32 %v1266, %v3148
        %v3150 = vpop.f32.mrf.mxu0
        %v3151 = vadd.f32 %v1270, %v3150
        %v3152 = vpop.f32.mrf.mxu0
        %v3153 = vadd.f32 %v1266, %v3152
        %v3154 = vpop.f32.mrf.mxu0
        %v3155 = vadd.f32 %v1270, %v3154
        %3156 = vmatprep.mubr.bf16.mxu0 %v954
        %3157 = vmatmul.mubr.bf16.gmra.mxu0 %v953
        %v3158 = vpop.f32.mrf.mxu0
        %v3159 = vadd.f32 %v1266, %v3158
        %v3160 = vpop.f32.mrf.mxu0
        %v3161 = vadd.f32 %v1270, %v3160
        %v3162 = vpop.f32.mrf.mxu0
        %v3163 = vadd.f32 %v1266, %v3162
        %v3164 = vpop.f32.mrf.mxu0
        %v3165 = vadd.f32 %v1270, %v3164
        %3166 = vmatprep.mubr.bf16.mxu0 %v960
        %3167 = vmatmul.mubr.bf16.gmra.mxu0 %v959
        %v3168 = vpop.f32.mrf.mxu0
        %v3169 = vadd.f32 %v1266, %v3168
        %v3170 = vpop.f32.mrf.mxu0
        %v3171 = vadd.f32 %v1270, %v3170
        %v3172 = vpop.f32.mrf.mxu0
        %v3173 = vadd.f32 %v1266, %v3172
        %v3174 = vpop.f32.mrf.mxu0
        %v3175 = vadd.f32 %v1270, %v3174
        %3176 = vdwg.mxu0
        %3177 = vmatprep.subr.bf16.mxu0 %v2290
        %3178 = vmatpush1.bf16.msra.mxu0 %v2289
        %3179 = vmatprep.subr.bf16.mxu0 %v2284
        %3180 = vmatpush1.bf16.msra.mxu0 %v2283
        %3181 = vmatprep.subr.bf16.mxu0 %v2278
        %3182 = vmatpush1.bf16.msra.mxu0 %v2277
        %3183 = vmatprep.subr.bf16.mxu0 %v2272
        %3184 = vmatpush1.bf16.msra.mxu0 %v2271
        %3185 = vmatprep.subr.bf16.mxu0 %v2266
        %3186 = vmatpush1.bf16.msra.mxu0 %v2265
        %3187 = vmatprep.subr.bf16.mxu0 %v2260
        %3188 = vmatpush1.bf16.msra.mxu0 %v2259
        %3189 = vmatprep.subr.bf16.mxu0 %v2254
        %3190 = vmatpush1.bf16.msra.mxu0 %v2253
        %3191 = vmatprep.subr.bf16.mxu0 %v2248
        %3192 = vmatpush1.bf16.msra.mxu0 %v2247
        %3193 = vmatprep.subr.bf16.mxu0 %v2338
        %3194 = vmatpush2.bf16.msra.mxu0 %v2337
        %3195 = vmatprep.subr.bf16.mxu0 %v2332
        %3196 = vmatpush2.bf16.msra.mxu0 %v2331
        %3197 = vmatprep.subr.bf16.mxu0 %v2326
        %3198 = vmatpush2.bf16.msra.mxu0 %v2325
        %3199 = vmatprep.subr.bf16.mxu0 %v2320
        %3200 = vmatpush2.bf16.msra.mxu0 %v2319
        %3201 = vmatprep.subr.bf16.mxu0 %v2314
        %3202 = vmatpush2.bf16.msra.mxu0 %v2313
        %3203 = vmatprep.subr.bf16.mxu0 %v2308
        %3204 = vmatpush2.bf16.msra.mxu0 %v2307
        %3205 = vmatprep.subr.bf16.mxu0 %v2302
        %3206 = vmatpush2.bf16.msra.mxu0 %v2301
        %3207 = vmatprep.subr.bf16.mxu0 %v2296
        %3208 = vmatpush2.bf16.msra.mxu0 %v2295
        %3209 = vmatprep.mubr.bf16.mxu0 %v920
        %3210 = vmatmul.mubr.bf16.gmra.mxu0 %v919
        %v3211 = vpop.f32.mrf.mxu0
        %v3212 = vadd.f32 %v3099, %v3211
        %v3213 = vpop.f32.mrf.mxu0
        %v3214 = vadd.f32 %v3101, %v3213
        %v3215 = vpop.f32.mrf.mxu0
        %v3216 = vadd.f32 %v3103, %v3215
        %v3217 = vpop.f32.mrf.mxu0
        %v3218 = vadd.f32 %v3105, %v3217
        %3219 = vmatprep.mubr.bf16.mxu0 %v926
        %3220 = vmatmul.mubr.bf16.gmra.mxu0 %v925
        %v3221 = vpop.f32.mrf.mxu0
        %v3222 = vadd.f32 %v3109, %v3221
        %v3223 = vpop.f32.mrf.mxu0
        %v3224 = vadd.f32 %v3111, %v3223
        %v3225 = vpop.f32.mrf.mxu0
        %v3226 = vadd.f32 %v3113, %v3225
        %v3227 = vpop.f32.mrf.mxu0
        %v3228 = vadd.f32 %v3115, %v3227
        %3229 = vmatprep.mubr.bf16.mxu0 %v932
        %3230 = vmatmul.mubr.bf16.gmra.mxu0 %v931
        %v3231 = vpop.f32.mrf.mxu0
        %v3232 = vadd.f32 %v3119, %v3231
        %v3233 = vpop.f32.mrf.mxu0
        %v3234 = vadd.f32 %v3121, %v3233
        %v3235 = vpop.f32.mrf.mxu0
        %v3236 = vadd.f32 %v3123, %v3235
        %v3237 = vpop.f32.mrf.mxu0
        %v3238 = vadd.f32 %v3125, %v3237
        %3239 = vmatprep.mubr.bf16.mxu0 %v938
        %3240 = vmatmul.mubr.bf16.gmra.mxu0 %v937
        %v3241 = vpop.f32.mrf.mxu0
        %v3242 = vadd.f32 %v3129, %v3241
        %v3243 = vpop.f32.mrf.mxu0
        %v3244 = vadd.f32 %v3131, %v3243
        %v3245 = vpop.f32.mrf.mxu0
        %v3246 = vadd.f32 %v3133, %v3245
        %v3247 = vpop.f32.mrf.mxu0
        %v3248 = vadd.f32 %v3135, %v3247
        %3249 = vmatprep.mubr.bf16.mxu0 %v944
        %3250 = vmatmul.mubr.bf16.gmra.mxu0 %v943
        %v3251 = vpop.f32.mrf.mxu0
        %v3252 = vadd.f32 %v3139, %v3251
        %v3253 = vpop.f32.mrf.mxu0
        %v3254 = vadd.f32 %v3141, %v3253
        %v3255 = vpop.f32.mrf.mxu0
        %v3256 = vadd.f32 %v3143, %v3255
        %v3257 = vpop.f32.mrf.mxu0
        %v3258 = vadd.f32 %v3145, %v3257
        %3259 = vmatprep.mubr.bf16.mxu0 %v950
        %3260 = vmatmul.mubr.bf16.gmra.mxu0 %v949
        %v3261 = vpop.f32.mrf.mxu0
        %v3262 = vadd.f32 %v3149, %v3261
        %v3263 = vpop.f32.mrf.mxu0
        %v3264 = vadd.f32 %v3151, %v3263
        %v3265 = vpop.f32.mrf.mxu0
        %v3266 = vadd.f32 %v3153, %v3265
        %v3267 = vpop.f32.mrf.mxu0
        %v3268 = vadd.f32 %v3155, %v3267
        %3269 = vmatprep.mubr.bf16.mxu0 %v956
        %3270 = vmatmul.mubr.bf16.gmra.mxu0 %v955
        %v3271 = vpop.f32.mrf.mxu0
        %v3272 = vadd.f32 %v3159, %v3271
        %v3273 = vpop.f32.mrf.mxu0
        %v3274 = vadd.f32 %v3161, %v3273
        %v3275 = vpop.f32.mrf.mxu0
        %v3276 = vadd.f32 %v3163, %v3275
        %v3277 = vpop.f32.mrf.mxu0
        %v3278 = vadd.f32 %v3165, %v3277
        %3279 = vmatprep.mubr.bf16.mxu0 %v962
        %3280 = vmatmul.mubr.bf16.gmra.mxu0 %v961
        %v3281 = vpop.f32.mrf.mxu0
        %v3282 = vadd.f32 %v3169, %v3281
        %v3283 = vpop.f32.mrf.mxu0
        %v3284 = vadd.f32 %v3171, %v3283
        %v3285 = vpop.f32.mrf.mxu0
        %v3286 = vadd.f32 %v3173, %v3285
        %v3287 = vpop.f32.mrf.mxu0
        %v3288 = vadd.f32 %v3175, %v3287
        %3289 = vdwg.mxu0
        %3290 = vmatprep.subr.bf16.mxu0 %v2386
        %3291 = vmatpush1.bf16.msra.mxu0 %v2385
        %3292 = vmatprep.subr.bf16.mxu0 %v2380
        %3293 = vmatpush1.bf16.msra.mxu0 %v2379
        %3294 = vmatprep.subr.bf16.mxu0 %v2374
        %3295 = vmatpush1.bf16.msra.mxu0 %v2373
        %3296 = vmatprep.subr.bf16.mxu0 %v2368
        %3297 = vmatpush1.bf16.msra.mxu0 %v2367
        %3298 = vmatprep.subr.bf16.mxu0 %v2362
        %3299 = vmatpush1.bf16.msra.mxu0 %v2361
        %3300 = vmatprep.subr.bf16.mxu0 %v2356
        %3301 = vmatpush1.bf16.msra.mxu0 %v2355
        %3302 = vmatprep.subr.bf16.mxu0 %v2350
        %3303 = vmatpush1.bf16.msra.mxu0 %v2349
        %3304 = vmatprep.subr.bf16.mxu0 %v2344
        %3305 = vmatpush1.bf16.msra.mxu0 %v2343
        %3306 = vmatprep.subr.bf16.mxu0 %v2434
        %3307 = vmatpush2.bf16.msra.mxu0 %v2433
        %3308 = vmatprep.subr.bf16.mxu0 %v2428
        %3309 = vmatpush2.bf16.msra.mxu0 %v2427
        %3310 = vmatprep.subr.bf16.mxu0 %v2422
        %3311 = vmatpush2.bf16.msra.mxu0 %v2421
        %3312 = vmatprep.subr.bf16.mxu0 %v2416
        %3313 = vmatpush2.bf16.msra.mxu0 %v2415
        %3314 = vmatprep.subr.bf16.mxu0 %v2410
        %3315 = vmatpush2.bf16.msra.mxu0 %v2409
        %3316 = vmatprep.subr.bf16.mxu0 %v2404
        %3317 = vmatpush2.bf16.msra.mxu0 %v2403
        %3318 = vmatprep.subr.bf16.mxu0 %v2398
        %3319 = vmatpush2.bf16.msra.mxu0 %v2397
        %3320 = vmatprep.subr.bf16.mxu0 %v2392
        %3321 = vmatpush2.bf16.msra.mxu0 %v2391
        %3322 = vmatprep.mubr.bf16.mxu0 %v922
        %3323 = vmatmul.mubr.bf16.gmra.mxu0 %v921
        %v3324 = vpop.f32.mrf.mxu0
        %v3325 = vadd.f32 %v3212, %v3324
        %v3326 = vpop.f32.mrf.mxu0
        %v3327 = vadd.f32 %v3214, %v3326
        %v3328 = vpop.f32.mrf.mxu0
        %v3329 = vadd.f32 %v3216, %v3328
        %v3330 = vpop.f32.mrf.mxu0
        %v3331 = vadd.f32 %v3218, %v3330
        %3332 = vmatprep.mubr.bf16.mxu0 %v928
        %3333 = vmatmul.mubr.bf16.gmra.mxu0 %v927
        %v3334 = vpop.f32.mrf.mxu0
        %v3335 = vadd.f32 %v3222, %v3334
        %v3336 = vpop.f32.mrf.mxu0
        %v3337 = vadd.f32 %v3224, %v3336
        %v3338 = vpop.f32.mrf.mxu0
        %v3339 = vadd.f32 %v3226, %v3338
        %v3340 = vpop.f32.mrf.mxu0
        %v3341 = vadd.f32 %v3228, %v3340
        %3342 = vmatprep.mubr.bf16.mxu0 %v934
        %3343 = vmatmul.mubr.bf16.gmra.mxu0 %v933
        %v3344 = vpop.f32.mrf.mxu0
        %v3345 = vadd.f32 %v3232, %v3344
        %v3346 = vpop.f32.mrf.mxu0
        %v3347 = vadd.f32 %v3234, %v3346
        %v3348 = vpop.f32.mrf.mxu0
        %v3349 = vadd.f32 %v3236, %v3348
        %v3350 = vpop.f32.mrf.mxu0
        %v3351 = vadd.f32 %v3238, %v3350
        %3352 = vmatprep.mubr.bf16.mxu0 %v940
        %3353 = vmatmul.mubr.bf16.gmra.mxu0 %v939
        %v3354 = vpop.f32.mrf.mxu0
        %v3355 = vadd.f32 %v3242, %v3354
        %v3356 = vpop.f32.mrf.mxu0
        %v3357 = vadd.f32 %v3244, %v3356
        %v3358 = vpop.f32.mrf.mxu0
        %v3359 = vadd.f32 %v3246, %v3358
        %v3360 = vpop.f32.mrf.mxu0
        %v3361 = vadd.f32 %v3248, %v3360
        %3362 = vmatprep.mubr.bf16.mxu0 %v946
        %3363 = vmatmul.mubr.bf16.gmra.mxu0 %v945
        %v3364 = vpop.f32.mrf.mxu0
        %v3365 = vadd.f32 %v3252, %v3364
        %v3366 = vpop.f32.mrf.mxu0
        %v3367 = vadd.f32 %v3254, %v3366
        %v3368 = vpop.f32.mrf.mxu0
        %v3369 = vadd.f32 %v3256, %v3368
        %v3370 = vpop.f32.mrf.mxu0
        %v3371 = vadd.f32 %v3258, %v3370
        %3372 = vmatprep.mubr.bf16.mxu0 %v952
        %3373 = vmatmul.mubr.bf16.gmra.mxu0 %v951
        %v3374 = vpop.f32.mrf.mxu0
        %v3375 = vadd.f32 %v3262, %v3374
        %v3376 = vpop.f32.mrf.mxu0
        %v3377 = vadd.f32 %v3264, %v3376
        %v3378 = vpop.f32.mrf.mxu0
        %v3379 = vadd.f32 %v3266, %v3378
        %v3380 = vpop.f32.mrf.mxu0
        %v3381 = vadd.f32 %v3268, %v3380
        %3382 = vmatprep.mubr.bf16.mxu0 %v958
        %3383 = vmatmul.mubr.bf16.gmra.mxu0 %v957
        %v3384 = vpop.f32.mrf.mxu0
        %v3385 = vadd.f32 %v3272, %v3384
        %v3386 = vpop.f32.mrf.mxu0
        %v3387 = vadd.f32 %v3274, %v3386
        %v3388 = vpop.f32.mrf.mxu0
        %v3389 = vadd.f32 %v3276, %v3388
        %v3390 = vpop.f32.mrf.mxu0
        %v3391 = vadd.f32 %v3278, %v3390
        %3392 = vmatprep.mubr.bf16.mxu0 %v964
        %3393 = vmatmul.mubr.bf16.gmra.mxu0 %v963
        %v3394 = vpop.f32.mrf.mxu0
        %v3395 = vadd.f32 %v3282, %v3394
        %v3396 = vpop.f32.mrf.mxu0
        %v3397 = vadd.f32 %v3284, %v3396
        %v3398 = vpop.f32.mrf.mxu0
        %v3399 = vadd.f32 %v3286, %v3398
        %v3400 = vpop.f32.mrf.mxu0
        %v3401 = vadd.f32 %v3288, %v3400
        %3402 = vdwg.mxu0
        %3403 = vmatprep.subr.bf16.mxu0 %v2196
        %3404 = vmatpush1.bf16.msra.mxu0 %v2195
        %3405 = vmatprep.subr.bf16.mxu0 %v2190
        %3406 = vmatpush1.bf16.msra.mxu0 %v2189
        %3407 = vmatprep.subr.bf16.mxu0 %v2184
        %3408 = vmatpush1.bf16.msra.mxu0 %v2183
        %3409 = vmatprep.subr.bf16.mxu0 %v2178
        %3410 = vmatpush1.bf16.msra.mxu0 %v2177
        %3411 = vmatprep.subr.bf16.mxu0 %v2172
        %3412 = vmatpush1.bf16.msra.mxu0 %v2171
        %3413 = vmatprep.subr.bf16.mxu0 %v2166
        %3414 = vmatpush1.bf16.msra.mxu0 %v2165
        %3415 = vmatprep.subr.bf16.mxu0 %v2160
        %3416 = vmatpush1.bf16.msra.mxu0 %v2159
        %3417 = vmatprep.subr.bf16.mxu0 %v2154
        %3418 = vmatpush1.bf16.msra.mxu0 %v2153
        %3419 = vmatprep.subr.bf16.mxu0 %v2244
        %3420 = vmatpush2.bf16.msra.mxu0 %v2243
        %3421 = vmatprep.subr.bf16.mxu0 %v2238
        %3422 = vmatpush2.bf16.msra.mxu0 %v2237
        %3423 = vmatprep.subr.bf16.mxu0 %v2232
        %3424 = vmatpush2.bf16.msra.mxu0 %v2231
        %3425 = vmatprep.subr.bf16.mxu0 %v2226
        %3426 = vmatpush2.bf16.msra.mxu0 %v2225
        %3427 = vmatprep.subr.bf16.mxu0 %v2220
        %3428 = vmatpush2.bf16.msra.mxu0 %v2219
        %3429 = vmatprep.subr.bf16.mxu0 %v2214
        %3430 = vmatpush2.bf16.msra.mxu0 %v2213
        %3431 = vmatprep.subr.bf16.mxu0 %v2208
        %3432 = vmatpush2.bf16.msra.mxu0 %v2207
        %3433 = vmatprep.subr.bf16.mxu0 %v2202
        %3434 = vmatpush2.bf16.msra.mxu0 %v2201
        %3435 = vmatprep.mubr.bf16.mxu0 %v918
        %3436 = vmatmul.mubr.bf16.gmra.mxu0 %v917
        %v3437 = vpop.f32.mrf.mxu0
        %v3438 = vadd.f32 %v1274, %v3437
        %v3439 = vpop.f32.mrf.mxu0
        %v3440 = vadd.f32 %v1278, %v3439
        %v3441 = vpop.f32.mrf.mxu0
        %v3442 = vadd.f32 %v1274, %v3441
        %v3443 = vpop.f32.mrf.mxu0
        %v3444 = vadd.f32 %v1278, %v3443
        %3445 = vmatprep.mubr.bf16.mxu0 %v924
        %3446 = vmatmul.mubr.bf16.gmra.mxu0 %v923
        %v3447 = vpop.f32.mrf.mxu0
        %v3448 = vadd.f32 %v1274, %v3447
        %v3449 = vpop.f32.mrf.mxu0
        %v3450 = vadd.f32 %v1278, %v3449
        %v3451 = vpop.f32.mrf.mxu0
        %v3452 = vadd.f32 %v1274, %v3451
        %v3453 = vpop.f32.mrf.mxu0
        %v3454 = vadd.f32 %v1278, %v3453
        %3455 = vmatprep.mubr.bf16.mxu0 %v930
        %3456 = vmatmul.mubr.bf16.gmra.mxu0 %v929
        %v3457 = vpop.f32.mrf.mxu0
        %v3458 = vadd.f32 %v1274, %v3457
        %v3459 = vpop.f32.mrf.mxu0
        %v3460 = vadd.f32 %v1278, %v3459
        %v3461 = vpop.f32.mrf.mxu0
        %v3462 = vadd.f32 %v1274, %v3461
        %v3463 = vpop.f32.mrf.mxu0
        %v3464 = vadd.f32 %v1278, %v3463
        %3465 = vmatprep.mubr.bf16.mxu0 %v936
        %3466 = vmatmul.mubr.bf16.gmra.mxu0 %v935
        %v3467 = vpop.f32.mrf.mxu0
        %v3468 = vadd.f32 %v1274, %v3467
        %v3469 = vpop.f32.mrf.mxu0
        %v3470 = vadd.f32 %v1278, %v3469
        %v3471 = vpop.f32.mrf.mxu0
        %v3472 = vadd.f32 %v1274, %v3471
        %v3473 = vpop.f32.mrf.mxu0
        %v3474 = vadd.f32 %v1278, %v3473
        %3475 = vmatprep.mubr.bf16.mxu0 %v942
        %3476 = vmatmul.mubr.bf16.gmra.mxu0 %v941
        %v3477 = vpop.f32.mrf.mxu0
        %v3478 = vadd.f32 %v1274, %v3477
        %v3479 = vpop.f32.mrf.mxu0
        %v3480 = vadd.f32 %v1278, %v3479
        %v3481 = vpop.f32.mrf.mxu0
        %v3482 = vadd.f32 %v1274, %v3481
        %v3483 = vpop.f32.mrf.mxu0
        %v3484 = vadd.f32 %v1278, %v3483
        %3485 = vmatprep.mubr.bf16.mxu0 %v948
        %3486 = vmatmul.mubr.bf16.gmra.mxu0 %v947
        %v3487 = vpop.f32.mrf.mxu0
        %v3488 = vadd.f32 %v1274, %v3487
        %v3489 = vpop.f32.mrf.mxu0
        %v3490 = vadd.f32 %v1278, %v3489
        %v3491 = vpop.f32.mrf.mxu0
        %v3492 = vadd.f32 %v1274, %v3491
        %v3493 = vpop.f32.mrf.mxu0
        %v3494 = vadd.f32 %v1278, %v3493
        %3495 = vmatprep.mubr.bf16.mxu0 %v954
        %3496 = vmatmul.mubr.bf16.gmra.mxu0 %v953
        %v3497 = vpop.f32.mrf.mxu0
        %v3498 = vadd.f32 %v1274, %v3497
        %v3499 = vpop.f32.mrf.mxu0
        %v3500 = vadd.f32 %v1278, %v3499
        %v3501 = vpop.f32.mrf.mxu0
        %v3502 = vadd.f32 %v1274, %v3501
        %v3503 = vpop.f32.mrf.mxu0
        %v3504 = vadd.f32 %v1278, %v3503
        %3505 = vmatprep.mubr.bf16.mxu0 %v960
        %3506 = vmatmul.mubr.bf16.gmra.mxu0 %v959
        %v3507 = vpop.f32.mrf.mxu0
        %v3508 = vadd.f32 %v1274, %v3507
        %v3509 = vpop.f32.mrf.mxu0
        %v3510 = vadd.f32 %v1278, %v3509
        %v3511 = vpop.f32.mrf.mxu0
        %v3512 = vadd.f32 %v1274, %v3511
        %v3513 = vpop.f32.mrf.mxu0
        %v3514 = vadd.f32 %v1278, %v3513
        %3515 = vdwg.mxu0
        %3516 = vmatprep.subr.bf16.mxu0 %v2292
        %3517 = vmatpush1.bf16.msra.mxu0 %v2291
        %3518 = vmatprep.subr.bf16.mxu0 %v2286
        %3519 = vmatpush1.bf16.msra.mxu0 %v2285
        %3520 = vmatprep.subr.bf16.mxu0 %v2280
        %3521 = vmatpush1.bf16.msra.mxu0 %v2279
        %3522 = vmatprep.subr.bf16.mxu0 %v2274
        %3523 = vmatpush1.bf16.msra.mxu0 %v2273
        %3524 = vmatprep.subr.bf16.mxu0 %v2268
        %3525 = vmatpush1.bf16.msra.mxu0 %v2267
        %3526 = vmatprep.subr.bf16.mxu0 %v2262
        %3527 = vmatpush1.bf16.msra.mxu0 %v2261
        %3528 = vmatprep.subr.bf16.mxu0 %v2256
        %3529 = vmatpush1.bf16.msra.mxu0 %v2255
        %3530 = vmatprep.subr.bf16.mxu0 %v2250
        %3531 = vmatpush1.bf16.msra.mxu0 %v2249
        %3532 = vmatprep.subr.bf16.mxu0 %v2340
        %3533 = vmatpush2.bf16.msra.mxu0 %v2339
        %3534 = vmatprep.subr.bf16.mxu0 %v2334
        %3535 = vmatpush2.bf16.msra.mxu0 %v2333
        %3536 = vmatprep.subr.bf16.mxu0 %v2328
        %3537 = vmatpush2.bf16.msra.mxu0 %v2327
        %3538 = vmatprep.subr.bf16.mxu0 %v2322
        %3539 = vmatpush2.bf16.msra.mxu0 %v2321
        %3540 = vmatprep.subr.bf16.mxu0 %v2316
        %3541 = vmatpush2.bf16.msra.mxu0 %v2315
        %3542 = vmatprep.subr.bf16.mxu0 %v2310
        %3543 = vmatpush2.bf16.msra.mxu0 %v2309
        %3544 = vmatprep.subr.bf16.mxu0 %v2304
        %3545 = vmatpush2.bf16.msra.mxu0 %v2303
        %3546 = vmatprep.subr.bf16.mxu0 %v2298
        %3547 = vmatpush2.bf16.msra.mxu0 %v2297
        %3548 = vmatprep.mubr.bf16.mxu0 %v920
        %3549 = vmatmul.mubr.bf16.gmra.mxu0 %v919
        %v3550 = vpop.f32.mrf.mxu0
        %v3551 = vadd.f32 %v3438, %v3550
        %v3552 = vpop.f32.mrf.mxu0
        %v3553 = vadd.f32 %v3440, %v3552
        %v3554 = vpop.f32.mrf.mxu0
        %v3555 = vadd.f32 %v3442, %v3554
        %v3556 = vpop.f32.mrf.mxu0
        %v3557 = vadd.f32 %v3444, %v3556
        %3558 = vmatprep.mubr.bf16.mxu0 %v926
        %3559 = vmatmul.mubr.bf16.gmra.mxu0 %v925
        %v3560 = vpop.f32.mrf.mxu0
        %v3561 = vadd.f32 %v3448, %v3560
        %v3562 = vpop.f32.mrf.mxu0
        %v3563 = vadd.f32 %v3450, %v3562
        %v3564 = vpop.f32.mrf.mxu0
        %v3565 = vadd.f32 %v3452, %v3564
        %v3566 = vpop.f32.mrf.mxu0
        %v3567 = vadd.f32 %v3454, %v3566
        %3568 = vmatprep.mubr.bf16.mxu0 %v932
        %3569 = vmatmul.mubr.bf16.gmra.mxu0 %v931
        %v3570 = vpop.f32.mrf.mxu0
        %v3571 = vadd.f32 %v3458, %v3570
        %v3572 = vpop.f32.mrf.mxu0
        %v3573 = vadd.f32 %v3460, %v3572
        %v3574 = vpop.f32.mrf.mxu0
        %v3575 = vadd.f32 %v3462, %v3574
        %v3576 = vpop.f32.mrf.mxu0
        %v3577 = vadd.f32 %v3464, %v3576
        %3578 = vmatprep.mubr.bf16.mxu0 %v938
        %3579 = vmatmul.mubr.bf16.gmra.mxu0 %v937
        %v3580 = vpop.f32.mrf.mxu0
        %v3581 = vadd.f32 %v3468, %v3580
        %v3582 = vpop.f32.mrf.mxu0
        %v3583 = vadd.f32 %v3470, %v3582
        %v3584 = vpop.f32.mrf.mxu0
        %v3585 = vadd.f32 %v3472, %v3584
        %v3586 = vpop.f32.mrf.mxu0
        %v3587 = vadd.f32 %v3474, %v3586
        %3588 = vmatprep.mubr.bf16.mxu0 %v944
        %3589 = vmatmul.mubr.bf16.gmra.mxu0 %v943
        %v3590 = vpop.f32.mrf.mxu0
        %v3591 = vadd.f32 %v3478, %v3590
        %v3592 = vpop.f32.mrf.mxu0
        %v3593 = vadd.f32 %v3480, %v3592
        %v3594 = vpop.f32.mrf.mxu0
        %v3595 = vadd.f32 %v3482, %v3594
        %v3596 = vpop.f32.mrf.mxu0
        %v3597 = vadd.f32 %v3484, %v3596
        %3598 = vmatprep.mubr.bf16.mxu0 %v950
        %3599 = vmatmul.mubr.bf16.gmra.mxu0 %v949
        %v3600 = vpop.f32.mrf.mxu0
        %v3601 = vadd.f32 %v3488, %v3600
        %v3602 = vpop.f32.mrf.mxu0
        %v3603 = vadd.f32 %v3490, %v3602
        %v3604 = vpop.f32.mrf.mxu0
        %v3605 = vadd.f32 %v3492, %v3604
        %v3606 = vpop.f32.mrf.mxu0
        %v3607 = vadd.f32 %v3494, %v3606
        %3608 = vmatprep.mubr.bf16.mxu0 %v956
        %3609 = vmatmul.mubr.bf16.gmra.mxu0 %v955
        %v3610 = vpop.f32.mrf.mxu0
        %v3611 = vadd.f32 %v3498, %v3610
        %v3612 = vpop.f32.mrf.mxu0
        %v3613 = vadd.f32 %v3500, %v3612
        %v3614 = vpop.f32.mrf.mxu0
        %v3615 = vadd.f32 %v3502, %v3614
        %v3616 = vpop.f32.mrf.mxu0
        %v3617 = vadd.f32 %v3504, %v3616
        %3618 = vmatprep.mubr.bf16.mxu0 %v962
        %3619 = vmatmul.mubr.bf16.gmra.mxu0 %v961
        %v3620 = vpop.f32.mrf.mxu0
        %v3621 = vadd.f32 %v3508, %v3620
        %v3622 = vpop.f32.mrf.mxu0
        %v3623 = vadd.f32 %v3510, %v3622
        %v3624 = vpop.f32.mrf.mxu0
        %v3625 = vadd.f32 %v3512, %v3624
        %v3626 = vpop.f32.mrf.mxu0
        %v3627 = vadd.f32 %v3514, %v3626
        %3628 = vdwg.mxu0
        %3629 = vmatprep.subr.bf16.mxu0 %v2388
        %3630 = vmatpush1.bf16.msra.mxu0 %v2387
        %3631 = vmatprep.subr.bf16.mxu0 %v2382
        %3632 = vmatpush1.bf16.msra.mxu0 %v2381
        %3633 = vmatprep.subr.bf16.mxu0 %v2376
        %3634 = vmatpush1.bf16.msra.mxu0 %v2375
        %3635 = vmatprep.subr.bf16.mxu0 %v2370
        %3636 = vmatpush1.bf16.msra.mxu0 %v2369
        %3637 = vmatprep.subr.bf16.mxu0 %v2364
        %3638 = vmatpush1.bf16.msra.mxu0 %v2363
        %3639 = vmatprep.subr.bf16.mxu0 %v2358
        %3640 = vmatpush1.bf16.msra.mxu0 %v2357
        %3641 = vmatprep.subr.bf16.mxu0 %v2352
        %3642 = vmatpush1.bf16.msra.mxu0 %v2351
        %3643 = vmatprep.subr.bf16.mxu0 %v2346
        %3644 = vmatpush1.bf16.msra.mxu0 %v2345
        %3645 = vmatprep.subr.bf16.mxu0 %v2436
        %3646 = vmatpush2.bf16.msra.mxu0 %v2435
        %3647 = vmatprep.subr.bf16.mxu0 %v2430
        %3648 = vmatpush2.bf16.msra.mxu0 %v2429
        %3649 = vmatprep.subr.bf16.mxu0 %v2424
        %3650 = vmatpush2.bf16.msra.mxu0 %v2423
        %3651 = vmatprep.subr.bf16.mxu0 %v2418
        %3652 = vmatpush2.bf16.msra.mxu0 %v2417
        %3653 = vmatprep.subr.bf16.mxu0 %v2412
        %3654 = vmatpush2.bf16.msra.mxu0 %v2411
        %3655 = vmatprep.subr.bf16.mxu0 %v2406
        %3656 = vmatpush2.bf16.msra.mxu0 %v2405
        %3657 = vmatprep.subr.bf16.mxu0 %v2400
        %3658 = vmatpush2.bf16.msra.mxu0 %v2399
        %3659 = vmatprep.subr.bf16.mxu0 %v2394
        %3660 = vmatpush2.bf16.msra.mxu0 %v2393
        %3661 = vmatprep.mubr.bf16.mxu0 %v922
        %3662 = vmatmul.mubr.bf16.gmra.mxu0 %v921
        %v3663 = vpop.f32.mrf.mxu0
        %v3664 = vadd.f32 %v3551, %v3663
        %v3665 = vpop.f32.mrf.mxu0
        %v3666 = vadd.f32 %v3553, %v3665
        %v3667 = vpop.f32.mrf.mxu0
        %v3668 = vadd.f32 %v3555, %v3667
        %v3669 = vpop.f32.mrf.mxu0
        %v3670 = vadd.f32 %v3557, %v3669
        %3671 = vmatprep.mubr.bf16.mxu0 %v928
        %3672 = vmatmul.mubr.bf16.gmra.mxu0 %v927
        %v3673 = vpop.f32.mrf.mxu0
        %v3674 = vadd.f32 %v3561, %v3673
        %v3675 = vpop.f32.mrf.mxu0
        %v3676 = vadd.f32 %v3563, %v3675
        %v3677 = vpop.f32.mrf.mxu0
        %v3678 = vadd.f32 %v3565, %v3677
        %v3679 = vpop.f32.mrf.mxu0
        %v3680 = vadd.f32 %v3567, %v3679
        %3681 = vmatprep.mubr.bf16.mxu0 %v934
        %3682 = vmatmul.mubr.bf16.gmra.mxu0 %v933
        %v3683 = vpop.f32.mrf.mxu0
        %v3684 = vadd.f32 %v3571, %v3683
        %v3685 = vpop.f32.mrf.mxu0
        %v3686 = vadd.f32 %v3573, %v3685
        %v3687 = vpop.f32.mrf.mxu0
        %v3688 = vadd.f32 %v3575, %v3687
        %v3689 = vpop.f32.mrf.mxu0
        %v3690 = vadd.f32 %v3577, %v3689
        %3691 = vmatprep.mubr.bf16.mxu0 %v940
        %3692 = vmatmul.mubr.bf16.gmra.mxu0 %v939
        %v3693 = vpop.f32.mrf.mxu0
        %v3694 = vadd.f32 %v3581, %v3693
        %v3695 = vpop.f32.mrf.mxu0
        %v3696 = vadd.f32 %v3583, %v3695
        %v3697 = vpop.f32.mrf.mxu0
        %v3698 = vadd.f32 %v3585, %v3697
        %v3699 = vpop.f32.mrf.mxu0
        %v3700 = vadd.f32 %v3587, %v3699
        %3701 = vmatprep.mubr.bf16.mxu0 %v946
        %3702 = vmatmul.mubr.bf16.gmra.mxu0 %v945
        %v3703 = vpop.f32.mrf.mxu0
        %v3704 = vadd.f32 %v3591, %v3703
        %v3705 = vpop.f32.mrf.mxu0
        %v3706 = vadd.f32 %v3593, %v3705
        %v3707 = vpop.f32.mrf.mxu0
        %v3708 = vadd.f32 %v3595, %v3707
        %v3709 = vpop.f32.mrf.mxu0
        %v3710 = vadd.f32 %v3597, %v3709
        %3711 = vmatprep.mubr.bf16.mxu0 %v952
        %3712 = vmatmul.mubr.bf16.gmra.mxu0 %v951
        %v3713 = vpop.f32.mrf.mxu0
        %v3714 = vadd.f32 %v3601, %v3713
        %v3715 = vpop.f32.mrf.mxu0
        %v3716 = vadd.f32 %v3603, %v3715
        %v3717 = vpop.f32.mrf.mxu0
        %v3718 = vadd.f32 %v3605, %v3717
        %v3719 = vpop.f32.mrf.mxu0
        %v3720 = vadd.f32 %v3607, %v3719
        %3721 = vmatprep.mubr.bf16.mxu0 %v958
        %3722 = vmatmul.mubr.bf16.gmra.mxu0 %v957
        %v3723 = vpop.f32.mrf.mxu0
        %v3724 = vadd.f32 %v3611, %v3723
        %v3725 = vpop.f32.mrf.mxu0
        %v3726 = vadd.f32 %v3613, %v3725
        %v3727 = vpop.f32.mrf.mxu0
        %v3728 = vadd.f32 %v3615, %v3727
        %v3729 = vpop.f32.mrf.mxu0
        %v3730 = vadd.f32 %v3617, %v3729
        %3731 = vmatprep.mubr.bf16.mxu0 %v964
        %3732 = vmatmul.mubr.bf16.gmra.mxu0 %v963
        %v3733 = vpop.f32.mrf.mxu0
        %v3734 = vadd.f32 %v3621, %v3733
        %v3735 = vpop.f32.mrf.mxu0
        %v3736 = vadd.f32 %v3623, %v3735
        %v3737 = vpop.f32.mrf.mxu0
        %v3738 = vadd.f32 %v3625, %v3737
        %v3739 = vpop.f32.mrf.mxu0
        %v3740 = vadd.f32 %v3627, %v3739
        %3741 = vdwg.mxu0
        %v3742 = vtanh.pop %v2986
        %v3743 = vtanh.pop %v2988
        %v3744 = vtanh.pop %v3325
        %v3745 = vtanh.pop %v3327
        %v3746 = vtanh.pop %v3664
        %v3747 = vtanh.pop %v3666
        %v3748 = vtanh.pop %v2990
        %v3749 = vtanh.pop %v2992
        %v3750 = vtanh.pop %v3329
        %v3751 = vtanh.pop %v3331
        %v3752 = vtanh.pop %v3668
        %v3753 = vtanh.pop %v3670
        %v3754 = vtanh.pop %v2996
        %v3755 = vtanh.pop %v2998
        %v3756 = vtanh.pop %v3335
        %v3757 = vtanh.pop %v3337
        %v3758 = vtanh.pop %v3674
        %v3759 = vtanh.pop %v3676
        %v3760 = vtanh.pop %v3000
        %v3761 = vtanh.pop %v3002
        %v3762 = vtanh.pop %v3339
        %v3763 = vtanh.pop %v3341
        %v3764 = vtanh.pop %v3678
        %v3765 = vtanh.pop %v3680
        %v3766 = vtanh.pop %v3006
        %v3767 = vtanh.pop %v3008
        %v3768 = vtanh.pop %v3345
        %v3769 = vtanh.pop %v3347
        %v3770 = vtanh.pop %v3684
        %v3771 = vtanh.pop %v3686
        %v3772 = vtanh.pop %v3010
        %v3773 = vtanh.pop %v3012
        %v3774 = vtanh.pop %v3349
        %v3775 = vtanh.pop %v3351
        %v3776 = vtanh.pop %v3688
        %v3777 = vtanh.pop %v3690
        %v3778 = vtanh.pop %v3016
        %v3779 = vtanh.pop %v3018
        %v3780 = vtanh.pop %v3355
        %v3781 = vtanh.pop %v3357
        %v3782 = vtanh.pop %v3694
        %v3783 = vtanh.pop %v3696
        %v3784 = vtanh.pop %v3020
        %v3785 = vtanh.pop %v3022
        %v3786 = vtanh.pop %v3359
        %v3787 = vtanh.pop %v3361
        %v3788 = vtanh.pop %v3698
        %v3789 = vtanh.pop %v3700
        %v3790 = vtanh.pop %v3026
        %v3791 = vtanh.pop %v3028
        %v3792 = vtanh.pop %v3365
        %v3793 = vtanh.pop %v3367
        %v3794 = vtanh.pop %v3704
        %v3795 = vtanh.pop %v3706
        %v3796 = vtanh.pop %v3030
        %v3797 = vtanh.pop %v3032
        %v3798 = vtanh.pop %v3369
        %v3799 = vtanh.pop %v3371
        %v3800 = vtanh.pop %v3708
        %v3801 = vtanh.pop %v3710
        %v3802 = vtanh.pop %v3036
        %v3803 = vtanh.pop %v3038
        %v3804 = vtanh.pop %v3375
        %v3805 = vtanh.pop %v3377
        %v3806 = vtanh.pop %v3714
        %v3807 = vtanh.pop %v3716
        %v3808 = vtanh.pop %v3040
        %v3809 = vtanh.pop %v3042
        %v3810 = vtanh.pop %v3379
        %v3811 = vtanh.pop %v3381
        %v3812 = vtanh.pop %v3718
        %v3813 = vtanh.pop %v3720
        %v3814 = vtanh.pop %v3046
        %v3815 = vtanh.pop %v3048
        %v3816 = vtanh.pop %v3385
        %v3817 = vtanh.pop %v3387
        %v3818 = vtanh.pop %v3724
        %v3819 = vtanh.pop %v3726
        %v3820 = vtanh.pop %v3050
        %v3821 = vtanh.pop %v3052
        %v3822 = vtanh.pop %v3389
        %v3823 = vtanh.pop %v3391
        %v3824 = vtanh.pop %v3728
        %v3825 = vtanh.pop %v3730
        %v3826 = vtanh.pop %v3056
        %v3827 = vtanh.pop %v3058
        %v3828 = vtanh.pop %v3395
        %v3829 = vtanh.pop %v3397
        %v3830 = vtanh.pop %v3734
        %v3831 = vtanh.pop %v3736
        %v3832 = vtanh.pop %v3060
        %v3833 = vtanh.pop %v3062
        %v3834 = vtanh.pop %v3399
        %v3835 = vtanh.pop %v3401
        %v3836 = vtanh.pop %v3738
        %v3837 = vtanh.pop %v3740
        %v3838 = vpack.c.bf16 %v3748, %v3742
        %v3839 = vpack.c.bf16 %v3749, %v3743
        %v3840 = vpack.c.bf16 %v3750, %v3744
        %v3841 = vpack.c.bf16 %v3751, %v3745
        %v3842 = vpack.c.bf16 %v3752, %v3746
        %v3843 = vpack.c.bf16 %v3753, %v3747
        %v3844 = vpack.c.bf16 %v3760, %v3754
        %v3845 = vpack.c.bf16 %v3761, %v3755
        %v3846 = vpack.c.bf16 %v3762, %v3756
        %v3847 = vpack.c.bf16 %v3763, %v3757
        %v3848 = vpack.c.bf16 %v3764, %v3758
        %v3849 = vpack.c.bf16 %v3765, %v3759
        %v3850 = vpack.c.bf16 %v3772, %v3766
        %v3851 = vpack.c.bf16 %v3773, %v3767
        %v3852 = vpack.c.bf16 %v3774, %v3768
        %v3853 = vpack.c.bf16 %v3775, %v3769
        %v3854 = vpack.c.bf16 %v3776, %v3770
        %v3855 = vpack.c.bf16 %v3777, %v3771
        %v3856 = vpack.c.bf16 %v3784, %v3778
        %v3857 = vpack.c.bf16 %v3785, %v3779
        %v3858 = vpack.c.bf16 %v3786, %v3780
        %v3859 = vpack.c.bf16 %v3787, %v3781
        %v3860 = vpack.c.bf16 %v3788, %v3782
        %v3861 = vpack.c.bf16 %v3789, %v3783
        %v3862 = vpack.c.bf16 %v3796, %v3790
        %v3863 = vpack.c.bf16 %v3797, %v3791
        %v3864 = vpack.c.bf16 %v3798, %v3792
        %v3865 = vpack.c.bf16 %v3799, %v3793
        %v3866 = vpack.c.bf16 %v3800, %v3794
        %v3867 = vpack.c.bf16 %v3801, %v3795
        %v3868 = vpack.c.bf16 %v3808, %v3802
        %v3869 = vpack.c.bf16 %v3809, %v3803
        %v3870 = vpack.c.bf16 %v3810, %v3804
        %v3871 = vpack.c.bf16 %v3811, %v3805
        %v3872 = vpack.c.bf16 %v3812, %v3806
        %v3873 = vpack.c.bf16 %v3813, %v3807
        %v3874 = vpack.c.bf16 %v3820, %v3814
        %v3875 = vpack.c.bf16 %v3821, %v3815
        %v3876 = vpack.c.bf16 %v3822, %v3816
        %v3877 = vpack.c.bf16 %v3823, %v3817
        %v3878 = vpack.c.bf16 %v3824, %v3818
        %v3879 = vpack.c.bf16 %v3825, %v3819
        %v3880 = vpack.c.bf16 %v3832, %v3826
        %v3881 = vpack.c.bf16 %v3833, %v3827
        %v3882 = vpack.c.bf16 %v3834, %v3828
        %v3883 = vpack.c.bf16 %v3835, %v3829
        %v3884 = vpack.c.bf16 %v3836, %v3830
        %v3885 = vpack.c.bf16 %v3837, %v3831
        %v3886 = vld [vmem:[#allocation9] sm:$0xf]
        %v3887 = vld [vmem:[#allocation9 + $0x4] sm:$0xf]
        %v3888 = vld [vmem:[#allocation9 + $0x8] sm:$0xf]
        %v3889 = vld [vmem:[#allocation9 + $0xc] sm:$0xf]
        %v3890 = vld [vmem:[#allocation9 + $0x10] sm:$0xf]
        %v3891 = vld [vmem:[#allocation9 + $0x14] sm:$0xf]
        %v3892 = vld [vmem:[#allocation9 + $0x18] sm:$0xf]
        %v3893 = vld [vmem:[#allocation9 + $0x1c] sm:$0xf]
        %v3894 = vld [vmem:[#allocation9 + $0x20] sm:$0xf]
        %v3895 = vld [vmem:[#allocation9 + $0x24] sm:$0xf]
        %v3896 = vld [vmem:[#allocation9 + $0x28] sm:$0xf]
        %v3897 = vld [vmem:[#allocation9 + $0x2c] sm:$0xf]
        %v3898 = vld [vmem:[#allocation9 + $0x30] sm:$0xf]
        %v3899 = vld [vmem:[#allocation9 + $0x34] sm:$0xf]
        %v3900 = vld [vmem:[#allocation9 + $0x38] sm:$0xf]
        %v3901 = vld [vmem:[#allocation9 + $0x3c] sm:$0xf]
        %v3902 = vld [vmem:[#allocation9 + $0x40] sm:$0xf]
        %v3903 = vld [vmem:[#allocation9 + $0x44] sm:$0xf]
        %v3904 = vld [vmem:[#allocation9 + $0x48] sm:$0xf]
        %v3905 = vld [vmem:[#allocation9 + $0x4c] sm:$0xf]
        %v3906 = vld [vmem:[#allocation9 + $0x50] sm:$0xf]
        %v3907 = vld [vmem:[#allocation9 + $0x54] sm:$0xf]
        %v3908 = vld [vmem:[#allocation9 + $0x58] sm:$0xf]
        %v3909 = vld [vmem:[#allocation9 + $0x5c] sm:$0xf]
        %v3910 = vld [vmem:[#allocation9 + $0x60] sm:$0xf]
        %v3911 = vld [vmem:[#allocation9 + $0x64] sm:$0xf]
        %v3912 = vld [vmem:[#allocation9 + $0x68] sm:$0xf]
        %v3913 = vld [vmem:[#allocation9 + $0x6c] sm:$0xf]
        %v3914 = vld [vmem:[#allocation9 + $0x70] sm:$0xf]
        %v3915 = vld [vmem:[#allocation9 + $0x74] sm:$0xf]
        %v3916 = vld [vmem:[#allocation9 + $0x78] sm:$0xf]
        %v3917 = vld [vmem:[#allocation9 + $0x7c] sm:$0xf]
        %v3918 = vld [vmem:[#allocation9 + $0x80] sm:$0xf]
        %v3919 = vld [vmem:[#allocation9 + $0x84] sm:$0xf]
        %v3920 = vld [vmem:[#allocation9 + $0x88] sm:$0xf]
        %v3921 = vld [vmem:[#allocation9 + $0x8c] sm:$0xf]
        %v3922 = vld [vmem:[#allocation9 + $0x90] sm:$0xf]
        %v3923 = vld [vmem:[#allocation9 + $0x94] sm:$0xf]
        %v3924 = vld [vmem:[#allocation9 + $0x98] sm:$0xf]
        %v3925 = vld [vmem:[#allocation9 + $0x9c] sm:$0xf]
        %v3926 = vld [vmem:[#allocation9 + $0xa0] sm:$0xf]
        %v3927 = vld [vmem:[#allocation9 + $0xa4] sm:$0xf]
        %v3928 = vld [vmem:[#allocation9 + $0xa8] sm:$0xf]
        %v3929 = vld [vmem:[#allocation9 + $0xac] sm:$0xf]
        %v3930 = vld [vmem:[#allocation9 + $0xb0] sm:$0xf]
        %v3931 = vld [vmem:[#allocation9 + $0xb4] sm:$0xf]
        %v3932 = vld [vmem:[#allocation9 + $0xb8] sm:$0xf]
        %v3933 = vld [vmem:[#allocation9 + $0xbc] sm:$0xf]
        %v3934 = vld [vmem:[#allocation9 + $0xc0] sm:$0xf]
        %v3935 = vld [vmem:[#allocation9 + $0xc4] sm:$0xf]
        %v3936 = vld [vmem:[#allocation9 + $0xc8] sm:$0xf]
        %v3937 = vld [vmem:[#allocation9 + $0xcc] sm:$0xf]
        %v3938 = vld [vmem:[#allocation9 + $0xd0] sm:$0xf]
        %v3939 = vld [vmem:[#allocation9 + $0xd4] sm:$0xf]
        %v3940 = vld [vmem:[#allocation9 + $0xd8] sm:$0xf]
        %v3941 = vld [vmem:[#allocation9 + $0xdc] sm:$0xf]
        %v3942 = vld [vmem:[#allocation9 + $0xe0] sm:$0xf]
        %v3943 = vld [vmem:[#allocation9 + $0xe4] sm:$0xf]
        %v3944 = vld [vmem:[#allocation9 + $0xe8] sm:$0xf]
        %v3945 = vld [vmem:[#allocation9 + $0xec] sm:$0xf]
        %v3946 = vld [vmem:[#allocation9 + $0xf0] sm:$0xf]
        %v3947 = vld [vmem:[#allocation9 + $0xf4] sm:$0xf]
        %v3948 = vld [vmem:[#allocation9 + $0xf8] sm:$0xf]
        %v3949 = vld [vmem:[#allocation9 + $0xfc] sm:$0xf]
        %v3950 = vld [vmem:[#allocation9 + $0x100] sm:$0xf]
        %v3951 = vld [vmem:[#allocation9 + $0x104] sm:$0xf]
        %v3952 = vld [vmem:[#allocation9 + $0x108] sm:$0xf]
        %v3953 = vld [vmem:[#allocation9 + $0x10c] sm:$0xf]
        %v3954 = vld [vmem:[#allocation9 + $0x110] sm:$0xf]
        %v3955 = vld [vmem:[#allocation9 + $0x114] sm:$0xf]
        %v3956 = vld [vmem:[#allocation9 + $0x118] sm:$0xf]
        %v3957 = vld [vmem:[#allocation9 + $0x11c] sm:$0xf]
        %v3958 = vld [vmem:[#allocation9 + $0x120] sm:$0xf]
        %v3959 = vld [vmem:[#allocation9 + $0x124] sm:$0xf]
        %v3960 = vld [vmem:[#allocation9 + $0x128] sm:$0xf]
        %v3961 = vld [vmem:[#allocation9 + $0x12c] sm:$0xf]
        %v3962 = vld [vmem:[#allocation9 + $0x130] sm:$0xf]
        %v3963 = vld [vmem:[#allocation9 + $0x134] sm:$0xf]
        %v3964 = vld [vmem:[#allocation9 + $0x138] sm:$0xf]
        %v3965 = vld [vmem:[#allocation9 + $0x13c] sm:$0xf]
        %v3966 = vld [vmem:[#allocation9 + $0x140] sm:$0xf]
        %v3967 = vld [vmem:[#allocation9 + $0x144] sm:$0xf]
        %v3968 = vld [vmem:[#allocation9 + $0x148] sm:$0xf]
        %v3969 = vld [vmem:[#allocation9 + $0x14c] sm:$0xf]
        %v3970 = vld [vmem:[#allocation9 + $0x150] sm:$0xf]
        %v3971 = vld [vmem:[#allocation9 + $0x154] sm:$0xf]
        %v3972 = vld [vmem:[#allocation9 + $0x158] sm:$0xf]
        %v3973 = vld [vmem:[#allocation9 + $0x15c] sm:$0xf]
        %v3974 = vld [vmem:[#allocation9 + $0x160] sm:$0xf]
        %v3975 = vld [vmem:[#allocation9 + $0x164] sm:$0xf]
        %v3976 = vld [vmem:[#allocation9 + $0x168] sm:$0xf]
        %v3977 = vld [vmem:[#allocation9 + $0x16c] sm:$0xf]
        %v3978 = vld [vmem:[#allocation9 + $0x170] sm:$0xf]
        %v3979 = vld [vmem:[#allocation9 + $0x174] sm:$0xf]
        %v3980 = vld [vmem:[#allocation9 + $0x178] sm:$0xf]
        %v3981 = vld [vmem:[#allocation9 + $0x17c] sm:$0xf]
        %v3982 = vld [vmem:[#allocation10] sm:$0x1]
        %v3984 = vlaneseq
        %v3985 = vshrl.u32 %v3984, 7
        %v3986 = vsub.s32 0, %v3985
        %v3987 = vrot.slane %v3982, %v3986
        %v4085 = vunpack.c.l.b16 %v3886
        %v4086 = vunpack.c.l.b16 %v3887
        %v4087 = vunpack.c.l.b16 %v3888
        %v4088 = vunpack.c.l.b16 %v3889
        %v4089 = vunpack.c.l.b16 %v3890
        %v4090 = vunpack.c.l.b16 %v3891
        %v4091 = vunpack.c.l.b16 %v3892
        %v4092 = vunpack.c.l.b16 %v3893
        %v4093 = vunpack.c.l.b16 %v3894
        %v4094 = vunpack.c.l.b16 %v3895
        %v4095 = vunpack.c.l.b16 %v3896
        %v4096 = vunpack.c.l.b16 %v3897
        %v4097 = vunpack.c.l.b16 %v3898
        %v4098 = vunpack.c.l.b16 %v3899
        %v4099 = vunpack.c.l.b16 %v3900
        %v4100 = vunpack.c.l.b16 %v3901
        %v4101 = vunpack.c.l.b16 %v3902
        %v4102 = vunpack.c.l.b16 %v3903
        %v4103 = vunpack.c.l.b16 %v3904
        %v4104 = vunpack.c.l.b16 %v3905
        %v4105 = vunpack.c.l.b16 %v3906
        %v4106 = vunpack.c.l.b16 %v3907
        %v4107 = vunpack.c.l.b16 %v3908
        %v4108 = vunpack.c.l.b16 %v3909
        %v4109 = vunpack.c.l.b16 %v3910
        %v4110 = vunpack.c.l.b16 %v3911
        %v4111 = vunpack.c.l.b16 %v3912
        %v4112 = vunpack.c.l.b16 %v3913
        %v4113 = vunpack.c.l.b16 %v3914
        %v4114 = vunpack.c.l.b16 %v3915
        %v4115 = vunpack.c.l.b16 %v3916
        %v4116 = vunpack.c.l.b16 %v3917
        %v4117 = vunpack.c.l.b16 %v3918
        %v4118 = vunpack.c.l.b16 %v3919
        %v4119 = vunpack.c.l.b16 %v3920
        %v4120 = vunpack.c.l.b16 %v3921
        %v4121 = vunpack.c.l.b16 %v3922
        %v4122 = vunpack.c.l.b16 %v3923
        %v4123 = vunpack.c.l.b16 %v3924
        %v4124 = vunpack.c.l.b16 %v3925
        %v4125 = vunpack.c.l.b16 %v3926
        %v4126 = vunpack.c.l.b16 %v3927
        %v4127 = vunpack.c.l.b16 %v3928
        %v4128 = vunpack.c.l.b16 %v3929
        %v4129 = vunpack.c.l.b16 %v3930
        %v4130 = vunpack.c.l.b16 %v3931
        %v4131 = vunpack.c.l.b16 %v3932
        %v4132 = vunpack.c.l.b16 %v3933
        %v4133 = vunpack.c.l.b16 %v3934
        %v4134 = vunpack.c.l.b16 %v3935
        %v4135 = vunpack.c.l.b16 %v3936
        %v4136 = vunpack.c.l.b16 %v3937
        %v4137 = vunpack.c.l.b16 %v3938
        %v4138 = vunpack.c.l.b16 %v3939
        %v4139 = vunpack.c.l.b16 %v3940
        %v4140 = vunpack.c.l.b16 %v3941
        %v4141 = vunpack.c.l.b16 %v3942
        %v4142 = vunpack.c.l.b16 %v3943
        %v4143 = vunpack.c.l.b16 %v3944
        %v4144 = vunpack.c.l.b16 %v3945
        %v4145 = vunpack.c.l.b16 %v3946
        %v4146 = vunpack.c.l.b16 %v3947
        %v4147 = vunpack.c.l.b16 %v3948
        %v4148 = vunpack.c.l.b16 %v3949
        %v4149 = vunpack.c.l.b16 %v3950
        %v4150 = vunpack.c.l.b16 %v3951
        %v4151 = vunpack.c.l.b16 %v3952
        %v4152 = vunpack.c.l.b16 %v3953
        %v4153 = vunpack.c.l.b16 %v3954
        %v4154 = vunpack.c.l.b16 %v3955
        %v4155 = vunpack.c.l.b16 %v3956
        %v4156 = vunpack.c.l.b16 %v3957
        %v4157 = vunpack.c.l.b16 %v3958
        %v4158 = vunpack.c.l.b16 %v3959
        %v4159 = vunpack.c.l.b16 %v3960
        %v4160 = vunpack.c.l.b16 %v3961
        %v4161 = vunpack.c.l.b16 %v3962
        %v4162 = vunpack.c.l.b16 %v3963
        %v4163 = vunpack.c.l.b16 %v3964
        %v4164 = vunpack.c.l.b16 %v3965
        %v4165 = vunpack.c.l.b16 %v3966
        %v4166 = vunpack.c.l.b16 %v3967
        %v4167 = vunpack.c.l.b16 %v3968
        %v4168 = vunpack.c.l.b16 %v3969
        %v4169 = vunpack.c.l.b16 %v3970
        %v4170 = vunpack.c.l.b16 %v3971
        %v4171 = vunpack.c.l.b16 %v3972
        %v4172 = vunpack.c.l.b16 %v3973
        %v4173 = vunpack.c.l.b16 %v3974
        %v4174 = vunpack.c.l.b16 %v3975
        %v4175 = vunpack.c.l.b16 %v3976
        %v4176 = vunpack.c.l.b16 %v3977
        %v4177 = vunpack.c.l.b16 %v3978
        %v4178 = vunpack.c.l.b16 %v3979
        %v4179 = vunpack.c.l.b16 %v3980
        %v4180 = vunpack.c.l.b16 %v3981
        %v4181 = vpack.c.b16 %v4086, %v4085
        %v4182 = vpack.c.b16 %v4088, %v4087
        %v4183 = vpack.c.b16 %v4090, %v4089
        %v4184 = vpack.c.b16 %v4092, %v4091
        %v4185 = vpack.c.b16 %v4094, %v4093
        %v4186 = vpack.c.b16 %v4096, %v4095
        %v4187 = vpack.c.b16 %v4098, %v4097
        %v4188 = vpack.c.b16 %v4100, %v4099
        %v4189 = vpack.c.b16 %v4102, %v4101
        %v4190 = vpack.c.b16 %v4104, %v4103
        %v4191 = vpack.c.b16 %v4106, %v4105
        %v4192 = vpack.c.b16 %v4108, %v4107
        %v4193 = vpack.c.b16 %v4110, %v4109
        %v4194 = vpack.c.b16 %v4112, %v4111
        %v4195 = vpack.c.b16 %v4114, %v4113
        %v4196 = vpack.c.b16 %v4116, %v4115
        %v4197 = vpack.c.b16 %v4118, %v4117
        %v4198 = vpack.c.b16 %v4120, %v4119
        %v4199 = vpack.c.b16 %v4122, %v4121
        %v4200 = vpack.c.b16 %v4124, %v4123
        %v4201 = vpack.c.b16 %v4126, %v4125
        %v4202 = vpack.c.b16 %v4128, %v4127
        %v4203 = vpack.c.b16 %v4130, %v4129
        %v4204 = vpack.c.b16 %v4132, %v4131
        %v4205 = vpack.c.b16 %v4134, %v4133
        %v4206 = vpack.c.b16 %v4136, %v4135
        %v4207 = vpack.c.b16 %v4138, %v4137
        %v4208 = vpack.c.b16 %v4140, %v4139
        %v4209 = vpack.c.b16 %v4142, %v4141
        %v4210 = vpack.c.b16 %v4144, %v4143
        %v4211 = vpack.c.b16 %v4146, %v4145
        %v4212 = vpack.c.b16 %v4148, %v4147
        %v4213 = vpack.c.b16 %v4150, %v4149
        %v4214 = vpack.c.b16 %v4152, %v4151
        %v4215 = vpack.c.b16 %v4154, %v4153
        %v4216 = vpack.c.b16 %v4156, %v4155
        %v4217 = vpack.c.b16 %v4158, %v4157
        %v4218 = vpack.c.b16 %v4160, %v4159
        %v4219 = vpack.c.b16 %v4162, %v4161
        %v4220 = vpack.c.b16 %v4164, %v4163
        %v4221 = vpack.c.b16 %v4166, %v4165
        %v4222 = vpack.c.b16 %v4168, %v4167
        %v4223 = vpack.c.b16 %v4170, %v4169
        %v4224 = vpack.c.b16 %v4172, %v4171
        %v4225 = vpack.c.b16 %v4174, %v4173
        %v4226 = vpack.c.b16 %v4176, %v4175
        %v4227 = vpack.c.b16 %v4178, %v4177
        %v4228 = vpack.c.b16 %v4180, %v4179
        %4277 = vmatprep.subr.bf16.mxu0 0
        %4278 = vmatpush1.bf16.msra.mxu0 %v4188
        %4279 = vmatprep.subr.bf16.mxu0 0
        %4280 = vmatpush1.bf16.msra.mxu0 %v4187
        %4281 = vmatprep.subr.bf16.mxu0 0
        %4282 = vmatpush1.bf16.msra.mxu0 %v4186
        %4283 = vmatprep.subr.bf16.mxu0 0
        %4284 = vmatpush1.bf16.msra.mxu0 %v4185
        %4285 = vmatprep.subr.bf16.mxu0 0
        %4286 = vmatpush1.bf16.msra.mxu0 %v4184
        %4287 = vmatprep.subr.bf16.mxu0 0
        %4288 = vmatpush1.bf16.msra.mxu0 %v4183
        %4289 = vmatprep.subr.bf16.mxu0 0
        %4290 = vmatpush1.bf16.msra.mxu0 %v4182
        %4291 = vmatprep.subr.bf16.mxu0 0
        %4292 = vmatpush1.bf16.msra.mxu0 %v4181
        %4293 = vmatprep.subr.bf16.mxu0 0
        %4294 = vmatpush2.bf16.msra.mxu0 %v4196
        %4295 = vmatprep.subr.bf16.mxu0 0
        %4296 = vmatpush2.bf16.msra.mxu0 %v4195
        %4297 = vmatprep.subr.bf16.mxu0 0
        %4298 = vmatpush2.bf16.msra.mxu0 %v4194
        %4299 = vmatprep.subr.bf16.mxu0 0
        %4300 = vmatpush2.bf16.msra.mxu0 %v4193
        %4301 = vmatprep.subr.bf16.mxu0 0
        %4302 = vmatpush2.bf16.msra.mxu0 %v4192
        %4303 = vmatprep.subr.bf16.mxu0 0
        %4304 = vmatpush2.bf16.msra.mxu0 %v4191
        %4305 = vmatprep.subr.bf16.mxu0 0
        %4306 = vmatpush2.bf16.msra.mxu0 %v4190
        %4307 = vmatprep.subr.bf16.mxu0 0
        %4308 = vmatpush2.bf16.msra.mxu0 %v4189
        %4309 = vmatprep.mubr.bf16.mxu0 %v3839
        %4310 = vmatmul.mubr.bf16.gmra.mxu0 %v3838
        %v4311 = vpop.f32.mrf.mxu0
        %v4312 = vadd.f32 %v3987, %v4311
        %v4313 = vpop.f32.mrf.mxu0
        %v4314 = vpop.f32.mrf.mxu0
        %v4315 = vadd.f32 %v3987, %v4314
        %v4316 = vpop.f32.mrf.mxu0
        %4317 = vmatprep.mubr.bf16.mxu0 %v3845
        %4318 = vmatmul.mubr.bf16.gmra.mxu0 %v3844
        %v4319 = vpop.f32.mrf.mxu0
        %v4320 = vadd.f32 %v3987, %v4319
        %v4321 = vpop.f32.mrf.mxu0
        %v4322 = vpop.f32.mrf.mxu0
        %v4323 = vadd.f32 %v3987, %v4322
        %v4324 = vpop.f32.mrf.mxu0
        %4325 = vmatprep.mubr.bf16.mxu0 %v3851
        %4326 = vmatmul.mubr.bf16.gmra.mxu0 %v3850
        %v4327 = vpop.f32.mrf.mxu0
        %v4328 = vadd.f32 %v3987, %v4327
        %v4329 = vpop.f32.mrf.mxu0
        %v4330 = vpop.f32.mrf.mxu0
        %v4331 = vadd.f32 %v3987, %v4330
        %v4332 = vpop.f32.mrf.mxu0
        %4333 = vmatprep.mubr.bf16.mxu0 %v3857
        %4334 = vmatmul.mubr.bf16.gmra.mxu0 %v3856
        %v4335 = vpop.f32.mrf.mxu0
        %v4336 = vadd.f32 %v3987, %v4335
        %v4337 = vpop.f32.mrf.mxu0
        %v4338 = vpop.f32.mrf.mxu0
        %v4339 = vadd.f32 %v3987, %v4338
        %v4340 = vpop.f32.mrf.mxu0
        %4341 = vmatprep.mubr.bf16.mxu0 %v3863
        %4342 = vmatmul.mubr.bf16.gmra.mxu0 %v3862
        %v4343 = vpop.f32.mrf.mxu0
        %v4344 = vadd.f32 %v3987, %v4343
        %v4345 = vpop.f32.mrf.mxu0
        %v4346 = vpop.f32.mrf.mxu0
        %v4347 = vadd.f32 %v3987, %v4346
        %v4348 = vpop.f32.mrf.mxu0
        %4349 = vmatprep.mubr.bf16.mxu0 %v3869
        %4350 = vmatmul.mubr.bf16.gmra.mxu0 %v3868
        %v4351 = vpop.f32.mrf.mxu0
        %v4352 = vadd.f32 %v3987, %v4351
        %v4353 = vpop.f32.mrf.mxu0
        %v4354 = vpop.f32.mrf.mxu0
        %v4355 = vadd.f32 %v3987, %v4354
        %v4356 = vpop.f32.mrf.mxu0
        %4357 = vmatprep.mubr.bf16.mxu0 %v3875
        %4358 = vmatmul.mubr.bf16.gmra.mxu0 %v3874
        %v4359 = vpop.f32.mrf.mxu0
        %v4360 = vadd.f32 %v3987, %v4359
        %v4361 = vpop.f32.mrf.mxu0
        %v4362 = vpop.f32.mrf.mxu0
        %v4363 = vadd.f32 %v3987, %v4362
        %v4364 = vpop.f32.mrf.mxu0
        %4365 = vmatprep.mubr.bf16.mxu0 %v3881
        %4366 = vmatmul.mubr.bf16.gmra.mxu0 %v3880
        %v4367 = vpop.f32.mrf.mxu0
        %v4368 = vadd.f32 %v3987, %v4367
        %v4369 = vpop.f32.mrf.mxu0
        %v4370 = vpop.f32.mrf.mxu0
        %v4371 = vadd.f32 %v3987, %v4370
        %v4372 = vpop.f32.mrf.mxu0
        %4373 = vdwg.mxu0
        %4374 = vmatprep.subr.bf16.mxu0 0
        %4375 = vmatpush1.bf16.msra.mxu0 %v4204
        %4376 = vmatprep.subr.bf16.mxu0 0
        %4377 = vmatpush1.bf16.msra.mxu0 %v4203
        %4378 = vmatprep.subr.bf16.mxu0 0
        %4379 = vmatpush1.bf16.msra.mxu0 %v4202
        %4380 = vmatprep.subr.bf16.mxu0 0
        %4381 = vmatpush1.bf16.msra.mxu0 %v4201
        %4382 = vmatprep.subr.bf16.mxu0 0
        %4383 = vmatpush1.bf16.msra.mxu0 %v4200
        %4384 = vmatprep.subr.bf16.mxu0 0
        %4385 = vmatpush1.bf16.msra.mxu0 %v4199
        %4386 = vmatprep.subr.bf16.mxu0 0
        %4387 = vmatpush1.bf16.msra.mxu0 %v4198
        %4388 = vmatprep.subr.bf16.mxu0 0
        %4389 = vmatpush1.bf16.msra.mxu0 %v4197
        %4390 = vmatprep.subr.bf16.mxu0 0
        %4391 = vmatpush2.bf16.msra.mxu0 %v4212
        %4392 = vmatprep.subr.bf16.mxu0 0
        %4393 = vmatpush2.bf16.msra.mxu0 %v4211
        %4394 = vmatprep.subr.bf16.mxu0 0
        %4395 = vmatpush2.bf16.msra.mxu0 %v4210
        %4396 = vmatprep.subr.bf16.mxu0 0
        %4397 = vmatpush2.bf16.msra.mxu0 %v4209
        %4398 = vmatprep.subr.bf16.mxu0 0
        %4399 = vmatpush2.bf16.msra.mxu0 %v4208
        %4400 = vmatprep.subr.bf16.mxu0 0
        %4401 = vmatpush2.bf16.msra.mxu0 %v4207
        %4402 = vmatprep.subr.bf16.mxu0 0
        %4403 = vmatpush2.bf16.msra.mxu0 %v4206
        %4404 = vmatprep.subr.bf16.mxu0 0
        %4405 = vmatpush2.bf16.msra.mxu0 %v4205
        %4406 = vmatprep.mubr.bf16.mxu0 %v3841
        %4407 = vmatmul.mubr.bf16.gmra.mxu0 %v3840
        %v4408 = vpop.f32.mrf.mxu0
        %v4409 = vadd.f32 %v4312, %v4408
        %v4410 = vpop.f32.mrf.mxu0
        %v4411 = vpop.f32.mrf.mxu0
        %v4412 = vadd.f32 %v4315, %v4411
        %v4413 = vpop.f32.mrf.mxu0
        %4414 = vmatprep.mubr.bf16.mxu0 %v3847
        %4415 = vmatmul.mubr.bf16.gmra.mxu0 %v3846
        %v4416 = vpop.f32.mrf.mxu0
        %v4417 = vadd.f32 %v4320, %v4416
        %v4418 = vpop.f32.mrf.mxu0
        %v4419 = vpop.f32.mrf.mxu0
        %v4420 = vadd.f32 %v4323, %v4419
        %v4421 = vpop.f32.mrf.mxu0
        %4422 = vmatprep.mubr.bf16.mxu0 %v3853
        %4423 = vmatmul.mubr.bf16.gmra.mxu0 %v3852
        %v4424 = vpop.f32.mrf.mxu0
        %v4425 = vadd.f32 %v4328, %v4424
        %v4426 = vpop.f32.mrf.mxu0
        %v4427 = vpop.f32.mrf.mxu0
        %v4428 = vadd.f32 %v4331, %v4427
        %v4429 = vpop.f32.mrf.mxu0
        %4430 = vmatprep.mubr.bf16.mxu0 %v3859
        %4431 = vmatmul.mubr.bf16.gmra.mxu0 %v3858
        %v4432 = vpop.f32.mrf.mxu0
        %v4433 = vadd.f32 %v4336, %v4432
        %v4434 = vpop.f32.mrf.mxu0
        %v4435 = vpop.f32.mrf.mxu0
        %v4436 = vadd.f32 %v4339, %v4435
        %v4437 = vpop.f32.mrf.mxu0
        %4438 = vmatprep.mubr.bf16.mxu0 %v3865
        %4439 = vmatmul.mubr.bf16.gmra.mxu0 %v3864
        %v4440 = vpop.f32.mrf.mxu0
        %v4441 = vadd.f32 %v4344, %v4440
        %v4442 = vpop.f32.mrf.mxu0
        %v4443 = vpop.f32.mrf.mxu0
        %v4444 = vadd.f32 %v4347, %v4443
        %v4445 = vpop.f32.mrf.mxu0
        %4446 = vmatprep.mubr.bf16.mxu0 %v3871
        %4447 = vmatmul.mubr.bf16.gmra.mxu0 %v3870
        %v4448 = vpop.f32.mrf.mxu0
        %v4449 = vadd.f32 %v4352, %v4448
        %v4450 = vpop.f32.mrf.mxu0
        %v4451 = vpop.f32.mrf.mxu0
        %v4452 = vadd.f32 %v4355, %v4451
        %v4453 = vpop.f32.mrf.mxu0
        %4454 = vmatprep.mubr.bf16.mxu0 %v3877
        %4455 = vmatmul.mubr.bf16.gmra.mxu0 %v3876
        %v4456 = vpop.f32.mrf.mxu0
        %v4457 = vadd.f32 %v4360, %v4456
        %v4458 = vpop.f32.mrf.mxu0
        %v4459 = vpop.f32.mrf.mxu0
        %v4460 = vadd.f32 %v4363, %v4459
        %v4461 = vpop.f32.mrf.mxu0
        %4462 = vmatprep.mubr.bf16.mxu0 %v3883
        %4463 = vmatmul.mubr.bf16.gmra.mxu0 %v3882
        %v4464 = vpop.f32.mrf.mxu0
        %v4465 = vadd.f32 %v4368, %v4464
        %v4466 = vpop.f32.mrf.mxu0
        %v4467 = vpop.f32.mrf.mxu0
        %v4468 = vadd.f32 %v4371, %v4467
        %v4469 = vpop.f32.mrf.mxu0
        %4470 = vdwg.mxu0
        %4471 = vmatprep.subr.bf16.mxu0 0
        %4472 = vmatpush1.bf16.msra.mxu0 %v4220
        %4473 = vmatprep.subr.bf16.mxu0 0
        %4474 = vmatpush1.bf16.msra.mxu0 %v4219
        %4475 = vmatprep.subr.bf16.mxu0 0
        %4476 = vmatpush1.bf16.msra.mxu0 %v4218
        %4477 = vmatprep.subr.bf16.mxu0 0
        %4478 = vmatpush1.bf16.msra.mxu0 %v4217
        %4479 = vmatprep.subr.bf16.mxu0 0
        %4480 = vmatpush1.bf16.msra.mxu0 %v4216
        %4481 = vmatprep.subr.bf16.mxu0 0
        %4482 = vmatpush1.bf16.msra.mxu0 %v4215
        %4483 = vmatprep.subr.bf16.mxu0 0
        %4484 = vmatpush1.bf16.msra.mxu0 %v4214
        %4485 = vmatprep.subr.bf16.mxu0 0
        %4486 = vmatpush1.bf16.msra.mxu0 %v4213
        %4487 = vmatprep.subr.bf16.mxu0 0
        %4488 = vmatpush2.bf16.msra.mxu0 %v4228
        %4489 = vmatprep.subr.bf16.mxu0 0
        %4490 = vmatpush2.bf16.msra.mxu0 %v4227
        %4491 = vmatprep.subr.bf16.mxu0 0
        %4492 = vmatpush2.bf16.msra.mxu0 %v4226
        %4493 = vmatprep.subr.bf16.mxu0 0
        %4494 = vmatpush2.bf16.msra.mxu0 %v4225
        %4495 = vmatprep.subr.bf16.mxu0 0
        %4496 = vmatpush2.bf16.msra.mxu0 %v4224
        %4497 = vmatprep.subr.bf16.mxu0 0
        %4498 = vmatpush2.bf16.msra.mxu0 %v4223
        %4499 = vmatprep.subr.bf16.mxu0 0
        %4500 = vmatpush2.bf16.msra.mxu0 %v4222
        %4501 = vmatprep.subr.bf16.mxu0 0
        %4502 = vmatpush2.bf16.msra.mxu0 %v4221
        %4503 = vmatprep.mubr.bf16.mxu0 %v3843
        %4504 = vmatmul.mubr.bf16.gmra.mxu0 %v3842
        %v4505 = vpop.f32.mrf.mxu0
        %v4506 = vadd.f32 %v4409, %v4505
        %v4507 = vpop.f32.mrf.mxu0
        %v4508 = vpop.f32.mrf.mxu0
        %v4509 = vadd.f32 %v4412, %v4508
        %v4510 = vpop.f32.mrf.mxu0
        %4511 = vmatprep.mubr.bf16.mxu0 %v3849
        %4512 = vmatmul.mubr.bf16.gmra.mxu0 %v3848
        %v4513 = vpop.f32.mrf.mxu0
        %v4514 = vadd.f32 %v4417, %v4513
        %v4515 = vpop.f32.mrf.mxu0
        %v4516 = vpop.f32.mrf.mxu0
        %v4517 = vadd.f32 %v4420, %v4516
        %v4518 = vpop.f32.mrf.mxu0
        %4519 = vmatprep.mubr.bf16.mxu0 %v3855
        %4520 = vmatmul.mubr.bf16.gmra.mxu0 %v3854
        %v4521 = vpop.f32.mrf.mxu0
        %v4522 = vadd.f32 %v4425, %v4521
        %v4523 = vpop.f32.mrf.mxu0
        %v4524 = vpop.f32.mrf.mxu0
        %v4525 = vadd.f32 %v4428, %v4524
        %v4526 = vpop.f32.mrf.mxu0
        %4527 = vmatprep.mubr.bf16.mxu0 %v3861
        %4528 = vmatmul.mubr.bf16.gmra.mxu0 %v3860
        %v4529 = vpop.f32.mrf.mxu0
        %v4530 = vadd.f32 %v4433, %v4529
        %v4531 = vpop.f32.mrf.mxu0
        %v4532 = vpop.f32.mrf.mxu0
        %v4533 = vadd.f32 %v4436, %v4532
        %v4534 = vpop.f32.mrf.mxu0
        %4535 = vmatprep.mubr.bf16.mxu0 %v3867
        %4536 = vmatmul.mubr.bf16.gmra.mxu0 %v3866
        %v4537 = vpop.f32.mrf.mxu0
        %v4538 = vadd.f32 %v4441, %v4537
        %v4539 = vpop.f32.mrf.mxu0
        %v4540 = vpop.f32.mrf.mxu0
        %v4541 = vadd.f32 %v4444, %v4540
        %v4542 = vpop.f32.mrf.mxu0
        %4543 = vmatprep.mubr.bf16.mxu0 %v3873
        %4544 = vmatmul.mubr.bf16.gmra.mxu0 %v3872
        %v4545 = vpop.f32.mrf.mxu0
        %v4546 = vadd.f32 %v4449, %v4545
        %v4547 = vpop.f32.mrf.mxu0
        %v4548 = vpop.f32.mrf.mxu0
        %v4549 = vadd.f32 %v4452, %v4548
        %v4550 = vpop.f32.mrf.mxu0
        %4551 = vmatprep.mubr.bf16.mxu0 %v3879
        %4552 = vmatmul.mubr.bf16.gmra.mxu0 %v3878
        %v4553 = vpop.f32.mrf.mxu0
        %v4554 = vadd.f32 %v4457, %v4553
        %v4555 = vpop.f32.mrf.mxu0
        %v4556 = vpop.f32.mrf.mxu0
        %v4557 = vadd.f32 %v4460, %v4556
        %v4558 = vpop.f32.mrf.mxu0
        %4559 = vmatprep.mubr.bf16.mxu0 %v3885
        %4560 = vmatmul.mubr.bf16.gmra.mxu0 %v3884
        %v4561 = vpop.f32.mrf.mxu0
        %v4562 = vadd.f32 %v4465, %v4561
        %v4563 = vpop.f32.mrf.mxu0
        %v4564 = vpop.f32.mrf.mxu0
        %v4565 = vadd.f32 %v4468, %v4564
        %v4566 = vpop.f32.mrf.mxu0
        %4567 = vdwg.mxu0
        %4568 = vst [vmem:[%s362] sm:$0xff] %v4506
        %4569 = vst [vmem:[%s362 + $0x8] sm:$0xff] %v4509
        %4570 = vst [vmem:[%s362 + $0x10] sm:$0xff] %v4514
        %4571 = vst [vmem:[%s362 + $0x18] sm:$0xff] %v4517
        %4572 = vst [vmem:[%s362 + $0x20] sm:$0xff] %v4522
        %4573 = vst [vmem:[%s362 + $0x28] sm:$0xff] %v4525
        %4574 = vst [vmem:[%s362 + $0x30] sm:$0xff] %v4530
        %4575 = vst [vmem:[%s362 + $0x38] sm:$0xff] %v4533
        %4576 = vst [vmem:[%s362 + $0x40] sm:$0xff] %v4538
        %4577 = vst [vmem:[%s362 + $0x48] sm:$0xff] %v4541
        %4578 = vst [vmem:[%s362 + $0x50] sm:$0xff] %v4546
        %4579 = vst [vmem:[%s362 + $0x58] sm:$0xff] %v4549
        %4580 = vst [vmem:[%s362 + $0x60] sm:$0xff] %v4554
        %4581 = vst [vmem:[%s362 + $0x68] sm:$0xff] %v4557
        %4582 = vst [vmem:[%s362 + $0x70] sm:$0xff] %v4562
        %4583 = vst [vmem:[%s362 + $0x78] sm:$0xff] %v4565
        %s4584 = smul.u32 16, %s22
        %p4585 = scmp.lt.s32.totalorder %s4584, 31
        %s4586 = scalar_select %p4585, %s4584, 31
        %s4587 = smul.addr %s4586, 8
        %s4588 = scalar_lea.vmem %s7, %s4587
        // Predicated region
        $region73: #{net_forward.1} parent=47 // pred_check
          %p4589 = pneg %p192
        $region74: #{net_forward.1} parent=47 // pred_check_branch
          %4591 = sbr.rel (%p4589) target = $region76
        $region75: #{net_forward.1} parent=47 // pred_region
          %s4592 = smul.u32 16, %s22
        $region76: #{net_forward.1} parent=47 // pred_fallthru
          _
      $region48: #{net_forward.1} parent=5 // pred_fallthru
        _
      %p4593 = scmp.le.s32.totalorder 2, %s17
      // Predicated region
      $region77: #{net_forward.1} parent=5 // pred_check
        %p4594 = pneg %p4593
      $region78: #{net_forward.1} parent=5 // pred_check_branch
        %4596 = sbr.rel (%p4594) target = $region80
      $region79: #{net_forward.1} parent=5 // pred_region
        %s4597 = ssub.s32 %s17, 2
        // Predicated region
        $region81: #{net_forward.1} parent=79 // pred_check
          %p4598 = pneg %p198
        $region82: #{net_forward.1} parent=79 // pred_check_branch
          %4600 = sbr.rel (%p4598) target = $region84
        $region83: #{net_forward.1} parent=79 // pred_region
          %s4601 = smul.u32 16, %s23
          %p4602 = scmp.lt.s32.totalorder %s4601, 31
          %s4603 = scalar_select %p4602, %s4601, 31
          %s4604 = smul.addr %s4603, 8
          %s4605 = scalar_lea.vmem %s7, %s4604
        $region84: #{net_forward.1} parent=79 // pred_fallthru
          _
      $region80: #{net_forward.1} parent=5 // pred_fallthru
        _
    $region6: #{net_forward.1} parent=1 // loop_footer
      %s21 = sadd.s32 1, %s17
    $region7: #{net_forward.1} parent=1 // loop_footer_branch
      %16 = sbr.rel target = $region3
    $region8: #{net_forward.1} parent=1 // loop_exit
      _
    %4606 = vsyncpa [#allocation3], 1
    %s4607 = scalar_lea.sflag [#allocation3], 1
    %4608 = vsyncpa %s4607, 1
    %4609 = vsyncpa [#allocation5], 1
    %4610 = vsyncpa [#allocation8], 1
    %4611 = vsyncpa [#allocation11], 1

</llo_original>
